<compile_context>
chip_gen: v7x
topology: tpu7x:2x2x1
jax: 0.10.0
libtpu: 0.0.40
codegen_flags: <defaults>
</compile_context>

<pallas_src>
import functools

import jax
import jax.numpy as jnp
from jax.experimental import pallas as pl
from jax.experimental.pallas import tpu as pltpu

_LN_EPS = 1e-5
_NEG_INF = -1e30                      # finite big-negative: no NaN on fully-masked rows
_VMEM_FALLBACK = 40 * 1024 * 1024     # fits v7x's 64 MiB VMEM with headroom


@functools.lru_cache(maxsize=None)
def _vmem_limit():
    """Generation-aware scoped-VMEM budget (v5e/v6e: 128 MiB, v7x: 64 MiB)."""
    try:
        cap = getattr(pltpu.get_tpu_info(), "vmem_capacity_bytes", None)
        if cap:
            return int(cap * 0.65)
    except Exception:
        pass
    return _VMEM_FALLBACK


# ---------------------------------------------------------------------------
# Tile selection / padding helpers
# ---------------------------------------------------------------------------

def _round_up(x, m):
    return ((x + m - 1) // m) * m


def _pick_m_tile(m, max_tile=512):
    """Row (sublane) tile for GEMM-like kernels.

    Returns (tile, padded_m).  Prefers tiles that divide m AND leave >= 2
    blocks (keeps the 'parallel' M axis splittable across v7x's 2 TCs).
    Non-divisible m is padded instead of collapsing to one giant block."""
    if m <= 128:
        return m, m
    for t in (max_tile, 256, 128):
        if m % t == 0 and m // t >= 2:
            return t, m
    t = 256 if m > 2048 else 128
    return t, _round_up(m, t)


def _pick_div_tile(dim, prefs):
    """Largest preferred tile dividing `dim`.  Weight K/N dims are multiples
    of 128 for real Whisper sizes; the full-dim fallback only triggers for
    tiny toy shapes where a single block is the right answer anyway."""
    for p in prefs:
        if p <= dim and dim % p == 0:
            return p
    return dim


def _seq_tile(n, max_tile):
    """(tile, padded_len) for a sequence axis; keeps blocks lane-dense
    (multiples of 128) whenever the axis is longer than one vreg row."""
    if n <= max_tile:
        if n <= 128 or n % 128 == 0:
            return n, n
        p = _round_up(n, 128)
        return p, p
    return max_tile, _round_up(n, max_tile)


def _pad_rows(x, m_pad):
    m = x.shape[0]
    return x if m_pad == m else jnp.pad(x, ((0, m_pad - m), (0, 0)))


def _pad_seq(x, t_pad):
    t = x.shape[1]
    return x if t_pad == t else jnp.pad(x, ((0, 0), (0, t_pad - t), (0, 0)))


# ---------------------------------------------------------------------------
# In-kernel math helpers
# ---------------------------------------------------------------------------

def _layer_norm_f32(x_f32, ln_w_ref, ln_b_ref):
    # matches LayerNorm(x.float()), eps = 1e-5
    mean = jnp.mean(x_f32, axis=-1, keepdims=True)
    var = jnp.mean(jnp.square(x_f32 - mean), axis=-1, keepdims=True)
    y = (x_f32 - mean) * jax.lax.rsqrt(var + _LN_EPS)
    return y * ln_w_ref[...].astype(jnp.float32) + ln_b_ref[...].astype(jnp.float32)


def _erf_f32(z):
    # Abramowitz & Stegun 7.1.26 polynomial erf, |error| <= 1.5e-7 (~f32 ulp),
    # built only from exp/mul/add/where (all guaranteed Mosaic lowerings).
    # TODO(synk): switch to jax.lax.erf if/when erf_p has a Mosaic lowering.
    a1, a2, a3, a4, a5 = 0.254829592, -0.284496736, 1.421413741, -1.453152027, 1.061405429
    p = 0.3275911
    s = jnp.where(z < 0.0, -1.0, 1.0)
    za = jnp.abs(z)
    t = 1.0 / (1.0 + p * za)
    poly = ((((a5 * t + a4) * t + a3) * t + a2) * t + a1) * t
    return s * (1.0 - poly * jnp.exp(-za * za))


def _gelu_exact_f32(x_f32):
    # exact (erf) GELU, matching torch.nn.GELU() default
    return 0.5 * x_f32 * (1.0 + _erf_f32(x_f32 * 0.7071067811865476))


# ---------------------------------------------------------------------------
# Tiled matmul (+ optional bias, + optional fused residual)
# ---------------------------------------------------------------------------

def _matmul_kernel(*refs, has_bias, add_residual):
    idx = 0
    x_ref, w_ref = refs[idx], refs[idx + 1]
    idx += 2
    b_ref = r_ref = None
    if has_bias:
        b_ref = refs[idx]; idx += 1
    if add_residual:
        r_ref = refs[idx]; idx += 1
    o_ref, acc_ref = refs[idx], refs[idx + 1]

    k = pl.program_id(2)

    @pl.when(k == 0)
    def _init():
        acc_ref[...] = jnp.zeros_like(acc_ref)

    acc_ref[...] += jnp.dot(x_ref[...], w_ref[...],
                            preferred_element_type=jnp.float32)

    @pl.when(k == pl.num_programs(2) - 1)
    def _finalize():
        y = acc_ref[...]
        if has_bias:
            y = y + b_ref[...].astype(jnp.float32)
        if add_residual:
            y = y + r_ref[...].astype(jnp.float32)
        o_ref[...] = y.astype(o_ref.dtype)


def matmul(x, w, b=None, residual=None):
    """y = x @ w (+ b) (+ residual).  x: (M, K); w: (K, N) (pre-transposed)."""
    m, kdim = x.shape
    n = w.shape[1]
    tm, m_pad = _pick_m_tile(m)
    tn = _pick_div_tile(n, (512, 256, 128))
    tk = _pick_div_tile(kdim, (512, 256, 128))

    args = [_pad_rows(x, m_pad), w]
    in_specs = [pl.BlockSpec((tm, tk), lambda i, j, k: (i, k)),
                pl.BlockSpec((tk, tn), lambda i, j, k: (k, j))]
    if b is not None:
        args.append(b.reshape(1, n))
        in_specs.append(pl.BlockSpec((1, tn), lambda i, j, k: (0, j)))
    if residual is not None:
        args.append(_pad_rows(residual, m_pad))
        in_specs.append(pl.BlockSpec((tm, tn), lambda i, j, k: (i, j)))

    out = pl.pallas_call(
        functools.partial(_matmul_kernel, has_bias=b is not None,
                          add_residual=residual is not None),
        out_shape=jax.ShapeDtypeStruct((m_pad, n), x.dtype),
        grid=(m_pad // tm, n // tn, kdim // tk),
        in_specs=in_specs,
        out_specs=pl.BlockSpec((tm, tn), lambda i, j, k: (i, j)),
        scratch_shapes=[pltpu.VMEM((tm, tn), jnp.float32)],
        compiler_params=pltpu.CompilerParams(
            dimension_semantics=("parallel", "parallel", "arbitrary"),
            vmem_limit_bytes=_vmem_limit()),
    )(*args)
    return out[:m] if m_pad != m else out


# ---------------------------------------------------------------------------
# Fused (optional LayerNorm) + N linear projections
#   * attn_ln + Q/K/V           (LN result cached in VMEM across N tiles)
#   * cross_ln + Q
#   * cross-attn K & V of xa    (no LN: xa is read from HBM exactly once)
# ---------------------------------------------------------------------------

def _fused_proj_kernel(*refs, n_proj, has_bias, apply_ln):
    idx = 0
    x_ref = refs[idx]; idx += 1
    if apply_ln:
        ln_w_ref, ln_b_ref = refs[idx], refs[idx + 1]
        idx += 2
    w_refs, b_refs = [], []
    for p in range(n_proj):
        w_refs.append(refs[idx]); idx += 1
        if has_bias[p]:
            b_refs.append(refs[idx]); idx += 1
        else:
            b_refs.append(None)
    out_refs = refs[idx: idx + n_proj]
    idx += n_proj

    if apply_ln:
        xn_ref = refs[idx]

        @pl.when(pl.program_id(1) == 0)
        def _ln():
            y = _layer_norm_f32(x_ref[...].astype(jnp.float32), ln_w_ref, ln_b_ref)
            xn_ref[...] = y.astype(xn_ref.dtype)   # LayerNorm(x.float()).type(x.dtype)

        xn = xn_ref[...]
    else:
        xn = x_ref[...]

    for p in range(n_proj):
        y = jnp.dot(xn, w_refs[p][...], preferred_element_type=jnp.float32)
        if b_refs[p] is not None:
            y = y + b_refs[p][...].astype(jnp.float32)
        out_refs[p][...] = y.astype(out_refs[p].dtype)


def fused_proj(x, projs, ln=None):
    """[opt LayerNorm(x)] shared by several linears.
    x: (M, D); projs: [(w(D, N), b_or_None), ...]; ln: (ln_w, ln_b) or None."""
    m, d = x.shape
    n = projs[0][0].shape[1]
    tm, m_pad = _pick_m_tile(m, max_tile=256)
    tn = _pick_div_tile(n, (512, 256, 128))
    apply_ln = ln is not None

    args = [_pad_rows(x, m_pad)]
    in_specs = [pl.BlockSpec((tm, d), lambda i, j: (i, 0))]
    if apply_ln:
        ln_w, ln_b = ln
        args += [ln_w.reshape(1, d), ln_b.reshape(1, d)]
        in_specs += [pl.BlockSpec((1, d), lambda i, j: (0, 0)),
                     pl.BlockSpec((1, d), lambda i, j: (0, 0))]
    has_bias = []
    for w, b in projs:
        args.append(w)
        in_specs.append(pl.BlockSpec((d, tn), lambda i, j: (0, j)))
        if b is not None:
            args.append(b.reshape(1, n))
            in_specs.append(pl.BlockSpec((1, tn), lambda i, j: (0, j)))
        has_bias.append(b is not None)

    n_proj = len(projs)
    out_shape = [jax.ShapeDtypeStruct((m_pad, n), x.dtype) for _ in range(n_proj)]
    out_specs = [pl.BlockSpec((tm, tn), lambda i, j: (i, j)) for _ in range(n_proj)]
    scratch = [pltpu.VMEM((tm, d), x.dtype)] if apply_ln else []
    # With LN, the N axis must stay 'arbitrary' so the LN scratch written at
    # j==0 is reused by later N tiles of the same row block on the same core.
    sem = ("parallel", "arbitrary") if apply_ln else ("parallel", "parallel")

    outs = pl.pallas_call(
        functools.partial(_fused_proj_kernel, n_proj=n_proj,
                          has_bias=tuple(has_bias), apply_ln=apply_ln),
        out_shape=out_shape,
        grid=(m_pad // tm, n // tn),
        in_specs=in_specs,
        out_specs=out_specs,
        scratch_shapes=scratch,
        compiler_params=pltpu.CompilerParams(
            dimension_semantics=sem, vmem_limit_bytes=_vmem_limit()),
    )(*args)
    if m_pad != m:
        outs = [o[:m] for o in outs]
    return tuple(outs)


# ---------------------------------------------------------------------------
# Fused MLP: mlp_ln + fc1 + exact GELU + fc2 + bias + residual
# ---------------------------------------------------------------------------

def _ln_mlp_kernel(x_ref, ln_w_ref, ln_b_ref, w1_ref, b1_ref, w2_ref, b2_ref,
                   o_ref, xn_ref, acc_ref):
    k = pl.program_id(1)

    @pl.when(k == 0)
    def _init():
        y = _layer_norm_f32(x_ref[...].astype(jnp.float32), ln_w_ref, ln_b_ref)
        xn_ref[...] = y.astype(xn_ref.dtype)
        acc_ref[...] = jnp.zeros_like(acc_ref)

    # one hidden tile: fc1 -> GELU -> partial fc2, never leaves VMEM
    h = jnp.dot(xn_ref[...], w1_ref[...], preferred_element_type=jnp.float32)
    h = _gelu_exact_f32(h + b1_ref[...].astype(jnp.float32))
    acc_ref[...] += jnp.dot(h.astype(xn_ref.dtype), w2_ref[...],
                            preferred_element_type=jnp.float32)

    @pl.when(k == pl.num_programs(1) - 1)
    def _finalize():
        y = acc_ref[...] + b2_ref[...].astype(jnp.float32)
        y = y + x_ref[...].astype(jnp.float32)          # residual
        o_ref[...] = y.astype(o_ref.dtype)


def ln_mlp(x, ln_w, ln_b, w1, b1, w2, b2):
    """x + fc2(GELU(fc1(LayerNorm(x)))).  x: (M, D); w1: (D, H); w2: (H, D)."""
    m, d = x.shape
    hdim = w1.shape[1]
    tm, m_pad = _pick_m_tile(m, max_tile=256)
    th = _pick_div_tile(hdim, (1024, 512, 256, 128))
    out = pl.pallas_call(
        _ln_mlp_kernel,
        out_shape=jax.ShapeDtypeStruct((m_pad, d), x.dtype),
        grid=(m_pad // tm, hdim // th),
        in_specs=[
            pl.BlockSpec((tm, d), lambda i, k: (i, 0)),
            pl.BlockSpec((1, d), lambda i, k: (0, 0)),
            pl.BlockSpec((1, d), lambda i, k: (0, 0)),
            pl.BlockSpec((d, th), lambda i, k: (0, k)),
            pl.BlockSpec((1, th), lambda i, k: (0, k)),
            pl.BlockSpec((th, d), lambda i, k: (k, 0)),
            pl.BlockSpec((1, d), lambda i, k: (0, 0)),
        ],
        out_specs=pl.BlockSpec((tm, d), lambda i, k: (i, 0)),
        scratch_shapes=[pltpu.VMEM((tm, d), x.dtype),
                        pltpu.VMEM((tm, d), jnp.float32)],
        compiler_params=pltpu.CompilerParams(
            dimension_semantics=("parallel", "arbitrary"),
            vmem_limit_bytes=_vmem_limit()),
    )(_pad_rows(x, m_pad), ln_w.reshape(1, d), ln_b.reshape(1, d),
      w1, b1.reshape(1, hdim), w2, b2.reshape(1, d))
    return out[:m] if m_pad != m else out


# ---------------------------------------------------------------------------
# Flash-style attention (grouped heads, lane-dense blocks, online softmax)
# ---------------------------------------------------------------------------

def _attn_kernel(q_ref, k_ref, v_ref, o_ref, m_ref, l_ref, acc_ref, *,
                 heads, head_dim, causal, scale, kv_len, tq_tile, tk_tile):
    qi = pl.program_id(2)
    ki = pl.program_id(3)
    nk = pl.num_programs(3)

    @pl.when(ki == 0)
    def _init():
        m_ref[...] = jnp.full((tq_tile, heads), _NEG_INF, jnp.float32)
        l_ref[...] = jnp.zeros_like(l_ref)
        acc_ref[...] = jnp.zeros_like(acc_ref)

    def _compute():
        qb = q_ref[0]          # (tq, heads*head_dim)
        kb = k_ref[0]          # (tk, heads*head_dim)
        vb = v_ref[0]
        col = ki * tk_tile + jax.lax.broadcasted_iota(jnp.int32, (tq_tile, tk_tile), 1)
        banned = col >= kv_len                       # padded / out-of-range keys
        if causal:
            row = qi * tq_tile + jax.lax.broadcasted_iota(jnp.int32, (tq_tile, tk_tile), 0)
            banned = jnp.logical_or(banned, col > row)
        for h in range(heads):
            s = h * head_dim
            qh = qb[:, s:s + head_dim] * scale       # fold (dh**-0.25)**2 into q
            kh = kb[:, s:s + head_dim]
            logits = jax.lax.dot_general(qh, kh, (((1,), (1,)), ((), ())),
                                         preferred_element_type=jnp.float32)
            logits = jnp.where(banned, _NEG_INF, logits)
            m_prev = m_ref[:, h:h + 1]
            m_new = jnp.maximum(m_prev, jnp.max(logits, axis=-1, keepdims=True))
            alpha = jnp.exp(m_prev - m_new)
            p = jnp.exp(logits - m_new)
            l_ref[:, h:h + 1] = alpha * l_ref[:, h:h + 1] + jnp.sum(p, axis=-1, keepdims=True)
            pv = jnp.dot(p.astype(vb.dtype), vb[:, s:s + head_dim],
                         preferred_element_type=jnp.float32)
            acc_ref[:, s:s + head_dim] = alpha * acc_ref[:, s:s + head_dim] + pv
            m_ref[:, h:h + 1] = m_new

    if causal:
        # skip k blocks entirely above the diagonal of this q block
        q_last = (qi + 1) * tq_tile - 1
        pl.when(ki * tk_tile <= q_last)(_compute)
    else:
        _compute()

    @pl.when(ki == nk - 1)
    def _finalize():
        # small EUP-approx deviation from an exact divide; swap to acc / l
        # if bit-level parity with the PyTorch reference is required.
        inv_l = pl.reciprocal(l_ref[...], approx=True)      # (tq, heads)
        for h in range(heads):
            s = h * head_dim
            acc_ref[:, s:s + head_dim] = acc_ref[:, s:s + head_dim] * inv_l[:, h:h + 1]
        o_ref[0] = acc_ref[...].astype(o_ref.dtype)          # single lane-dense store


def attention(q, k, v, n_head, *, causal):
    """q: (B, Tq, D), k/v: (B, Tk, D) in fused-head layout; returns (B, Tq, D)."""
    b, tq_len, d = q.shape
    tk_len = k.shape[1]
    dh = d // n_head

    # Group heads so each grid step's blocks are a multiple of 128 lanes
    # (lane-dense loads/stores) while keeping ng groups as a parallel axis.
    hpg = n_head
    for c in range(1, n_head + 1):
        if n_head % c == 0 and (c * dh) % 128 == 0:
            hpg = c
            break
    ng = n_head // hpg
    gw = hpg * dh

    tq_t, tq_pad = _seq_tile(tq_len, 256)
    tk_t, tk_pad = _seq_tile(tk_len, 512)
    q_p = _pad_seq(q, tq_pad)
    k_p = _pad_seq(k, tk_pad)
    v_p = _pad_seq(v, tk_pad)

    kernel = functools.partial(
        _attn_kernel, heads=hpg, head_dim=dh, causal=causal,
        scale=float(dh) ** -0.5, kv_len=tk_len, tq_tile=tq_t, tk_tile=tk_t)

    out = pl.pallas_call(
        kernel,
        out_shape=jax.ShapeDtypeStruct((b, tq_pad, d), q.dtype),
        grid=(b, ng, tq_pad // tq_t, tk_pad // tk_t),
        in_specs=[
            pl.BlockSpec((1, tq_t, gw), lambda bi, g, qi, ki: (bi, qi, g)),
            pl.BlockSpec((1, tk_t, gw), lambda bi, g, qi, ki: (bi, ki, g)),
            pl.BlockSpec((1, tk_t, gw), lambda bi, g, qi, ki: (bi, ki, g)),
        ],
        out_specs=pl.BlockSpec((1, tq_t, gw), lambda bi, g, qi, ki: (bi, qi, g)),
        scratch_shapes=[pltpu.VMEM((tq_t, hpg), jnp.float32),   # running max
                        pltpu.VMEM((tq_t, hpg), jnp.float32),   # running sum
                        pltpu.VMEM((tq_t, gw), jnp.float32)],   # output accumulator
        compiler_params=pltpu.CompilerParams(
            dimension_semantics=("parallel", "parallel", "parallel", "arbitrary"),
            vmem_limit_bytes=_vmem_limit()),
    )(q_p, k_p, v_p)
    return out[:, :tq_len] if tq_pad != tq_len else out


# ---------------------------------------------------------------------------
# ResidualAttentionBlock forward (cross_attention=True, kv_cache=None)
# ---------------------------------------------------------------------------

def residual_attention_block(x, xa, params, n_head):
    b, t, d = x.shape
    x2 = x.reshape(b * t, d)

    # ---- self-attention: x = x + out(attn(attn_ln(x))) with causal mask ----
    p = params["attn"]
    q, k, v = fused_proj(
        x2, [(p["q_w"], p["q_b"]), (p["k_w"], None), (p["v_w"], p["v_b"])],
        ln=(params["attn_ln_w"], params["attn_ln_b"]))
    wv = attention(q.reshape(b, t, d), k.reshape(b, t, d), v.reshape(b, t, d),
                   n_head, causal=True)
    x2 = matmul(wv.reshape(b * t, d), p["out_w"], p["out_b"], residual=x2)

    # ---- cross-attention: x = x + out(attn(cross_ln(x), xa)), no mask ------
    if xa is not None and "cross_attn" in params:
        p = params["cross_attn"]
        ta = xa.shape[1]
        xa2 = xa.reshape(b * ta, d)
        (q,) = fused_proj(x2, [(p["q_w"], p["q_b"])],
                          ln=(params["cross_ln_w"], params["cross_ln_b"]))
        # K and V projections of xa fused into one kernel (xa read once).
        k, v = fused_proj(xa2, [(p["k_w"], None), (p["v_w"], p["v_b"])], ln=None)
        wv = attention(q.reshape(b, t, d), k.reshape(b, ta, d),
                       v.reshape(b, ta, d), n_head, causal=False)
        x2 = matmul(wv.reshape(b * t, d), p["out_w"], p["out_b"], residual=x2)

    # ---- MLP: x = x + fc2(GELU(fc1(mlp_ln(x)))), fully fused ---------------
    mp = params["mlp"]
    x2 = ln_mlp(x2, params["mlp_ln_w"], params["mlp_ln_b"],
                mp["fc1_w"], mp["fc1_b"], mp["fc2_w"], mp["fc2_b"])
    return x2.reshape(b, t, d)


# ---------------------------------------------------------------------------
# Deterministic synthetic parameters
# ---------------------------------------------------------------------------

def init_block_params(key, *, n_state, cross_attention=True, dtype=jnp.float32):
    """Linear weights are stored pre-transposed to (in, out); a real PyTorch
    checkpoint ((out, in) layout) should be transposed ONCE at load time.
    Pass dtype=jnp.bfloat16 (with bf16 activations) for the fast MXU path."""
    keys = iter(jax.random.split(key, 20))

    def nrm(shape, scale=0.02):
        return (scale * jax.random.normal(next(keys), shape, dtype=jnp.float32)).astype(dtype)

    def mha():
        return dict(q_w=nrm((n_state, n_state)), q_b=nrm((n_state,)),
                    k_w=nrm((n_state, n_state)),                     # no bias
                    v_w=nrm((n_state, n_state)), v_b=nrm((n_state,)),
                    out_w=nrm((n_state, n_state)), out_b=nrm((n_state,)))

    n_mlp = 4 * n_state
    params = dict(
        attn=mha(),
        attn_ln_w=jnp.ones((n_state,), dtype),
        attn_ln_b=jnp.zeros((n_state,), dtype),
        mlp=dict(fc1_w=nrm((n_state, n_mlp)), fc1_b=nrm((n_mlp,)),
                 fc2_w=nrm((n_mlp, n_state)), fc2_b=nrm((n_state,))),
        mlp_ln_w=jnp.ones((n_state,), dtype),
        mlp_ln_b=jnp.zeros((n_state,), dtype),
    )
    if cross_attention:
        params["cross_attn"] = mha()
        params["cross_ln_w"] = jnp.ones((n_state,), dtype)
        params["cross_ln_b"] = jnp.zeros((n_state,), dtype)
    return params


# ---------------------------------------------------------------------------

if __name__ == "__main__":
    B, T, TA = 2, 8, 16            # batch, text ctx, audio ctx
    N_STATE, N_HEAD = 32, 4

    root = jax.random.PRNGKey(0)
    kp, kx, ka = jax.random.split(root, 3)
    params = init_block_params(kp, n_state=N_STATE, cross_attention=True)
    x = jax.random.normal(kx, (B, T, N_STATE), dtype=jnp.float32)
    xa = jax.random.normal(ka, (B, TA, N_STATE), dtype=jnp.float32)

    fwd = jax.jit(functools.partial(residual_attention_block, n_head=N_HEAD))
    y = jax.block_until_ready(fwd(x, xa, params))
    assert y.shape == (B, T, N_STATE), y.shape
    assert y.dtype == x.dtype, y.dtype
    print("KERNEL_OK")
</pallas_src>

<mosaic_0001>
module attributes {stable_mosaic.version = 11 : i64} {
  func.func @_fused_proj_kernel(%arg0: i32, %arg1: i32, %arg2: memref<16x32xf32, #tpu.memory_space<vmem>>, %arg3: memref<1x32xf32, #tpu.memory_space<vmem>>, %arg4: memref<1x32xf32, #tpu.memory_space<vmem>>, %arg5: memref<32x32xf32, #tpu.memory_space<vmem>>, %arg6: memref<1x32xf32, #tpu.memory_space<vmem>>, %arg7: memref<16x32xf32, #tpu.memory_space<vmem>>, %arg8: memref<16x32xf32, #tpu.memory_space<vmem>>) attributes {dimension_semantics = [#tpu.dimension_semantics<parallel>, #tpu.dimension_semantics<arbitrary>], iteration_bounds = array<i64: 1, 1>, scalar_prefetch = 0 : i64, scratch_operands = 1 : i64, tpu.core_type = #tpu.core_type<tc>, window_params = [{transform_indices = @transform_0, window_bounds = array<i64: 16, 32>}, {pipeline_mode = #tpu.pipeline_mode<synchronous>, transform_indices = @transform_1, window_bounds = array<i64: 1, 32>}, {pipeline_mode = #tpu.pipeline_mode<synchronous>, transform_indices = @transform_2, window_bounds = array<i64: 1, 32>}, {transform_indices = @transform_3, window_bounds = array<i64: 32, 32>}, {transform_indices = @transform_4, window_bounds = array<i64: 1, 32>}, {transform_indices = @transform_5, window_bounds = array<i64: 16, 32>}]} {
    %c0_i32 = arith.constant 0 : i32
    %0 = arith.cmpi eq, %arg1, %c0_i32 : i32
    %1 = arith.extui %0 : i1 to i32
    %c0_i32_0 = arith.constant 0 : i32
    %2 = arith.cmpi ne, %1, %c0_i32_0 : i32
    scf.if %2 {
      %c0_8 = arith.constant 0 : index
      %c0_9 = arith.constant 0 : index
      %10 = vector.load %arg2[%c0_8, %c0_9] : memref<16x32xf32, #tpu.memory_space<vmem>>, vector<16x32xf32>
      %cst_10 = arith.constant dense<0.000000e+00> : vector<16xf32>
      %11 = vector.multi_reduction <add>, %10, %cst_10 [1] : vector<16x32xf32> to vector<16xf32>
      %12 = vector.shape_cast %11 : vector<16xf32> to vector<16x1xf32>
      %cst_11 = arith.constant 3.200000e+01 : f32
      %13 = vector.broadcast %cst_11 : f32 to vector<16x1xf32>
      %14 = arith.divf %12, %13 : vector<16x1xf32>
      %15 = vector.broadcast %14 : vector<16x1xf32> to vector<16x32xf32>
      %16 = arith.subf %10, %15 : vector<16x32xf32>
      %17 = arith.mulf %16, %16 : vector<16x32xf32>
      %cst_12 = arith.constant dense<0.000000e+00> : vector<16xf32>
      %18 = vector.multi_reduction <add>, %17, %cst_12 [1] : vector<16x32xf32> to vector<16xf32>
      %19 = vector.shape_cast %18 : vector<16xf32> to vector<16x1xf32>
      %cst_13 = arith.constant 3.200000e+01 : f32
      %20 = vector.broadcast %cst_13 : f32 to vector<16x1xf32>
      %21 = arith.divf %19, %20 : vector<16x1xf32>
      %22 = vector.broadcast %14 : vector<16x1xf32> to vector<16x32xf32>
      %23 = arith.subf %10, %22 : vector<16x32xf32>
      %cst_14 = arith.constant 9.99999974E-6 : f32
      %24 = vector.broadcast %cst_14 : f32 to vector<16x1xf32>
      %25 = arith.addf %21, %24 : vector<16x1xf32>
      %26 = math.rsqrt %25 : vector<16x1xf32>
      %27 = vector.broadcast %26 : vector<16x1xf32> to vector<16x32xf32>
      %28 = arith.mulf %23, %27 : vector<16x32xf32>
      %c0_15 = arith.constant 0 : index
      %c0_16 = arith.constant 0 : index
      %29 = vector.load %arg3[%c0_15, %c0_16] : memref<1x32xf32, #tpu.memory_space<vmem>>, vector<1x32xf32>
      %30 = vector.broadcast %29 : vector<1x32xf32> to vector<16x32xf32>
      %31 = arith.mulf %28, %30 : vector<16x32xf32>
      %c0_17 = arith.constant 0 : index
      %c0_18 = arith.constant 0 : index
      %32 = vector.load %arg4[%c0_17, %c0_18] : memref<1x32xf32, #tpu.memory_space<vmem>>, vector<1x32xf32>
      %33 = vector.broadcast %32 : vector<1x32xf32> to vector<16x32xf32>
      %34 = arith.addf %31, %33 : vector<16x32xf32>
      %c0_19 = arith.constant 0 : index
      %c0_20 = arith.constant 0 : index
      %35 = vector.load %arg8[%c0_19, %c0_20] : memref<16x32xf32, #tpu.memory_space<vmem>>, vector<16x32xf32>
      tpu.vector_store %arg8[%c0_19, %c0_20], %34 {strides = array<i32>} : memref<16x32xf32, #tpu.memory_space<vmem>>, vector<16x32xf32>,
    } else {
    }
    %c0 = arith.constant 0 : index
    %c0_1 = arith.constant 0 : index
    %3 = vector.load %arg8[%c0, %c0_1] : memref<16x32xf32, #tpu.memory_space<vmem>>, vector<16x32xf32>
    %c0_2 = arith.constant 0 : index
    %c0_3 = arith.constant 0 : index
    %4 = vector.load %arg5[%c0_2, %c0_3] : memref<32x32xf32, #tpu.memory_space<vmem>>, vector<32x32xf32>
    %cst = arith.constant dense<0.000000e+00> : vector<16x32xf32>
    %5 = tpu.matmul %3, %4, %cst {dimension_numbers = #tpu.dot_dimension_numbers<[1], [0], [0], [1], [0, 0, 1, 1], [], []>} : vector<16x32xf32>, vector<32x32xf32>, vector<16x32xf32> -> vector<16x32xf32>
    %c0_4 = arith.constant 0 : index
    %c0_5 = arith.constant 0 : index
    %6 = vector.load %arg6[%c0_4, %c0_5] : memref<1x32xf32, #tpu.memory_space<vmem>>, vector<1x32xf32>
    %7 = vector.broadcast %6 : vector<1x32xf32> to vector<16x32xf32>
    %8 = arith.addf %5, %7 : vector<16x32xf32>
    %c0_6 = arith.constant 0 : index
    %c0_7 = arith.constant 0 : index
    %9 = vector.load %arg7[%c0_6, %c0_7] : memref<16x32xf32, #tpu.memory_space<vmem>>, vector<16x32xf32>
    tpu.vector_store %arg7[%c0_6, %c0_7], %8 {strides = array<i32>} : memref<16x32xf32, #tpu.memory_space<vmem>>, vector<16x32xf32>,
    return
  }
  func.func @transform_0(%arg0: i32, %arg1: i32) -> (i32, i32) {
    %c0_i32 = arith.constant 0 : i32
    %c0_i32_0 = arith.constant 0 : i32
    return %arg0, %c0_i32 : i32, i32
  }
  func.func @transform_1(%arg0: i32, %arg1: i32) -> (i32, i32) {
    %c0_i32 = arith.constant 0 : i32
    %c0_i32_0 = arith.constant 0 : i32
    %c0_i32_1 = arith.constant 0 : i32
    return %c0_i32, %c0_i32_0 : i32, i32
  }
  func.func @transform_2(%arg0: i32, %arg1: i32) -> (i32, i32) {
    %c0_i32 = arith.constant 0 : i32
    %c0_i32_0 = arith.constant 0 : i32
    %c0_i32_1 = arith.constant 0 : i32
    return %c0_i32, %c0_i32_0 : i32, i32
  }
  func.func @transform_3(%arg0: i32, %arg1: i32) -> (i32, i32) {
    %c0_i32 = arith.constant 0 : i32
    %c0_i32_0 = arith.constant 0 : i32
    return %c0_i32, %arg1 : i32, i32
  }
  func.func @transform_4(%arg0: i32, %arg1: i32) -> (i32, i32) {
    %c0_i32 = arith.constant 0 : i32
    %c0_i32_0 = arith.constant 0 : i32
    return %c0_i32, %arg1 : i32, i32
  }
  func.func @transform_5(%arg0: i32, %arg1: i32) -> (i32, i32) {
    %c0_i32 = arith.constant 0 : i32
    return %arg0, %arg1 : i32, i32
  }
}

module attributes {stable_mosaic.version = 11 : i64} {
  func.func @_fused_proj_kernel(%arg0: i32, %arg1: i32, %arg2: memref<16x32xf32, #tpu.memory_space<vmem>>, %arg3: memref<1x32xf32, #tpu.memory_space<vmem>>, %arg4: memref<1x32xf32, #tpu.memory_space<vmem>>, %arg5: memref<32x32xf32, #tpu.memory_space<vmem>>, %arg6: memref<1x32xf32, #tpu.memory_space<vmem>>, %arg7: memref<32x32xf32, #tpu.memory_space<vmem>>, %arg8: memref<32x32xf32, #tpu.memory_space<vmem>>, %arg9: memref<1x32xf32, #tpu.memory_space<vmem>>, %arg10: memref<16x32xf32, #tpu.memory_space<vmem>>, %arg11: memref<16x32xf32, #tpu.memory_space<vmem>>, %arg12: memref<16x32xf32, #tpu.memory_space<vmem>>, %arg13: memref<16x32xf32, #tpu.memory_space<vmem>>) attributes {dimension_semantics = [#tpu.dimension_semantics<parallel>, #tpu.dimension_semantics<arbitrary>], iteration_bounds = array<i64: 1, 1>, scalar_prefetch = 0 : i64, scratch_operands = 1 : i64, tpu.core_type = #tpu.core_type<tc>, window_params = [{transform_indices = @transform_0, window_bounds = array<i64: 16, 32>}, {pipeline_mode = #tpu.pipeline_mode<synchronous>, transform_indices = @transform_1, window_bounds = array<i64: 1, 32>}, {pipeline_mode = #tpu.pipeline_mode<synchronous>, transform_indices = @transform_2, window_bounds = array<i64: 1, 32>}, {transform_indices = @transform_3, window_bounds = array<i64: 32, 32>}, {transform_indices = @transform_4, window_bounds = array<i64: 1, 32>}, {transform_indices = @transform_5, window_bounds = array<i64: 32, 32>}, {transform_indices = @transform_6, window_bounds = array<i64: 32, 32>}, {transform_indices = @transform_7, window_bounds = array<i64: 1, 32>}, {transform_indices = @transform_8, window_bounds = array<i64: 16, 32>}, {transform_indices = @transform_9, window_bounds = array<i64: 16, 32>}, {transform_indices = @transform_10, window_bounds = array<i64: 16, 32>}]} {
    %c0_i32 = arith.constant 0 : i32
    %0 = arith.cmpi eq, %arg1, %c0_i32 : i32
    %1 = arith.extui %0 : i1 to i32
    %c0_i32_0 = arith.constant 0 : i32
    %2 = arith.cmpi ne, %1, %c0_i32_0 : i32
    scf.if %2 {
      %c0_20 = arith.constant 0 : index
      %c0_21 = arith.constant 0 : index
      %19 = vector.load %arg2[%c0_20, %c0_21] : memref<16x32xf32, #tpu.memory_space<vmem>>, vector<16x32xf32>
      %cst_22 = arith.constant dense<0.000000e+00> : vector<16xf32>
      %20 = vector.multi_reduction <add>, %19, %cst_22 [1] : vector<16x32xf32> to vector<16xf32>
      %21 = vector.shape_cast %20 : vector<16xf32> to vector<16x1xf32>
      %cst_23 = arith.constant 3.200000e+01 : f32
      %22 = vector.broadcast %cst_23 : f32 to vector<16x1xf32>
      %23 = arith.divf %21, %22 : vector<16x1xf32>
      %24 = vector.broadcast %23 : vector<16x1xf32> to vector<16x32xf32>
      %25 = arith.subf %19, %24 : vector<16x32xf32>
      %26 = arith.mulf %25, %25 : vector<16x32xf32>
      %cst_24 = arith.constant dense<0.000000e+00> : vector<16xf32>
      %27 = vector.multi_reduction <add>, %26, %cst_24 [1] : vector<16x32xf32> to vector<16xf32>
      %28 = vector.shape_cast %27 : vector<16xf32> to vector<16x1xf32>
      %cst_25 = arith.constant 3.200000e+01 : f32
      %29 = vector.broadcast %cst_25 : f32 to vector<16x1xf32>
      %30 = arith.divf %28, %29 : vector<16x1xf32>
      %31 = vector.broadcast %23 : vector<16x1xf32> to vector<16x32xf32>
      %32 = arith.subf %19, %31 : vector<16x32xf32>
      %cst_26 = arith.constant 9.99999974E-6 : f32
      %33 = vector.broadcast %cst_26 : f32 to vector<16x1xf32>
      %34 = arith.addf %30, %33 : vector<16x1xf32>
      %35 = math.rsqrt %34 : vector<16x1xf32>
      %36 = vector.broadcast %35 : vector<16x1xf32> to vector<16x32xf32>
      %37 = arith.mulf %32, %36 : vector<16x32xf32>
      %c0_27 = arith.constant 0 : index
      %c0_28 = arith.constant 0 : index
      %38 = vector.load %arg3[%c0_27, %c0_28] : memref<1x32xf32, #tpu.memory_space<vmem>>, vector<1x32xf32>
      %39 = vector.broadcast %38 : vector<1x32xf32> to vector<16x32xf32>
      %40 = arith.mulf %37, %39 : vector<16x32xf32>
      %c0_29 = arith.constant 0 : index
      %c0_30 = arith.constant 0 : index
      %41 = vector.load %arg4[%c0_29, %c0_30] : memref<1x32xf32, #tpu.memory_space<vmem>>, vector<1x32xf32>
      %42 = vector.broadcast %41 : vector<1x32xf32> to vector<16x32xf32>
      %43 = arith.addf %40, %42 : vector<16x32xf32>
      %c0_31 = arith.constant 0 : index
      %c0_32 = arith.constant 0 : index
      %44 = vector.load %arg13[%c0_31, %c0_32] : memref<16x32xf32, #tpu.memory_space<vmem>>, vector<16x32xf32>
      tpu.vector_store %arg13[%c0_31, %c0_32], %43 {strides = array<i32>} : memref<16x32xf32, #tpu.memory_space<vmem>>, vector<16x32xf32>,
    } else {
    }
    %c0 = arith.constant 0 : index
    %c0_1 = arith.constant 0 : index
    %3 = vector.load %arg13[%c0, %c0_1] : memref<16x32xf32, #tpu.memory_space<vmem>>, vector<16x32xf32>
    %c0_2 = arith.constant 0 : index
    %c0_3 = arith.constant 0 : index
    %4 = vector.load %arg5[%c0_2, %c0_3] : memref<32x32xf32, #tpu.memory_space<vmem>>, vector<32x32xf32>
    %cst = arith.constant dense<0.000000e+00> : vector<16x32xf32>
    %5 = tpu.matmul %3, %4, %cst {dimension_numbers = #tpu.dot_dimension_numbers<[1], [0], [0], [1], [0, 0, 1, 1], [], []>} : vector<16x32xf32>, vector<32x32xf32>, vector<16x32xf32> -> vector<16x32xf32>
    %c0_4 = arith.constant 0 : index
    %c0_5 = arith.constant 0 : index
    %6 = vector.load %arg6[%c0_4, %c0_5] : memref<1x32xf32, #tpu.memory_space<vmem>>, vector<1x32xf32>
    %7 = vector.broadcast %6 : vector<1x32xf32> to vector<16x32xf32>
    %8 = arith.addf %5, %7 : vector<16x32xf32>
    %c0_6 = arith.constant 0 : index
    %c0_7 = arith.constant 0 : index
    %9 = vector.load %arg10[%c0_6, %c0_7] : memref<16x32xf32, #tpu.memory_space<vmem>>, vector<16x32xf32>
    tpu.vector_store %arg10[%c0_6, %c0_7], %8 {strides = array<i32>} : memref<16x32xf32, #tpu.memory_space<vmem>>, vector<16x32xf32>,
    %c0_8 = arith.constant 0 : index
    %c0_9 = arith.constant 0 : index
    %10 = vector.load %arg7[%c0_8, %c0_9] : memref<32x32xf32, #tpu.memory_space<vmem>>, vector<32x32xf32>
    %cst_10 = arith.constant dense<0.000000e+00> : vector<16x32xf32>
    %11 = tpu.matmul %3, %10, %cst_10 {dimension_numbers = #tpu.dot_dimension_numbers<[1], [0], [0], [1], [0, 0, 1, 1], [], []>} : vector<16x32xf32>, vector<32x32xf32>, vector<16x32xf32> -> vector<16x32xf32>
    %c0_11 = arith.constant 0 : index
    %c0_12 = arith.constant 0 : index
    %12 = vector.load %arg11[%c0_11, %c0_12] : memref<16x32xf32, #tpu.memory_space<vmem>>, vector<16x32xf32>
    tpu.vector_store %arg11[%c0_11, %c0_12], %11 {strides = array<i32>} : memref<16x32xf32, #tpu.memory_space<vmem>>, vector<16x32xf32>,
    %c0_13 = arith.constant 0 : index
    %c0_14 = arith.constant 0 : index
    %13 = vector.load %arg8[%c0_13, %c0_14] : memref<32x32xf32, #tpu.memory_space<vmem>>, vector<32x32xf32>
    %cst_15 = arith.constant dense<0.000000e+00> : vector<16x32xf32>
    %14 = tpu.matmul %3, %13, %cst_15 {dimension_numbers = #tpu.dot_dimension_numbers<[1], [0], [0], [1], [0, 0, 1, 1], [], []>} : vector<16x32xf32>, vector<32x32xf32>, vector<16x32xf32> -> vector<16x32xf32>
    %c0_16 = arith.constant 0 : index
    %c0_17 = arith.constant 0 : index
    %15 = vector.load %arg9[%c0_16, %c0_17] : memref<1x32xf32, #tpu.memory_space<vmem>>, vector<1x32xf32>
    %16 = vector.broadcast %15 : vector<1x32xf32> to vector<16x32xf32>
    %17 = arith.addf %14, %16 : vector<16x32xf32>
    %c0_18 = arith.constant 0 : index
    %c0_19 = arith.constant 0 : index
    %18 = vector.load %arg12[%c0_18, %c0_19] : memref<16x32xf32, #tpu.memory_space<vmem>>, vector<16x32xf32>
    tpu.vector_store %arg12[%c0_18, %c0_19], %17 {strides = array<i32>} : memref<16x32xf32, #tpu.memory_space<vmem>>, vector<16x32xf32>,
    return
  }
  func.func @transform_0(%arg0: i32, %arg1: i32) -> (i32, i32) {
    %c0_i32 = arith.constant 0 : i32
    %c0_i32_0 = arith.constant 0 : i32
    return %arg0, %c0_i32 : i32, i32
  }
  func.func @transform_1(%arg0: i32, %arg1: i32) -> (i32, i32) {
    %c0_i32 = arith.constant 0 : i32
    %c0_i32_0 = arith.constant 0 : i32
    %c0_i32_1 = arith.constant 0 : i32
    return %c0_i32, %c0_i32_0 : i32, i32
  }
  func.func @transform_2(%arg0: i32, %arg1: i32) -> (i32, i32) {
    %c0_i32 = arith.constant 0 : i32
    %c0_i32_0 = arith.constant 0 : i32
    %c0_i32_1 = arith.constant 0 : i32
    return %c0_i32, %c0_i32_0 : i32, i32
  }
  func.func @transform_3(%arg0: i32, %arg1: i32) -> (i32, i32) {
    %c0_i32 = arith.constant 0 : i32
    %c0_i32_0 = arith.constant 0 : i32
    return %c0_i32, %arg1 : i32, i32
  }
  func.func @transform_4(%arg0: i32, %arg1: i32) -> (i32, i32) {
    %c0_i32 = arith.constant 0 : i32
    %c0_i32_0 = arith.constant 0 : i32
    return %c0_i32, %arg1 : i32, i32
  }
  func.func @transform_5(%arg0: i32, %arg1: i32) -> (i32, i32) {
    %c0_i32 = arith.constant 0 : i32
    %c0_i32_0 = arith.constant 0 : i32
    return %c0_i32, %arg1 : i32, i32
  }
  func.func @transform_6(%arg0: i32, %arg1: i32) -> (i32, i32) {
    %c0_i32 = arith.constant 0 : i32
    %c0_i32_0 = arith.constant 0 : i32
    return %c0_i32, %arg1 : i32, i32
  }
  func.func @transform_7(%arg0: i32, %arg1: i32) -> (i32, i32) {
    %c0_i32 = arith.constant 0 : i32
    %c0_i32_0 = arith.constant 0 : i32
    return %c0_i32, %arg1 : i32, i32
  }
  func.func @transform_8(%arg0: i32, %arg1: i32) -> (i32, i32) {
    %c0_i32 = arith.constant 0 : i32
    return %arg0, %arg1 : i32, i32
  }
  func.func @transform_9(%arg0: i32, %arg1: i32) -> (i32, i32) {
    %c0_i32 = arith.constant 0 : i32
    return %arg0, %arg1 : i32, i32
  }
  func.func @transform_10(%arg0: i32, %arg1: i32) -> (i32, i32) {
    %c0_i32 = arith.constant 0 : i32
    return %arg0, %arg1 : i32, i32
  }
}

module attributes {stable_mosaic.version = 11 : i64} {
  func.func @_matmul_kernel(%arg0: i32, %arg1: i32, %arg2: i32, %arg3: memref<16x32xf32, #tpu.memory_space<vmem>>, %arg4: memref<32x32xf32, #tpu.memory_space<vmem>>, %arg5: memref<1x32xf32, #tpu.memory_space<vmem>>, %arg6: memref<16x32xf32, #tpu.memory_space<vmem>>, %arg7: memref<16x32xf32, #tpu.memory_space<vmem>>, %arg8: memref<16x32xf32, #tpu.memory_space<vmem>>) attributes {dimension_semantics = [#tpu.dimension_semantics<parallel>, #tpu.dimension_semantics<parallel>, #tpu.dimension_semantics<arbitrary>], iteration_bounds = array<i64: 1, 1, 1>, scalar_prefetch = 0 : i64, scratch_operands = 1 : i64, tpu.core_type = #tpu.core_type<tc>, window_params = [{transform_indices = @transform_0, window_bounds = array<i64: 16, 32>}, {transform_indices = @transform_1, window_bounds = array<i64: 32, 32>}, {transform_indices = @transform_2, window_bounds = array<i64: 1, 32>}, {transform_indices = @transform_3, window_bounds = array<i64: 16, 32>}, {transform_indices = @transform_4, window_bounds = array<i64: 16, 32>}]} {
    %c0_i32 = arith.constant 0 : i32
    %0 = arith.cmpi eq, %arg2, %c0_i32 : i32
    %1 = arith.extui %0 : i1 to i32
    %c0_i32_0 = arith.constant 0 : i32
    %2 = arith.cmpi ne, %1, %c0_i32_0 : i32
    scf.if %2 {
      %cst_10 = arith.constant 0.000000e+00 : f32
      %12 = vector.broadcast %cst_10 : f32 to vector<16x32xf32>
      %c0_11 = arith.constant 0 : index
      %c0_12 = arith.constant 0 : index
      %13 = vector.load %arg8[%c0_11, %c0_12] : memref<16x32xf32, #tpu.memory_space<vmem>>, vector<16x32xf32>
      tpu.vector_store %arg8[%c0_11, %c0_12], %12 {strides = array<i32>} : memref<16x32xf32, #tpu.memory_space<vmem>>, vector<16x32xf32>,
    } else {
    }
    %c0 = arith.constant 0 : index
    %c0_1 = arith.constant 0 : index
    %3 = vector.load %arg8[%c0, %c0_1] : memref<16x32xf32, #tpu.memory_space<vmem>>, vector<16x32xf32>
    %c0_2 = arith.constant 0 : index
    %c0_3 = arith.constant 0 : index
    %4 = vector.load %arg3[%c0_2, %c0_3] : memref<16x32xf32, #tpu.memory_space<vmem>>, vector<16x32xf32>
    %c0_4 = arith.constant 0 : index
    %c0_5 = arith.constant 0 : index
    %5 = vector.load %arg4[%c0_4, %c0_5] : memref<32x32xf32, #tpu.memory_space<vmem>>, vector<32x32xf32>
    %cst = arith.constant dense<0.000000e+00> : vector<16x32xf32>
    %6 = tpu.matmul %4, %5, %cst {dimension_numbers = #tpu.dot_dimension_numbers<[1], [0], [0], [1], [0, 0, 1, 1], [], []>} : vector<16x32xf32>, vector<32x32xf32>, vector<16x32xf32> -> vector<16x32xf32>
    %7 = arith.addf %3, %6 : vector<16x32xf32>
    %c0_6 = arith.constant 0 : index
    %c0_7 = arith.constant 0 : index
    %8 = vector.load %arg8[%c0_6, %c0_7] : memref<16x32xf32, #tpu.memory_space<vmem>>, vector<16x32xf32>
    tpu.vector_store %arg8[%c0_6, %c0_7], %7 {strides = array<i32>} : memref<16x32xf32, #tpu.memory_space<vmem>>, vector<16x32xf32>,
    %c0_i32_8 = arith.constant 0 : i32
    %9 = arith.cmpi eq, %arg2, %c0_i32_8 : i32
    %10 = arith.extui %9 : i1 to i32
    %c0_i32_9 = arith.constant 0 : i32
    %11 = arith.cmpi ne, %10, %c0_i32_9 : i32
    scf.if %11 {
      %c0_10 = arith.constant 0 : index
      %c0_11 = arith.constant 0 : index
      %12 = vector.load %arg8[%c0_10, %c0_11] : memref<16x32xf32, #tpu.memory_space<vmem>>, vector<16x32xf32>
      %c0_12 = arith.constant 0 : index
      %c0_13 = arith.constant 0 : index
      %13 = vector.load %arg5[%c0_12, %c0_13] : memref<1x32xf32, #tpu.memory_space<vmem>>, vector<1x32xf32>
      %14 = vector.broadcast %13 : vector<1x32xf32> to vector<16x32xf32>
      %15 = arith.addf %12, %14 : vector<16x32xf32>
      %c0_14 = arith.constant 0 : index
      %c0_15 = arith.constant 0 : index
      %16 = vector.load %arg6[%c0_14, %c0_15] : memref<16x32xf32, #tpu.memory_space<vmem>>, vector<16x32xf32>
      %17 = arith.addf %15, %16 : vector<16x32xf32>
      %c0_16 = arith.constant 0 : index
      %c0_17 = arith.constant 0 : index
      %18 = vector.load %arg7[%c0_16, %c0_17] : memref<16x32xf32, #tpu.memory_space<vmem>>, vector<16x32xf32>
      tpu.vector_store %arg7[%c0_16, %c0_17], %17 {strides = array<i32>} : memref<16x32xf32, #tpu.memory_space<vmem>>, vector<16x32xf32>,
    } else {
    }
    return
  }
  func.func @transform_0(%arg0: i32, %arg1: i32, %arg2: i32) -> (i32, i32) {
    %c0_i32 = arith.constant 0 : i32
    return %arg0, %arg2 : i32, i32
  }
  func.func @transform_1(%arg0: i32, %arg1: i32, %arg2: i32) -> (i32, i32) {
    %c0_i32 = arith.constant 0 : i32
    return %arg2, %arg1 : i32, i32
  }
  func.func @transform_2(%arg0: i32, %arg1: i32, %arg2: i32) -> (i32, i32) {
    %c0_i32 = arith.constant 0 : i32
    %c0_i32_0 = arith.constant 0 : i32
    return %c0_i32, %arg1 : i32, i32
  }
  func.func @transform_3(%arg0: i32, %arg1: i32, %arg2: i32) -> (i32, i32) {
    %c0_i32 = arith.constant 0 : i32
    return %arg0, %arg1 : i32, i32
  }
  func.func @transform_4(%arg0: i32, %arg1: i32, %arg2: i32) -> (i32, i32) {
    %c0_i32 = arith.constant 0 : i32
    return %arg0, %arg1 : i32, i32
  }
}

module attributes {stable_mosaic.version = 11 : i64} {
  func.func @_attn_kernel(%arg0: i32, %arg1: i32, %arg2: i32, %arg3: i32, %arg4: memref<1x8x32xf32, #tpu.memory_space<vmem>>, %arg5: memref<1x8x32xf32, #tpu.memory_space<vmem>>, %arg6: memref<1x8x32xf32, #tpu.memory_space<vmem>>, %arg7: memref<1x8x32xf32, #tpu.memory_space<vmem>>, %arg8: memref<8x4xf32, #tpu.memory_space<vmem>>, %arg9: memref<8x4xf32, #tpu.memory_space<vmem>>, %arg10: memref<8x32xf32, #tpu.memory_space<vmem>>) attributes {dimension_semantics = [#tpu.dimension_semantics<parallel>, #tpu.dimension_semantics<parallel>, #tpu.dimension_semantics<parallel>, #tpu.dimension_semantics<arbitrary>], iteration_bounds = array<i64: 2, 1, 1, 1>, scalar_prefetch = 0 : i64, scratch_operands = 3 : i64, tpu.core_type = #tpu.core_type<tc>, window_params = [{transform_indices = @transform_0, window_bounds = array<i64: 1, 8, 32>}, {transform_indices = @transform_1, window_bounds = array<i64: 1, 8, 32>}, {transform_indices = @transform_2, window_bounds = array<i64: 1, 8, 32>}, {transform_indices = @transform_3, window_bounds = array<i64: 1, 8, 32>}]} {
    %c0_i32 = arith.constant 0 : i32
    %0 = arith.cmpi eq, %arg3, %c0_i32 : i32
    %1 = arith.extui %0 : i1 to i32
    %c0_i32_0 = arith.constant 0 : i32
    %2 = arith.cmpi ne, %1, %c0_i32_0 : i32
    scf.if %2 {
      %cst = arith.constant -1.000000e+30 : f32
      %13 = vector.broadcast %cst : f32 to vector<8x4xf32>
      %c0 = arith.constant 0 : index
      %c0_6 = arith.constant 0 : index
      %14 = vector.load %arg8[%c0, %c0_6] : memref<8x4xf32, #tpu.memory_space<vmem>>, vector<8x4xf32>
      tpu.vector_store %arg8[%c0, %c0_6], %13 {strides = array<i32>} : memref<8x4xf32, #tpu.memory_space<vmem>>, vector<8x4xf32>,
      %cst_7 = arith.constant 0.000000e+00 : f32
      %15 = vector.broadcast %cst_7 : f32 to vector<8x4xf32>
      %c0_8 = arith.constant 0 : index
      %c0_9 = arith.constant 0 : index
      %16 = vector.load %arg9[%c0_8, %c0_9] : memref<8x4xf32, #tpu.memory_space<vmem>>, vector<8x4xf32>
      tpu.vector_store %arg9[%c0_8, %c0_9], %15 {strides = array<i32>} : memref<8x4xf32, #tpu.memory_space<vmem>>, vector<8x4xf32>,
      %cst_10 = arith.constant 0.000000e+00 : f32
      %17 = vector.broadcast %cst_10 : f32 to vector<8x32xf32>
      %c0_11 = arith.constant 0 : index
      %c0_12 = arith.constant 0 : index
      %18 = vector.load %arg10[%c0_11, %c0_12] : memref<8x32xf32, #tpu.memory_space<vmem>>, vector<8x32xf32>
      tpu.vector_store %arg10[%c0_11, %c0_12], %17 {strides = array<i32>} : memref<8x32xf32, #tpu.memory_space<vmem>>, vector<8x32xf32>,
    } else {
    }
    %c1_i32 = arith.constant 1 : i32
    %3 = arith.addi %arg2, %c1_i32 : i32
    %c8_i32 = arith.constant 8 : i32
    %4 = arith.muli %3, %c8_i32 : i32
    %c1_i32_1 = arith.constant 1 : i32
    %5 = arith.subi %4, %c1_i32_1 : i32
    %c8_i32_2 = arith.constant 8 : i32
    %6 = arith.muli %arg3, %c8_i32_2 : i32
    %7 = arith.cmpi sle, %6, %5 : i32
    %8 = arith.extui %7 : i1 to i32
    %c0_i32_3 = arith.constant 0 : i32
    %9 = arith.cmpi ne, %8, %c0_i32_3 : i32
    scf.if %9 {
      %c0 = arith.constant 0 : index
      %c0_6 = arith.constant 0 : index
      %c0_7 = arith.constant 0 : index
      %13 = vector.load %arg4[%c0, %c0_6, %c0_7] : memref<1x8x32xf32, #tpu.memory_space<vmem>>, vector<1x8x32xf32>
      %14 = vector.shape_cast %13 : vector<1x8x32xf32> to vector<8x32xf32>
      %c0_8 = arith.constant 0 : index
      %c0_9 = arith.constant 0 : index
      %c0_10 = arith.constant 0 : index
      %15 = vector.load %arg5[%c0_8, %c0_9, %c0_10] : memref<1x8x32xf32, #tpu.memory_space<vmem>>, vector<1x8x32xf32>
      %16 = vector.shape_cast %15 : vector<1x8x32xf32> to vector<8x32xf32>
      %c0_11 = arith.constant 0 : index
      %c0_12 = arith.constant 0 : index
      %c0_13 = arith.constant 0 : index
      %17 = vector.load %arg6[%c0_11, %c0_12, %c0_13] : memref<1x8x32xf32, #tpu.memory_space<vmem>>, vector<1x8x32xf32>
      %18 = vector.shape_cast %17 : vector<1x8x32xf32> to vector<8x32xf32>
      %c8_i32_14 = arith.constant 8 : i32
      %19 = arith.muli %arg3, %c8_i32_14 : i32
      %20 = tpu.iota {dimensions = array<i32: 1>} : vector<8x8xi32>
      %21 = vector.broadcast %19 : i32 to vector<8x8xi32>
      %22 = arith.addi %21, %20 : vector<8x8xi32>
      %c8_i32_15 = arith.constant 8 : i32
      %23 = vector.broadcast %c8_i32_15 : i32 to vector<8x8xi32>
      %24 = arith.cmpi sge, %22, %23 : vector<8x8xi32>
      %c8_i32_16 = arith.constant 8 : i32
      %25 = arith.muli %arg2, %c8_i32_16 : i32
      %26 = tpu.iota {dimensions = array<i32: 0>} : vector<8x8xi32>
      %27 = vector.broadcast %25 : i32 to vector<8x8xi32>
      %28 = arith.addi %27, %26 : vector<8x8xi32>
      %29 = arith.cmpi sgt, %22, %28 : vector<8x8xi32>
      %30 = arith.ori %24, %29 : vector<8x8xi1>
      %31 = vector.extract_strided_slice %14 {offsets = [0, 0], sizes = [8, 8], strides = [1, 1]} : vector<8x32xf32> to vector<8x8xf32>
      %cst = arith.constant 0.353553385 : f32
      %32 = vector.broadcast %cst : f32 to vector<8x8xf32>
      %33 = arith.mulf %31, %32 : vector<8x8xf32>
      %34 = vector.extract_strided_slice %16 {offsets = [0, 0], sizes = [8, 8], strides = [1, 1]} : vector<8x32xf32> to vector<8x8xf32>
      %cst_17 = arith.constant dense<0.000000e+00> : vector<8x8xf32>
      %35 = tpu.matmul %33, %34, %cst_17 {dimension_numbers = #tpu.dot_dimension_numbers<[1], [1], [0], [0], [0, 0, 1, 0], [], []>} : vector<8x8xf32>, vector<8x8xf32>, vector<8x8xf32> -> vector<8x8xf32>
      %cst_18 = arith.constant -1.000000e+30 : f32
      %36 = vector.broadcast %cst_18 : f32 to vector<8x8xf32>
      %37 = arith.select %30, %36, %35 : vector<8x8xi1>, vector<8x8xf32>
      %c0_19 = arith.constant 0 : index
      %c0_20 = arith.constant 0 : index
      %38 = vector.load %arg8[%c0_19, %c0_20] : memref<8x4xf32, #tpu.memory_space<vmem>>, vector<8x1xf32>
      %cst_21 = arith.constant dense<0xFF800000> : vector<8xf32>
      %39 = vector.multi_reduction <maximumf>, %37, %cst_21 [1] : vector<8x8xf32> to vector<8xf32>
      %40 = vector.shape_cast %39 : vector<8xf32> to vector<8x1xf32>
      %41 = arith.maximumf %38, %40 : vector<8x1xf32>
      %42 = arith.subf %38, %41 : vector<8x1xf32>
      %43 = math.exp %42 : vector<8x1xf32>
      %44 = vector.broadcast %41 : vector<8x1xf32> to vector<8x8xf32>
      %45 = arith.subf %37, %44 : vector<8x8xf32>
      %46 = math.exp %45 : vector<8x8xf32>
      %c0_22 = arith.constant 0 : index
      %c0_23 = arith.constant 0 : index
      %47 = vector.load %arg9[%c0_22, %c0_23] : memref<8x4xf32, #tpu.memory_space<vmem>>, vector<8x1xf32>
      %48 = arith.mulf %43, %47 : vector<8x1xf32>
      %cst_24 = arith.constant dense<0.000000e+00> : vector<8xf32>
      %49 = vector.multi_reduction <add>, %46, %cst_24 [1] : vector<8x8xf32> to vector<8xf32>
      %50 = vector.shape_cast %49 : vector<8xf32> to vector<8x1xf32>
      %51 = arith.addf %48, %50 : vector<8x1xf32>
      %c0_25 = arith.constant 0 : index
      %c0_26 = arith.constant 0 : index
      %52 = vector.load %arg9[%c0_25, %c0_26] : memref<8x4xf32, #tpu.memory_space<vmem>>, vector<8x1xf32>
      tpu.vector_store %arg9[%c0_25, %c0_26], %51 {strides = array<i32>} : memref<8x4xf32, #tpu.memory_space<vmem>>, vector<8x1xf32>,
      %53 = vector.extract_strided_slice %18 {offsets = [0, 0], sizes = [8, 8], strides = [1, 1]} : vector<8x32xf32> to vector<8x8xf32>
      %cst_27 = arith.constant dense<0.000000e+00> : vector<8x8xf32>
      %54 = tpu.matmul %46, %53, %cst_27 {dimension_numbers = #tpu.dot_dimension_numbers<[1], [0], [0], [1], [0, 0, 1, 1], [], []>} : vector<8x8xf32>, vector<8x8xf32>, vector<8x8xf32> -> vector<8x8xf32>
      %c0_28 = arith.constant 0 : index
      %c0_29 = arith.constant 0 : index
      %55 = vector.load %arg10[%c0_28, %c0_29] : memref<8x32xf32, #tpu.memory_space<vmem>>, vector<8x8xf32>
      %56 = vector.broadcast %43 : vector<8x1xf32> to vector<8x8xf32>
      %57 = arith.mulf %56, %55 : vector<8x8xf32>
      %58 = arith.addf %57, %54 : vector<8x8xf32>
      %c0_30 = arith.constant 0 : index
      %c0_31 = arith.constant 0 : index
      %59 = vector.load %arg10[%c0_30, %c0_31] : memref<8x32xf32, #tpu.memory_space<vmem>>, vector<8x8xf32>
      tpu.vector_store %arg10[%c0_30, %c0_31], %58 {strides = array<i32>} : memref<8x32xf32, #tpu.memory_space<vmem>>, vector<8x8xf32>,
      %c0_32 = arith.constant 0 : index
      %c0_33 = arith.constant 0 : index
      %60 = vector.load %arg8[%c0_32, %c0_33] : memref<8x4xf32, #tpu.memory_space<vmem>>, vector<8x1xf32>
      tpu.vector_store %arg8[%c0_32, %c0_33], %41 {strides = array<i32>} : memref<8x4xf32, #tpu.memory_space<vmem>>, vector<8x1xf32>,
      %61 = vector.extract_strided_slice %14 {offsets = [0, 8], sizes = [8, 8], strides = [1, 1]} : vector<8x32xf32> to vector<8x8xf32>
      %cst_34 = arith.constant 0.353553385 : f32
      %62 = vector.broadcast %cst_34 : f32 to vector<8x8xf32>
      %63 = arith.mulf %61, %62 : vector<8x8xf32>
      %64 = vector.extract_strided_slice %16 {offsets = [0, 8], sizes = [8, 8], strides = [1, 1]} : vector<8x32xf32> to vector<8x8xf32>
      %cst_35 = arith.constant dense<0.000000e+00> : vector<8x8xf32>
      %65 = tpu.matmul %63, %64, %cst_35 {dimension_numbers = #tpu.dot_dimension_numbers<[1], [1], [0], [0], [0, 0, 1, 0], [], []>} : vector<8x8xf32>, vector<8x8xf32>, vector<8x8xf32> -> vector<8x8xf32>
      %cst_36 = arith.constant -1.000000e+30 : f32
      %66 = vector.broadcast %cst_36 : f32 to vector<8x8xf32>
      %67 = arith.select %30, %66, %65 : vector<8x8xi1>, vector<8x8xf32>
      %c0_37 = arith.constant 0 : index
      %c1 = arith.constant 1 : index
      %68 = vector.load %arg8[%c0_37, %c1] : memref<8x4xf32, #tpu.memory_space<vmem>>, vector<8x1xf32>
      %cst_38 = arith.constant dense<0xFF800000> : vector<8xf32>
      %69 = vector.multi_reduction <maximumf>, %67, %cst_38 [1] : vector<8x8xf32> to vector<8xf32>
      %70 = vector.shape_cast %69 : vector<8xf32> to vector<8x1xf32>
      %71 = arith.maximumf %68, %70 : vector<8x1xf32>
      %72 = arith.subf %68, %71 : vector<8x1xf32>
      %73 = math.exp %72 : vector<8x1xf32>
      %74 = vector.broadcast %71 : vector<8x1xf32> to vector<8x8xf32>
      %75 = arith.subf %67, %74 : vector<8x8xf32>
      %76 = math.exp %75 : vector<8x8xf32>
      %c0_39 = arith.constant 0 : index
      %c1_40 = arith.constant 1 : index
      %77 = vector.load %arg9[%c0_39, %c1_40] : memref<8x4xf32, #tpu.memory_space<vmem>>, vector<8x1xf32>
      %78 = arith.mulf %73, %77 : vector<8x1xf32>
      %cst_41 = arith.constant dense<0.000000e+00> : vector<8xf32>
      %79 = vector.multi_reduction <add>, %76, %cst_41 [1] : vector<8x8xf32> to vector<8xf32>
      %80 = vector.shape_cast %79 : vector<8xf32> to vector<8x1xf32>
      %81 = arith.addf %78, %80 : vector<8x1xf32>
      %c0_42 = arith.constant 0 : index
      %c1_43 = arith.constant 1 : index
      %82 = vector.load %arg9[%c0_42, %c1_43] : memref<8x4xf32, #tpu.memory_space<vmem>>, vector<8x1xf32>
      tpu.vector_store %arg9[%c0_42, %c1_43], %81 {strides = array<i32>} : memref<8x4xf32, #tpu.memory_space<vmem>>, vector<8x1xf32>,
      %83 = vector.extract_strided_slice %18 {offsets = [0, 8], sizes = [8, 8], strides = [1, 1]} : vector<8x32xf32> to vector<8x8xf32>
      %cst_44 = arith.constant dense<0.000000e+00> : vector<8x8xf32>
      %84 = tpu.matmul %76, %83, %cst_44 {dimension_numbers = #tpu.dot_dimension_numbers<[1], [0], [0], [1], [0, 0, 1, 1], [], []>} : vector<8x8xf32>, vector<8x8xf32>, vector<8x8xf32> -> vector<8x8xf32>
      %c0_45 = arith.constant 0 : index
      %c8 = arith.constant 8 : index
      %85 = vector.load %arg10[%c0_45, %c8] : memref<8x32xf32, #tpu.memory_space<vmem>>, vector<8x8xf32>
      %86 = vector.broadcast %73 : vector<8x1xf32> to vector<8x8xf32>
      %87 = arith.mulf %86, %85 : vector<8x8xf32>
      %88 = arith.addf %87, %84 : vector<8x8xf32>
      %c0_46 = arith.constant 0 : index
      %c8_47 = arith.constant 8 : index
      %89 = vector.load %arg10[%c0_46, %c8_47] : memref<8x32xf32, #tpu.memory_space<vmem>>, vector<8x8xf32>
      tpu.vector_store %arg10[%c0_46, %c8_47], %88 {strides = array<i32>} : memref<8x32xf32, #tpu.memory_space<vmem>>, vector<8x8xf32>,
      %c0_48 = arith.constant 0 : index
      %c1_49 = arith.constant 1 : index
      %90 = vector.load %arg8[%c0_48, %c1_49] : memref<8x4xf32, #tpu.memory_space<vmem>>, vector<8x1xf32>
      tpu.vector_store %arg8[%c0_48, %c1_49], %71 {strides = array<i32>} : memref<8x4xf32, #tpu.memory_space<vmem>>, vector<8x1xf32>,
      %91 = vector.extract_strided_slice %14 {offsets = [0, 16], sizes = [8, 8], strides = [1, 1]} : vector<8x32xf32> to vector<8x8xf32>
      %cst_50 = arith.constant 0.353553385 : f32
      %92 = vector.broadcast %cst_50 : f32 to vector<8x8xf32>
      %93 = arith.mulf %91, %92 : vector<8x8xf32>
      %94 = vector.extract_strided_slice %16 {offsets = [0, 16], sizes = [8, 8], strides = [1, 1]} : vector<8x32xf32> to vector<8x8xf32>
      %cst_51 = arith.constant dense<0.000000e+00> : vector<8x8xf32>
      %95 = tpu.matmul %93, %94, %cst_51 {dimension_numbers = #tpu.dot_dimension_numbers<[1], [1], [0], [0], [0, 0, 1, 0], [], []>} : vector<8x8xf32>, vector<8x8xf32>, vector<8x8xf32> -> vector<8x8xf32>
      %cst_52 = arith.constant -1.000000e+30 : f32
      %96 = vector.broadcast %cst_52 : f32 to vector<8x8xf32>
      %97 = arith.select %30, %96, %95 : vector<8x8xi1>, vector<8x8xf32>
      %c0_53 = arith.constant 0 : index
      %c2 = arith.constant 2 : index
      %98 = vector.load %arg8[%c0_53, %c2] : memref<8x4xf32, #tpu.memory_space<vmem>>, vector<8x1xf32>
      %cst_54 = arith.constant dense<0xFF800000> : vector<8xf32>
      %99 = vector.multi_reduction <maximumf>, %97, %cst_54 [1] : vector<8x8xf32> to vector<8xf32>
      %100 = vector.shape_cast %99 : vector<8xf32> to vector<8x1xf32>
      %101 = arith.maximumf %98, %100 : vector<8x1xf32>
      %102 = arith.subf %98, %101 : vector<8x1xf32>
      %103 = math.exp %102 : vector<8x1xf32>
      %104 = vector.broadcast %101 : vector<8x1xf32> to vector<8x8xf32>
      %105 = arith.subf %97, %104 : vector<8x8xf32>
      %106 = math.exp %105 : vector<8x8xf32>
      %c0_55 = arith.constant 0 : index
      %c2_56 = arith.constant 2 : index
      %107 = vector.load %arg9[%c0_55, %c2_56] : memref<8x4xf32, #tpu.memory_space<vmem>>, vector<8x1xf32>
      %108 = arith.mulf %103, %107 : vector<8x1xf32>
      %cst_57 = arith.constant dense<0.000000e+00> : vector<8xf32>
      %109 = vector.multi_reduction <add>, %106, %cst_57 [1] : vector<8x8xf32> to vector<8xf32>
      %110 = vector.shape_cast %109 : vector<8xf32> to vector<8x1xf32>
      %111 = arith.addf %108, %110 : vector<8x1xf32>
      %c0_58 = arith.constant 0 : index
      %c2_59 = arith.constant 2 : index
      %112 = vector.load %arg9[%c0_58, %c2_59] : memref<8x4xf32, #tpu.memory_space<vmem>>, vector<8x1xf32>
      tpu.vector_store %arg9[%c0_58, %c2_59], %111 {strides = array<i32>} : memref<8x4xf32, #tpu.memory_space<vmem>>, vector<8x1xf32>,
      %113 = vector.extract_strided_slice %18 {offsets = [0, 16], sizes = [8, 8], strides = [1, 1]} : vector<8x32xf32> to vector<8x8xf32>
      %cst_60 = arith.constant dense<0.000000e+00> : vector<8x8xf32>
      %114 = tpu.matmul %106, %113, %cst_60 {dimension_numbers = #tpu.dot_dimension_numbers<[1], [0], [0], [1], [0, 0, 1, 1], [], []>} : vector<8x8xf32>, vector<8x8xf32>, vector<8x8xf32> -> vector<8x8xf32>
      %c0_61 = arith.constant 0 : index
      %c16 = arith.constant 16 : index
      %115 = vector.load %arg10[%c0_61, %c16] : memref<8x32xf32, #tpu.memory_space<vmem>>, vector<8x8xf32>
      %116 = vector.broadcast %103 : vector<8x1xf32> to vector<8x8xf32>
      %117 = arith.mulf %116, %115 : vector<8x8xf32>
      %118 = arith.addf %117, %114 : vector<8x8xf32>
      %c0_62 = arith.constant 0 : index
      %c16_63 = arith.constant 16 : index
      %119 = vector.load %arg10[%c0_62, %c16_63] : memref<8x32xf32, #tpu.memory_space<vmem>>, vector<8x8xf32>
      tpu.vector_store %arg10[%c0_62, %c16_63], %118 {strides = array<i32>} : memref<8x32xf32, #tpu.memory_space<vmem>>, vector<8x8xf32>,
      %c0_64 = arith.constant 0 : index
      %c2_65 = arith.constant 2 : index
      %120 = vector.load %arg8[%c0_64, %c2_65] : memref<8x4xf32, #tpu.memory_space<vmem>>, vector<8x1xf32>
      tpu.vector_store %arg8[%c0_64, %c2_65], %101 {strides = array<i32>} : memref<8x4xf32, #tpu.memory_space<vmem>>, vector<8x1xf32>,
      %121 = vector.extract_strided_slice %14 {offsets = [0, 24], sizes = [8, 8], strides = [1, 1]} : vector<8x32xf32> to vector<8x8xf32>
      %cst_66 = arith.constant 0.353553385 : f32
      %122 = vector.broadcast %cst_66 : f32 to vector<8x8xf32>
      %123 = arith.mulf %121, %122 : vector<8x8xf32>
      %124 = vector.extract_strided_slice %16 {offsets = [0, 24], sizes = [8, 8], strides = [1, 1]} : vector<8x32xf32> to vector<8x8xf32>
      %cst_67 = arith.constant dense<0.000000e+00> : vector<8x8xf32>
      %125 = tpu.matmul %123, %124, %cst_67 {dimension_numbers = #tpu.dot_dimension_numbers<[1], [1], [0], [0], [0, 0, 1, 0], [], []>} : vector<8x8xf32>, vector<8x8xf32>, vector<8x8xf32> -> vector<8x8xf32>
      %cst_68 = arith.constant -1.000000e+30 : f32
      %126 = vector.broadcast %cst_68 : f32 to vector<8x8xf32>
      %127 = arith.select %30, %126, %125 : vector<8x8xi1>, vector<8x8xf32>
      %c0_69 = arith.constant 0 : index
      %c3 = arith.constant 3 : index
      %128 = vector.load %arg8[%c0_69, %c3] : memref<8x4xf32, #tpu.memory_space<vmem>>, vector<8x1xf32>
      %cst_70 = arith.constant dense<0xFF800000> : vector<8xf32>
      %129 = vector.multi_reduction <maximumf>, %127, %cst_70 [1] : vector<8x8xf32> to vector<8xf32>
      %130 = vector.shape_cast %129 : vector<8xf32> to vector<8x1xf32>
      %131 = arith.maximumf %128, %130 : vector<8x1xf32>
      %132 = arith.subf %128, %131 : vector<8x1xf32>
      %133 = math.exp %132 : vector<8x1xf32>
      %134 = vector.broadcast %131 : vector<8x1xf32> to vector<8x8xf32>
      %135 = arith.subf %127, %134 : vector<8x8xf32>
      %136 = math.exp %135 : vector<8x8xf32>
      %c0_71 = arith.constant 0 : index
      %c3_72 = arith.constant 3 : index
      %137 = vector.load %arg9[%c0_71, %c3_72] : memref<8x4xf32, #tpu.memory_space<vmem>>, vector<8x1xf32>
      %138 = arith.mulf %133, %137 : vector<8x1xf32>
      %cst_73 = arith.constant dense<0.000000e+00> : vector<8xf32>
      %139 = vector.multi_reduction <add>, %136, %cst_73 [1] : vector<8x8xf32> to vector<8xf32>
      %140 = vector.shape_cast %139 : vector<8xf32> to vector<8x1xf32>
      %141 = arith.addf %138, %140 : vector<8x1xf32>
      %c0_74 = arith.constant 0 : index
      %c3_75 = arith.constant 3 : index
      %142 = vector.load %arg9[%c0_74, %c3_75] : memref<8x4xf32, #tpu.memory_space<vmem>>, vector<8x1xf32>
      tpu.vector_store %arg9[%c0_74, %c3_75], %141 {strides = array<i32>} : memref<8x4xf32, #tpu.memory_space<vmem>>, vector<8x1xf32>,
      %143 = vector.extract_strided_slice %18 {offsets = [0, 24], sizes = [8, 8], strides = [1, 1]} : vector<8x32xf32> to vector<8x8xf32>
      %cst_76 = arith.constant dense<0.000000e+00> : vector<8x8xf32>
      %144 = tpu.matmul %136, %143, %cst_76 {dimension_numbers = #tpu.dot_dimension_numbers<[1], [0], [0], [1], [0, 0, 1, 1], [], []>} : vector<8x8xf32>, vector<8x8xf32>, vector<8x8xf32> -> vector<8x8xf32>
      %c0_77 = arith.constant 0 : index
      %c24 = arith.constant 24 : index
      %145 = vector.load %arg10[%c0_77, %c24] : memref<8x32xf32, #tpu.memory_space<vmem>>, vector<8x8xf32>
      %146 = vector.broadcast %133 : vector<8x1xf32> to vector<8x8xf32>
      %147 = arith.mulf %146, %145 : vector<8x8xf32>
      %148 = arith.addf %147, %144 : vector<8x8xf32>
      %c0_78 = arith.constant 0 : index
      %c24_79 = arith.constant 24 : index
      %149 = vector.load %arg10[%c0_78, %c24_79] : memref<8x32xf32, #tpu.memory_space<vmem>>, vector<8x8xf32>
      tpu.vector_store %arg10[%c0_78, %c24_79], %148 {strides = array<i32>} : memref<8x32xf32, #tpu.memory_space<vmem>>, vector<8x8xf32>,
      %c0_80 = arith.constant 0 : index
      %c3_81 = arith.constant 3 : index
      %150 = vector.load %arg8[%c0_80, %c3_81] : memref<8x4xf32, #tpu.memory_space<vmem>>, vector<8x1xf32>
      tpu.vector_store %arg8[%c0_80, %c3_81], %131 {strides = array<i32>} : memref<8x4xf32, #tpu.memory_space<vmem>>, vector<8x1xf32>,
    } else {
    }
    %c0_i32_4 = arith.constant 0 : i32
    %10 = arith.cmpi eq, %arg3, %c0_i32_4 : i32
    %11 = arith.extui %10 : i1 to i32
    %c0_i32_5 = arith.constant 0 : i32
    %12 = arith.cmpi ne, %11, %c0_i32_5 : i32
    scf.if %12 {
      %c0 = arith.constant 0 : index
      %c0_6 = arith.constant 0 : index
      %13 = vector.load %arg9[%c0, %c0_6] : memref<8x4xf32, #tpu.memory_space<vmem>>, vector<8x4xf32>
      %14 = tpu.reciprocal %13 {approx = true} : vector<8x4xf32> -> vector<8x4xf32>
      %c0_7 = arith.constant 0 : index
      %c0_8 = arith.constant 0 : index
      %15 = vector.load %arg10[%c0_7, %c0_8] : memref<8x32xf32, #tpu.memory_space<vmem>>, vector<8x8xf32>
      %16 = vector.extract_strided_slice %14 {offsets = [0, 0], sizes = [8, 1], strides = [1, 1]} : vector<8x4xf32> to vector<8x1xf32>
      %17 = vector.broadcast %16 : vector<8x1xf32> to vector<8x8xf32>
      %18 = arith.mulf %15, %17 : vector<8x8xf32>
      %c0_9 = arith.constant 0 : index
      %c0_10 = arith.constant 0 : index
      %19 = vector.load %arg10[%c0_9, %c0_10] : memref<8x32xf32, #tpu.memory_space<vmem>>, vector<8x8xf32>
      tpu.vector_store %arg10[%c0_9, %c0_10], %18 {strides = array<i32>} : memref<8x32xf32, #tpu.memory_space<vmem>>, vector<8x8xf32>,
      %c0_11 = arith.constant 0 : index
      %c8 = arith.constant 8 : index
      %20 = vector.load %arg10[%c0_11, %c8] : memref<8x32xf32, #tpu.memory_space<vmem>>, vector<8x8xf32>
      %21 = vector.extract_strided_slice %14 {offsets = [0, 1], sizes = [8, 1], strides = [1, 1]} : vector<8x4xf32> to vector<8x1xf32>
      %22 = vector.broadcast %21 : vector<8x1xf32> to vector<8x8xf32>
      %23 = arith.mulf %20, %22 : vector<8x8xf32>
      %c0_12 = arith.constant 0 : index
      %c8_13 = arith.constant 8 : index
      %24 = vector.load %arg10[%c0_12, %c8_13] : memref<8x32xf32, #tpu.memory_space<vmem>>, vector<8x8xf32>
      tpu.vector_store %arg10[%c0_12, %c8_13], %23 {strides = array<i32>} : memref<8x32xf32, #tpu.memory_space<vmem>>, vector<8x8xf32>,
      %c0_14 = arith.constant 0 : index
      %c16 = arith.constant 16 : index
      %25 = vector.load %arg10[%c0_14, %c16] : memref<8x32xf32, #tpu.memory_space<vmem>>, vector<8x8xf32>
      %26 = vector.extract_strided_slice %14 {offsets = [0, 2], sizes = [8, 1], strides = [1, 1]} : vector<8x4xf32> to vector<8x1xf32>
      %27 = vector.broadcast %26 : vector<8x1xf32> to vector<8x8xf32>
      %28 = arith.mulf %25, %27 : vector<8x8xf32>
      %c0_15 = arith.constant 0 : index
      %c16_16 = arith.constant 16 : index
      %29 = vector.load %arg10[%c0_15, %c16_16] : memref<8x32xf32, #tpu.memory_space<vmem>>, vector<8x8xf32>
      tpu.vector_store %arg10[%c0_15, %c16_16], %28 {strides = array<i32>} : memref<8x32xf32, #tpu.memory_space<vmem>>, vector<8x8xf32>,
      %c0_17 = arith.constant 0 : index
      %c24 = arith.constant 24 : index
      %30 = vector.load %arg10[%c0_17, %c24] : memref<8x32xf32, #tpu.memory_space<vmem>>, vector<8x8xf32>
      %31 = vector.extract_strided_slice %14 {offsets = [0, 3], sizes = [8, 1], strides = [1, 1]} : vector<8x4xf32> to vector<8x1xf32>
      %32 = vector.broadcast %31 : vector<8x1xf32> to vector<8x8xf32>
      %33 = arith.mulf %30, %32 : vector<8x8xf32>
      %c0_18 = arith.constant 0 : index
      %c24_19 = arith.constant 24 : index
      %34 = vector.load %arg10[%c0_18, %c24_19] : memref<8x32xf32, #tpu.memory_space<vmem>>, vector<8x8xf32>
      tpu.vector_store %arg10[%c0_18, %c24_19], %33 {strides = array<i32>} : memref<8x32xf32, #tpu.memory_space<vmem>>, vector<8x8xf32>,
      %c0_20 = arith.constant 0 : index
      %c0_21 = arith.constant 0 : index
      %35 = vector.load %arg10[%c0_20, %c0_21] : memref<8x32xf32, #tpu.memory_space<vmem>>, vector<8x32xf32>
      %c0_22 = arith.constant 0 : index
      %c0_23 = arith.constant 0 : index
      %c0_24 = arith.constant 0 : index
      %36 = vector.load %arg7[%c0_22, %c0_23, %c0_24] : memref<1x8x32xf32, #tpu.memory_space<vmem>>, vector<1x8x32xf32>
      %37 = vector.shape_cast %36 : vector<1x8x32xf32> to vector<8x32xf32>
      %38 = vector.shape_cast %35 : vector<8x32xf32> to vector<1x8x32xf32>
      tpu.vector_store %arg7[%c0_22, %c0_23, %c0_24], %38 {strides = array<i32>} : memref<1x8x32xf32, #tpu.memory_space<vmem>>, vector<1x8x32xf32>,
    } else {
    }
    return
  }
  func.func @transform_0(%arg0: i32, %arg1: i32, %arg2: i32, %arg3: i32) -> (i32, i32, i32) {
    %c0_i32 = arith.constant 0 : i32
    return %arg0, %arg2, %arg1 : i32, i32, i32
  }
  func.func @transform_1(%arg0: i32, %arg1: i32, %arg2: i32, %arg3: i32) -> (i32, i32, i32) {
    %c0_i32 = arith.constant 0 : i32
    return %arg0, %arg3, %arg1 : i32, i32, i32
  }
  func.func @transform_2(%arg0: i32, %arg1: i32, %arg2: i32, %arg3: i32) -> (i32, i32, i32) {
    %c0_i32 = arith.constant 0 : i32
    return %arg0, %arg3, %arg1 : i32, i32, i32
  }
  func.func @transform_3(%arg0: i32, %arg1: i32, %arg2: i32, %arg3: i32) -> (i32, i32, i32) {
    %c0_i32 = arith.constant 0 : i32
    return %arg0, %arg2, %arg1 : i32, i32, i32
  }
}

module attributes {stable_mosaic.version = 11 : i64} {
  func.func @_fused_proj_kernel(%arg0: i32, %arg1: i32, %arg2: memref<32x32xf32, #tpu.memory_space<vmem>>, %arg3: memref<32x32xf32, #tpu.memory_space<vmem>>, %arg4: memref<32x32xf32, #tpu.memory_space<vmem>>, %arg5: memref<1x32xf32, #tpu.memory_space<vmem>>, %arg6: memref<32x32xf32, #tpu.memory_space<vmem>>, %arg7: memref<32x32xf32, #tpu.memory_space<vmem>>) attributes {dimension_semantics = [#tpu.dimension_semantics<parallel>, #tpu.dimension_semantics<parallel>], iteration_bounds = array<i64: 1, 1>, scalar_prefetch = 0 : i64, scratch_operands = 0 : i64, tpu.core_type = #tpu.core_type<tc>, window_params = [{transform_indices = @transform_0, window_bounds = array<i64: 32, 32>}, {transform_indices = @transform_1, window_bounds = array<i64: 32, 32>}, {transform_indices = @transform_2, window_bounds = array<i64: 32, 32>}, {transform_indices = @transform_3, window_bounds = array<i64: 1, 32>}, {transform_indices = @transform_4, window_bounds = array<i64: 32, 32>}, {transform_indices = @transform_5, window_bounds = array<i64: 32, 32>}]} {
    %c0 = arith.constant 0 : index
    %c0_0 = arith.constant 0 : index
    %0 = vector.load %arg2[%c0, %c0_0] : memref<32x32xf32, #tpu.memory_space<vmem>>, vector<32x32xf32>
    %c0_1 = arith.constant 0 : index
    %c0_2 = arith.constant 0 : index
    %1 = vector.load %arg3[%c0_1, %c0_2] : memref<32x32xf32, #tpu.memory_space<vmem>>, vector<32x32xf32>
    %cst = arith.constant dense<0.000000e+00> : vector<32x32xf32>
    %2 = tpu.matmul %0, %1, %cst {dimension_numbers = #tpu.dot_dimension_numbers<[1], [0], [0], [1], [0, 0, 1, 1], [], []>} : vector<32x32xf32>, vector<32x32xf32>, vector<32x32xf32> -> vector<32x32xf32>
    %c0_3 = arith.constant 0 : index
    %c0_4 = arith.constant 0 : index
    %3 = vector.load %arg6[%c0_3, %c0_4] : memref<32x32xf32, #tpu.memory_space<vmem>>, vector<32x32xf32>
    tpu.vector_store %arg6[%c0_3, %c0_4], %2 {strides = array<i32>} : memref<32x32xf32, #tpu.memory_space<vmem>>, vector<32x32xf32>,
    %c0_5 = arith.constant 0 : index
    %c0_6 = arith.constant 0 : index
    %4 = vector.load %arg4[%c0_5, %c0_6] : memref<32x32xf32, #tpu.memory_space<vmem>>, vector<32x32xf32>
    %cst_7 = arith.constant dense<0.000000e+00> : vector<32x32xf32>
    %5 = tpu.matmul %0, %4, %cst_7 {dimension_numbers = #tpu.dot_dimension_numbers<[1], [0], [0], [1], [0, 0, 1, 1], [], []>} : vector<32x32xf32>, vector<32x32xf32>, vector<32x32xf32> -> vector<32x32xf32>
    %c0_8 = arith.constant 0 : index
    %c0_9 = arith.constant 0 : index
    %6 = vector.load %arg5[%c0_8, %c0_9] : memref<1x32xf32, #tpu.memory_space<vmem>>, vector<1x32xf32>
    %7 = vector.broadcast %6 : vector<1x32xf32> to vector<32x32xf32>
    %8 = arith.addf %5, %7 : vector<32x32xf32>
    %c0_10 = arith.constant 0 : index
    %c0_11 = arith.constant 0 : index
    %9 = vector.load %arg7[%c0_10, %c0_11] : memref<32x32xf32, #tpu.memory_space<vmem>>, vector<32x32xf32>
    tpu.vector_store %arg7[%c0_10, %c0_11], %8 {strides = array<i32>} : memref<32x32xf32, #tpu.memory_space<vmem>>, vector<32x32xf32>,
    return
  }
  func.func @transform_0(%arg0: i32, %arg1: i32) -> (i32, i32) {
    %c0_i32 = arith.constant 0 : i32
    %c0_i32_0 = arith.constant 0 : i32
    return %arg0, %c0_i32 : i32, i32
  }
  func.func @transform_1(%arg0: i32, %arg1: i32) -> (i32, i32) {
    %c0_i32 = arith.constant 0 : i32
    %c0_i32_0 = arith.constant 0 : i32
    return %c0_i32, %arg1 : i32, i32
  }
  func.func @transform_2(%arg0: i32, %arg1: i32) -> (i32, i32) {
    %c0_i32 = arith.constant 0 : i32
    %c0_i32_0 = arith.constant 0 : i32
    return %c0_i32, %arg1 : i32, i32
  }
  func.func @transform_3(%arg0: i32, %arg1: i32) -> (i32, i32) {
    %c0_i32 = arith.constant 0 : i32
    %c0_i32_0 = arith.constant 0 : i32
    return %c0_i32, %arg1 : i32, i32
  }
  func.func @transform_4(%arg0: i32, %arg1: i32) -> (i32, i32) {
    %c0_i32 = arith.constant 0 : i32
    return %arg0, %arg1 : i32, i32
  }
  func.func @transform_5(%arg0: i32, %arg1: i32) -> (i32, i32) {
    %c0_i32 = arith.constant 0 : i32
    return %arg0, %arg1 : i32, i32
  }
}

module attributes {stable_mosaic.version = 11 : i64} {
  func.func @_attn_kernel(%arg0: i32, %arg1: i32, %arg2: i32, %arg3: i32, %arg4: memref<1x8x32xf32, #tpu.memory_space<vmem>>, %arg5: memref<1x16x32xf32, #tpu.memory_space<vmem>>, %arg6: memref<1x16x32xf32, #tpu.memory_space<vmem>>, %arg7: memref<1x8x32xf32, #tpu.memory_space<vmem>>, %arg8: memref<8x4xf32, #tpu.memory_space<vmem>>, %arg9: memref<8x4xf32, #tpu.memory_space<vmem>>, %arg10: memref<8x32xf32, #tpu.memory_space<vmem>>) attributes {dimension_semantics = [#tpu.dimension_semantics<parallel>, #tpu.dimension_semantics<parallel>, #tpu.dimension_semantics<parallel>, #tpu.dimension_semantics<arbitrary>], iteration_bounds = array<i64: 2, 1, 1, 1>, scalar_prefetch = 0 : i64, scratch_operands = 3 : i64, tpu.core_type = #tpu.core_type<tc>, window_params = [{transform_indices = @transform_0, window_bounds = array<i64: 1, 8, 32>}, {transform_indices = @transform_1, window_bounds = array<i64: 1, 16, 32>}, {transform_indices = @transform_2, window_bounds = array<i64: 1, 16, 32>}, {transform_indices = @transform_3, window_bounds = array<i64: 1, 8, 32>}]} {
    %c0_i32 = arith.constant 0 : i32
    %0 = arith.cmpi eq, %arg3, %c0_i32 : i32
    %1 = arith.extui %0 : i1 to i32
    %c0_i32_0 = arith.constant 0 : i32
    %2 = arith.cmpi ne, %1, %c0_i32_0 : i32
    scf.if %2 {
      %cst_77 = arith.constant -1.000000e+30 : f32
      %138 = vector.broadcast %cst_77 : f32 to vector<8x4xf32>
      %c0_78 = arith.constant 0 : index
      %c0_79 = arith.constant 0 : index
      %139 = vector.load %arg8[%c0_78, %c0_79] : memref<8x4xf32, #tpu.memory_space<vmem>>, vector<8x4xf32>
      tpu.vector_store %arg8[%c0_78, %c0_79], %138 {strides = array<i32>} : memref<8x4xf32, #tpu.memory_space<vmem>>, vector<8x4xf32>,
      %cst_80 = arith.constant 0.000000e+00 : f32
      %140 = vector.broadcast %cst_80 : f32 to vector<8x4xf32>
      %c0_81 = arith.constant 0 : index
      %c0_82 = arith.constant 0 : index
      %141 = vector.load %arg9[%c0_81, %c0_82] : memref<8x4xf32, #tpu.memory_space<vmem>>, vector<8x4xf32>
      tpu.vector_store %arg9[%c0_81, %c0_82], %140 {strides = array<i32>} : memref<8x4xf32, #tpu.memory_space<vmem>>, vector<8x4xf32>,
      %cst_83 = arith.constant 0.000000e+00 : f32
      %142 = vector.broadcast %cst_83 : f32 to vector<8x32xf32>
      %c0_84 = arith.constant 0 : index
      %c0_85 = arith.constant 0 : index
      %143 = vector.load %arg10[%c0_84, %c0_85] : memref<8x32xf32, #tpu.memory_space<vmem>>, vector<8x32xf32>
      tpu.vector_store %arg10[%c0_84, %c0_85], %142 {strides = array<i32>} : memref<8x32xf32, #tpu.memory_space<vmem>>, vector<8x32xf32>,
    } else {
    }
    %c0 = arith.constant 0 : index
    %c0_1 = arith.constant 0 : index
    %c0_2 = arith.constant 0 : index
    %3 = vector.load %arg4[%c0, %c0_1, %c0_2] : memref<1x8x32xf32, #tpu.memory_space<vmem>>, vector<1x8x32xf32>
    %4 = vector.shape_cast %3 : vector<1x8x32xf32> to vector<8x32xf32>
    %c0_3 = arith.constant 0 : index
    %c0_4 = arith.constant 0 : index
    %c0_5 = arith.constant 0 : index
    %5 = vector.load %arg5[%c0_3, %c0_4, %c0_5] : memref<1x16x32xf32, #tpu.memory_space<vmem>>, vector<1x16x32xf32>
    %6 = vector.shape_cast %5 : vector<1x16x32xf32> to vector<16x32xf32>
    %c0_6 = arith.constant 0 : index
    %c0_7 = arith.constant 0 : index
    %c0_8 = arith.constant 0 : index
    %7 = vector.load %arg6[%c0_6, %c0_7, %c0_8] : memref<1x16x32xf32, #tpu.memory_space<vmem>>, vector<1x16x32xf32>
    %8 = vector.shape_cast %7 : vector<1x16x32xf32> to vector<16x32xf32>
    %c16_i32 = arith.constant 16 : i32
    %9 = arith.muli %arg3, %c16_i32 : i32
    %10 = tpu.iota {dimensions = array<i32: 1>} : vector<8x16xi32>
    %11 = vector.broadcast %9 : i32 to vector<8x16xi32>
    %12 = arith.addi %11, %10 : vector<8x16xi32>
    %c16_i32_9 = arith.constant 16 : i32
    %13 = vector.broadcast %c16_i32_9 : i32 to vector<8x16xi32>
    %14 = arith.cmpi sge, %12, %13 : vector<8x16xi32>
    %15 = vector.extract_strided_slice %4 {offsets = [0, 0], sizes = [8, 8], strides = [1, 1]} : vector<8x32xf32> to vector<8x8xf32>
    %cst = arith.constant 0.353553385 : f32
    %16 = vector.broadcast %cst : f32 to vector<8x8xf32>
    %17 = arith.mulf %15, %16 : vector<8x8xf32>
    %18 = vector.extract_strided_slice %6 {offsets = [0, 0], sizes = [16, 8], strides = [1, 1]} : vector<16x32xf32> to vector<16x8xf32>
    %cst_10 = arith.constant dense<0.000000e+00> : vector<8x16xf32>
    %19 = tpu.matmul %17, %18, %cst_10 {dimension_numbers = #tpu.dot_dimension_numbers<[1], [1], [0], [0], [0, 0, 1, 0], [], []>} : vector<8x8xf32>, vector<16x8xf32>, vector<8x16xf32> -> vector<8x16xf32>
    %cst_11 = arith.constant -1.000000e+30 : f32
    %20 = vector.broadcast %cst_11 : f32 to vector<8x16xf32>
    %21 = arith.select %14, %20, %19 : vector<8x16xi1>, vector<8x16xf32>
    %c0_12 = arith.constant 0 : index
    %c0_13 = arith.constant 0 : index
    %22 = vector.load %arg8[%c0_12, %c0_13] : memref<8x4xf32, #tpu.memory_space<vmem>>, vector<8x1xf32>
    %cst_14 = arith.constant dense<0xFF800000> : vector<8xf32>
    %23 = vector.multi_reduction <maximumf>, %21, %cst_14 [1] : vector<8x16xf32> to vector<8xf32>
    %24 = vector.shape_cast %23 : vector<8xf32> to vector<8x1xf32>
    %25 = arith.maximumf %22, %24 : vector<8x1xf32>
    %26 = arith.subf %22, %25 : vector<8x1xf32>
    %27 = math.exp %26 : vector<8x1xf32>
    %28 = vector.broadcast %25 : vector<8x1xf32> to vector<8x16xf32>
    %29 = arith.subf %21, %28 : vector<8x16xf32>
    %30 = math.exp %29 : vector<8x16xf32>
    %c0_15 = arith.constant 0 : index
    %c0_16 = arith.constant 0 : index
    %31 = vector.load %arg9[%c0_15, %c0_16] : memref<8x4xf32, #tpu.memory_space<vmem>>, vector<8x1xf32>
    %32 = arith.mulf %27, %31 : vector<8x1xf32>
    %cst_17 = arith.constant dense<0.000000e+00> : vector<8xf32>
    %33 = vector.multi_reduction <add>, %30, %cst_17 [1] : vector<8x16xf32> to vector<8xf32>
    %34 = vector.shape_cast %33 : vector<8xf32> to vector<8x1xf32>
    %35 = arith.addf %32, %34 : vector<8x1xf32>
    %c0_18 = arith.constant 0 : index
    %c0_19 = arith.constant 0 : index
    %36 = vector.load %arg9[%c0_18, %c0_19] : memref<8x4xf32, #tpu.memory_space<vmem>>, vector<8x1xf32>
    tpu.vector_store %arg9[%c0_18, %c0_19], %35 {strides = array<i32>} : memref<8x4xf32, #tpu.memory_space<vmem>>, vector<8x1xf32>,
    %37 = vector.extract_strided_slice %8 {offsets = [0, 0], sizes = [16, 8], strides = [1, 1]} : vector<16x32xf32> to vector<16x8xf32>
    %cst_20 = arith.constant dense<0.000000e+00> : vector<8x8xf32>
    %38 = tpu.matmul %30, %37, %cst_20 {dimension_numbers = #tpu.dot_dimension_numbers<[1], [0], [0], [1], [0, 0, 1, 1], [], []>} : vector<8x16xf32>, vector<16x8xf32>, vector<8x8xf32> -> vector<8x8xf32>
    %c0_21 = arith.constant 0 : index
    %c0_22 = arith.constant 0 : index
    %39 = vector.load %arg10[%c0_21, %c0_22] : memref<8x32xf32, #tpu.memory_space<vmem>>, vector<8x8xf32>
    %40 = vector.broadcast %27 : vector<8x1xf32> to vector<8x8xf32>
    %41 = arith.mulf %40, %39 : vector<8x8xf32>
    %42 = arith.addf %41, %38 : vector<8x8xf32>
    %c0_23 = arith.constant 0 : index
    %c0_24 = arith.constant 0 : index
    %43 = vector.load %arg10[%c0_23, %c0_24] : memref<8x32xf32, #tpu.memory_space<vmem>>, vector<8x8xf32>
    tpu.vector_store %arg10[%c0_23, %c0_24], %42 {strides = array<i32>} : memref<8x32xf32, #tpu.memory_space<vmem>>, vector<8x8xf32>,
    %c0_25 = arith.constant 0 : index
    %c0_26 = arith.constant 0 : index
    %44 = vector.load %arg8[%c0_25, %c0_26] : memref<8x4xf32, #tpu.memory_space<vmem>>, vector<8x1xf32>
    tpu.vector_store %arg8[%c0_25, %c0_26], %25 {strides = array<i32>} : memref<8x4xf32, #tpu.memory_space<vmem>>, vector<8x1xf32>,
    %45 = vector.extract_strided_slice %4 {offsets = [0, 8], sizes = [8, 8], strides = [1, 1]} : vector<8x32xf32> to vector<8x8xf32>
    %cst_27 = arith.constant 0.353553385 : f32
    %46 = vector.broadcast %cst_27 : f32 to vector<8x8xf32>
    %47 = arith.mulf %45, %46 : vector<8x8xf32>
    %48 = vector.extract_strided_slice %6 {offsets = [0, 8], sizes = [16, 8], strides = [1, 1]} : vector<16x32xf32> to vector<16x8xf32>
    %cst_28 = arith.constant dense<0.000000e+00> : vector<8x16xf32>
    %49 = tpu.matmul %47, %48, %cst_28 {dimension_numbers = #tpu.dot_dimension_numbers<[1], [1], [0], [0], [0, 0, 1, 0], [], []>} : vector<8x8xf32>, vector<16x8xf32>, vector<8x16xf32> -> vector<8x16xf32>
    %cst_29 = arith.constant -1.000000e+30 : f32
    %50 = vector.broadcast %cst_29 : f32 to vector<8x16xf32>
    %51 = arith.select %14, %50, %49 : vector<8x16xi1>, vector<8x16xf32>
    %c0_30 = arith.constant 0 : index
    %c1 = arith.constant 1 : index
    %52 = vector.load %arg8[%c0_30, %c1] : memref<8x4xf32, #tpu.memory_space<vmem>>, vector<8x1xf32>
    %cst_31 = arith.constant dense<0xFF800000> : vector<8xf32>
    %53 = vector.multi_reduction <maximumf>, %51, %cst_31 [1] : vector<8x16xf32> to vector<8xf32>
    %54 = vector.shape_cast %53 : vector<8xf32> to vector<8x1xf32>
    %55 = arith.maximumf %52, %54 : vector<8x1xf32>
    %56 = arith.subf %52, %55 : vector<8x1xf32>
    %57 = math.exp %56 : vector<8x1xf32>
    %58 = vector.broadcast %55 : vector<8x1xf32> to vector<8x16xf32>
    %59 = arith.subf %51, %58 : vector<8x16xf32>
    %60 = math.exp %59 : vector<8x16xf32>
    %c0_32 = arith.constant 0 : index
    %c1_33 = arith.constant 1 : index
    %61 = vector.load %arg9[%c0_32, %c1_33] : memref<8x4xf32, #tpu.memory_space<vmem>>, vector<8x1xf32>
    %62 = arith.mulf %57, %61 : vector<8x1xf32>
    %cst_34 = arith.constant dense<0.000000e+00> : vector<8xf32>
    %63 = vector.multi_reduction <add>, %60, %cst_34 [1] : vector<8x16xf32> to vector<8xf32>
    %64 = vector.shape_cast %63 : vector<8xf32> to vector<8x1xf32>
    %65 = arith.addf %62, %64 : vector<8x1xf32>
    %c0_35 = arith.constant 0 : index
    %c1_36 = arith.constant 1 : index
    %66 = vector.load %arg9[%c0_35, %c1_36] : memref<8x4xf32, #tpu.memory_space<vmem>>, vector<8x1xf32>
    tpu.vector_store %arg9[%c0_35, %c1_36], %65 {strides = array<i32>} : memref<8x4xf32, #tpu.memory_space<vmem>>, vector<8x1xf32>,
    %67 = vector.extract_strided_slice %8 {offsets = [0, 8], sizes = [16, 8], strides = [1, 1]} : vector<16x32xf32> to vector<16x8xf32>
    %cst_37 = arith.constant dense<0.000000e+00> : vector<8x8xf32>
    %68 = tpu.matmul %60, %67, %cst_37 {dimension_numbers = #tpu.dot_dimension_numbers<[1], [0], [0], [1], [0, 0, 1, 1], [], []>} : vector<8x16xf32>, vector<16x8xf32>, vector<8x8xf32> -> vector<8x8xf32>
    %c0_38 = arith.constant 0 : index
    %c8 = arith.constant 8 : index
    %69 = vector.load %arg10[%c0_38, %c8] : memref<8x32xf32, #tpu.memory_space<vmem>>, vector<8x8xf32>
    %70 = vector.broadcast %57 : vector<8x1xf32> to vector<8x8xf32>
    %71 = arith.mulf %70, %69 : vector<8x8xf32>
    %72 = arith.addf %71, %68 : vector<8x8xf32>
    %c0_39 = arith.constant 0 : index
    %c8_40 = arith.constant 8 : index
    %73 = vector.load %arg10[%c0_39, %c8_40] : memref<8x32xf32, #tpu.memory_space<vmem>>, vector<8x8xf32>
    tpu.vector_store %arg10[%c0_39, %c8_40], %72 {strides = array<i32>} : memref<8x32xf32, #tpu.memory_space<vmem>>, vector<8x8xf32>,
    %c0_41 = arith.constant 0 : index
    %c1_42 = arith.constant 1 : index
    %74 = vector.load %arg8[%c0_41, %c1_42] : memref<8x4xf32, #tpu.memory_space<vmem>>, vector<8x1xf32>
    tpu.vector_store %arg8[%c0_41, %c1_42], %55 {strides = array<i32>} : memref<8x4xf32, #tpu.memory_space<vmem>>, vector<8x1xf32>,
    %75 = vector.extract_strided_slice %4 {offsets = [0, 16], sizes = [8, 8], strides = [1, 1]} : vector<8x32xf32> to vector<8x8xf32>
    %cst_43 = arith.constant 0.353553385 : f32
    %76 = vector.broadcast %cst_43 : f32 to vector<8x8xf32>
    %77 = arith.mulf %75, %76 : vector<8x8xf32>
    %78 = vector.extract_strided_slice %6 {offsets = [0, 16], sizes = [16, 8], strides = [1, 1]} : vector<16x32xf32> to vector<16x8xf32>
    %cst_44 = arith.constant dense<0.000000e+00> : vector<8x16xf32>
    %79 = tpu.matmul %77, %78, %cst_44 {dimension_numbers = #tpu.dot_dimension_numbers<[1], [1], [0], [0], [0, 0, 1, 0], [], []>} : vector<8x8xf32>, vector<16x8xf32>, vector<8x16xf32> -> vector<8x16xf32>
    %cst_45 = arith.constant -1.000000e+30 : f32
    %80 = vector.broadcast %cst_45 : f32 to vector<8x16xf32>
    %81 = arith.select %14, %80, %79 : vector<8x16xi1>, vector<8x16xf32>
    %c0_46 = arith.constant 0 : index
    %c2 = arith.constant 2 : index
    %82 = vector.load %arg8[%c0_46, %c2] : memref<8x4xf32, #tpu.memory_space<vmem>>, vector<8x1xf32>
    %cst_47 = arith.constant dense<0xFF800000> : vector<8xf32>
    %83 = vector.multi_reduction <maximumf>, %81, %cst_47 [1] : vector<8x16xf32> to vector<8xf32>
    %84 = vector.shape_cast %83 : vector<8xf32> to vector<8x1xf32>
    %85 = arith.maximumf %82, %84 : vector<8x1xf32>
    %86 = arith.subf %82, %85 : vector<8x1xf32>
    %87 = math.exp %86 : vector<8x1xf32>
    %88 = vector.broadcast %85 : vector<8x1xf32> to vector<8x16xf32>
    %89 = arith.subf %81, %88 : vector<8x16xf32>
    %90 = math.exp %89 : vector<8x16xf32>
    %c0_48 = arith.constant 0 : index
    %c2_49 = arith.constant 2 : index
    %91 = vector.load %arg9[%c0_48, %c2_49] : memref<8x4xf32, #tpu.memory_space<vmem>>, vector<8x1xf32>
    %92 = arith.mulf %87, %91 : vector<8x1xf32>
    %cst_50 = arith.constant dense<0.000000e+00> : vector<8xf32>
    %93 = vector.multi_reduction <add>, %90, %cst_50 [1] : vector<8x16xf32> to vector<8xf32>
    %94 = vector.shape_cast %93 : vector<8xf32> to vector<8x1xf32>
    %95 = arith.addf %92, %94 : vector<8x1xf32>
    %c0_51 = arith.constant 0 : index
    %c2_52 = arith.constant 2 : index
    %96 = vector.load %arg9[%c0_51, %c2_52] : memref<8x4xf32, #tpu.memory_space<vmem>>, vector<8x1xf32>
    tpu.vector_store %arg9[%c0_51, %c2_52], %95 {strides = array<i32>} : memref<8x4xf32, #tpu.memory_space<vmem>>, vector<8x1xf32>,
    %97 = vector.extract_strided_slice %8 {offsets = [0, 16], sizes = [16, 8], strides = [1, 1]} : vector<16x32xf32> to vector<16x8xf32>
    %cst_53 = arith.constant dense<0.000000e+00> : vector<8x8xf32>
    %98 = tpu.matmul %90, %97, %cst_53 {dimension_numbers = #tpu.dot_dimension_numbers<[1], [0], [0], [1], [0, 0, 1, 1], [], []>} : vector<8x16xf32>, vector<16x8xf32>, vector<8x8xf32> -> vector<8x8xf32>
    %c0_54 = arith.constant 0 : index
    %c16 = arith.constant 16 : index
    %99 = vector.load %arg10[%c0_54, %c16] : memref<8x32xf32, #tpu.memory_space<vmem>>, vector<8x8xf32>
    %100 = vector.broadcast %87 : vector<8x1xf32> to vector<8x8xf32>
    %101 = arith.mulf %100, %99 : vector<8x8xf32>
    %102 = arith.addf %101, %98 : vector<8x8xf32>
    %c0_55 = arith.constant 0 : index
    %c16_56 = arith.constant 16 : index
    %103 = vector.load %arg10[%c0_55, %c16_56] : memref<8x32xf32, #tpu.memory_space<vmem>>, vector<8x8xf32>
    tpu.vector_store %arg10[%c0_55, %c16_56], %102 {strides = array<i32>} : memref<8x32xf32, #tpu.memory_space<vmem>>, vector<8x8xf32>,
    %c0_57 = arith.constant 0 : index
    %c2_58 = arith.constant 2 : index
    %104 = vector.load %arg8[%c0_57, %c2_58] : memref<8x4xf32, #tpu.memory_space<vmem>>, vector<8x1xf32>
    tpu.vector_store %arg8[%c0_57, %c2_58], %85 {strides = array<i32>} : memref<8x4xf32, #tpu.memory_space<vmem>>, vector<8x1xf32>,
    %105 = vector.extract_strided_slice %4 {offsets = [0, 24], sizes = [8, 8], strides = [1, 1]} : vector<8x32xf32> to vector<8x8xf32>
    %cst_59 = arith.constant 0.353553385 : f32
    %106 = vector.broadcast %cst_59 : f32 to vector<8x8xf32>
    %107 = arith.mulf %105, %106 : vector<8x8xf32>
    %108 = vector.extract_strided_slice %6 {offsets = [0, 24], sizes = [16, 8], strides = [1, 1]} : vector<16x32xf32> to vector<16x8xf32>
    %cst_60 = arith.constant dense<0.000000e+00> : vector<8x16xf32>
    %109 = tpu.matmul %107, %108, %cst_60 {dimension_numbers = #tpu.dot_dimension_numbers<[1], [1], [0], [0], [0, 0, 1, 0], [], []>} : vector<8x8xf32>, vector<16x8xf32>, vector<8x16xf32> -> vector<8x16xf32>
    %cst_61 = arith.constant -1.000000e+30 : f32
    %110 = vector.broadcast %cst_61 : f32 to vector<8x16xf32>
    %111 = arith.select %14, %110, %109 : vector<8x16xi1>, vector<8x16xf32>
    %c0_62 = arith.constant 0 : index
    %c3 = arith.constant 3 : index
    %112 = vector.load %arg8[%c0_62, %c3] : memref<8x4xf32, #tpu.memory_space<vmem>>, vector<8x1xf32>
    %cst_63 = arith.constant dense<0xFF800000> : vector<8xf32>
    %113 = vector.multi_reduction <maximumf>, %111, %cst_63 [1] : vector<8x16xf32> to vector<8xf32>
    %114 = vector.shape_cast %113 : vector<8xf32> to vector<8x1xf32>
    %115 = arith.maximumf %112, %114 : vector<8x1xf32>
    %116 = arith.subf %112, %115 : vector<8x1xf32>
    %117 = math.exp %116 : vector<8x1xf32>
    %118 = vector.broadcast %115 : vector<8x1xf32> to vector<8x16xf32>
    %119 = arith.subf %111, %118 : vector<8x16xf32>
    %120 = math.exp %119 : vector<8x16xf32>
    %c0_64 = arith.constant 0 : index
    %c3_65 = arith.constant 3 : index
    %121 = vector.load %arg9[%c0_64, %c3_65] : memref<8x4xf32, #tpu.memory_space<vmem>>, vector<8x1xf32>
    %122 = arith.mulf %117, %121 : vector<8x1xf32>
    %cst_66 = arith.constant dense<0.000000e+00> : vector<8xf32>
    %123 = vector.multi_reduction <add>, %120, %cst_66 [1] : vector<8x16xf32> to vector<8xf32>
    %124 = vector.shape_cast %123 : vector<8xf32> to vector<8x1xf32>
    %125 = arith.addf %122, %124 : vector<8x1xf32>
    %c0_67 = arith.constant 0 : index
    %c3_68 = arith.constant 3 : index
    %126 = vector.load %arg9[%c0_67, %c3_68] : memref<8x4xf32, #tpu.memory_space<vmem>>, vector<8x1xf32>
    tpu.vector_store %arg9[%c0_67, %c3_68], %125 {strides = array<i32>} : memref<8x4xf32, #tpu.memory_space<vmem>>, vector<8x1xf32>,
    %127 = vector.extract_strided_slice %8 {offsets = [0, 24], sizes = [16, 8], strides = [1, 1]} : vector<16x32xf32> to vector<16x8xf32>
    %cst_69 = arith.constant dense<0.000000e+00> : vector<8x8xf32>
    %128 = tpu.matmul %120, %127, %cst_69 {dimension_numbers = #tpu.dot_dimension_numbers<[1], [0], [0], [1], [0, 0, 1, 1], [], []>} : vector<8x16xf32>, vector<16x8xf32>, vector<8x8xf32> -> vector<8x8xf32>
    %c0_70 = arith.constant 0 : index
    %c24 = arith.constant 24 : index
    %129 = vector.load %arg10[%c0_70, %c24] : memref<8x32xf32, #tpu.memory_space<vmem>>, vector<8x8xf32>
    %130 = vector.broadcast %117 : vector<8x1xf32> to vector<8x8xf32>
    %131 = arith.mulf %130, %129 : vector<8x8xf32>
    %132 = arith.addf %131, %128 : vector<8x8xf32>
    %c0_71 = arith.constant 0 : index
    %c24_72 = arith.constant 24 : index
    %133 = vector.load %arg10[%c0_71, %c24_72] : memref<8x32xf32, #tpu.memory_space<vmem>>, vector<8x8xf32>
    tpu.vector_store %arg10[%c0_71, %c24_72], %132 {strides = array<i32>} : memref<8x32xf32, #tpu.memory_space<vmem>>, vector<8x8xf32>,
    %c0_73 = arith.constant 0 : index
    %c3_74 = arith.constant 3 : index
    %134 = vector.load %arg8[%c0_73, %c3_74] : memref<8x4xf32, #tpu.memory_space<vmem>>, vector<8x1xf32>
    tpu.vector_store %arg8[%c0_73, %c3_74], %115 {strides = array<i32>} : memref<8x4xf32, #tpu.memory_space<vmem>>, vector<8x1xf32>,
    %c0_i32_75 = arith.constant 0 : i32
    %135 = arith.cmpi eq, %arg3, %c0_i32_75 : i32
    %136 = arith.extui %135 : i1 to i32
    %c0_i32_76 = arith.constant 0 : i32
    %137 = arith.cmpi ne, %136, %c0_i32_76 : i32
    scf.if %137 {
      %c0_77 = arith.constant 0 : index
      %c0_78 = arith.constant 0 : index
      %138 = vector.load %arg9[%c0_77, %c0_78] : memref<8x4xf32, #tpu.memory_space<vmem>>, vector<8x4xf32>
      %139 = tpu.reciprocal %138 {approx = true} : vector<8x4xf32> -> vector<8x4xf32>
      %c0_79 = arith.constant 0 : index
      %c0_80 = arith.constant 0 : index
      %140 = vector.load %arg10[%c0_79, %c0_80] : memref<8x32xf32, #tpu.memory_space<vmem>>, vector<8x8xf32>
      %141 = vector.extract_strided_slice %139 {offsets = [0, 0], sizes = [8, 1], strides = [1, 1]} : vector<8x4xf32> to vector<8x1xf32>
      %142 = vector.broadcast %141 : vector<8x1xf32> to vector<8x8xf32>
      %143 = arith.mulf %140, %142 : vector<8x8xf32>
      %c0_81 = arith.constant 0 : index
      %c0_82 = arith.constant 0 : index
      %144 = vector.load %arg10[%c0_81, %c0_82] : memref<8x32xf32, #tpu.memory_space<vmem>>, vector<8x8xf32>
      tpu.vector_store %arg10[%c0_81, %c0_82], %143 {strides = array<i32>} : memref<8x32xf32, #tpu.memory_space<vmem>>, vector<8x8xf32>,
      %c0_83 = arith.constant 0 : index
      %c8_84 = arith.constant 8 : index
      %145 = vector.load %arg10[%c0_83, %c8_84] : memref<8x32xf32, #tpu.memory_space<vmem>>, vector<8x8xf32>
      %146 = vector.extract_strided_slice %139 {offsets = [0, 1], sizes = [8, 1], strides = [1, 1]} : vector<8x4xf32> to vector<8x1xf32>
      %147 = vector.broadcast %146 : vector<8x1xf32> to vector<8x8xf32>
      %148 = arith.mulf %145, %147 : vector<8x8xf32>
      %c0_85 = arith.constant 0 : index
      %c8_86 = arith.constant 8 : index
      %149 = vector.load %arg10[%c0_85, %c8_86] : memref<8x32xf32, #tpu.memory_space<vmem>>, vector<8x8xf32>
      tpu.vector_store %arg10[%c0_85, %c8_86], %148 {strides = array<i32>} : memref<8x32xf32, #tpu.memory_space<vmem>>, vector<8x8xf32>,
      %c0_87 = arith.constant 0 : index
      %c16_88 = arith.constant 16 : index
      %150 = vector.load %arg10[%c0_87, %c16_88] : memref<8x32xf32, #tpu.memory_space<vmem>>, vector<8x8xf32>
      %151 = vector.extract_strided_slice %139 {offsets = [0, 2], sizes = [8, 1], strides = [1, 1]} : vector<8x4xf32> to vector<8x1xf32>
      %152 = vector.broadcast %151 : vector<8x1xf32> to vector<8x8xf32>
      %153 = arith.mulf %150, %152 : vector<8x8xf32>
      %c0_89 = arith.constant 0 : index
      %c16_90 = arith.constant 16 : index
      %154 = vector.load %arg10[%c0_89, %c16_90] : memref<8x32xf32, #tpu.memory_space<vmem>>, vector<8x8xf32>
      tpu.vector_store %arg10[%c0_89, %c16_90], %153 {strides = array<i32>} : memref<8x32xf32, #tpu.memory_space<vmem>>, vector<8x8xf32>,
      %c0_91 = arith.constant 0 : index
      %c24_92 = arith.constant 24 : index
      %155 = vector.load %arg10[%c0_91, %c24_92] : memref<8x32xf32, #tpu.memory_space<vmem>>, vector<8x8xf32>
      %156 = vector.extract_strided_slice %139 {offsets = [0, 3], sizes = [8, 1], strides = [1, 1]} : vector<8x4xf32> to vector<8x1xf32>
      %157 = vector.broadcast %156 : vector<8x1xf32> to vector<8x8xf32>
      %158 = arith.mulf %155, %157 : vector<8x8xf32>
      %c0_93 = arith.constant 0 : index
      %c24_94 = arith.constant 24 : index
      %159 = vector.load %arg10[%c0_93, %c24_94] : memref<8x32xf32, #tpu.memory_space<vmem>>, vector<8x8xf32>
      tpu.vector_store %arg10[%c0_93, %c24_94], %158 {strides = array<i32>} : memref<8x32xf32, #tpu.memory_space<vmem>>, vector<8x8xf32>,
      %c0_95 = arith.constant 0 : index
      %c0_96 = arith.constant 0 : index
      %160 = vector.load %arg10[%c0_95, %c0_96] : memref<8x32xf32, #tpu.memory_space<vmem>>, vector<8x32xf32>
      %c0_97 = arith.constant 0 : index
      %c0_98 = arith.constant 0 : index
      %c0_99 = arith.constant 0 : index
      %161 = vector.load %arg7[%c0_97, %c0_98, %c0_99] : memref<1x8x32xf32, #tpu.memory_space<vmem>>, vector<1x8x32xf32>
      %162 = vector.shape_cast %161 : vector<1x8x32xf32> to vector<8x32xf32>
      %163 = vector.shape_cast %160 : vector<8x32xf32> to vector<1x8x32xf32>
      tpu.vector_store %arg7[%c0_97, %c0_98, %c0_99], %163 {strides = array<i32>} : memref<1x8x32xf32, #tpu.memory_space<vmem>>, vector<1x8x32xf32>,
    } else {
    }
    return
  }
  func.func @transform_0(%arg0: i32, %arg1: i32, %arg2: i32, %arg3: i32) -> (i32, i32, i32) {
    %c0_i32 = arith.constant 0 : i32
    return %arg0, %arg2, %arg1 : i32, i32, i32
  }
  func.func @transform_1(%arg0: i32, %arg1: i32, %arg2: i32, %arg3: i32) -> (i32, i32, i32) {
    %c0_i32 = arith.constant 0 : i32
    return %arg0, %arg3, %arg1 : i32, i32, i32
  }
  func.func @transform_2(%arg0: i32, %arg1: i32, %arg2: i32, %arg3: i32) -> (i32, i32, i32) {
    %c0_i32 = arith.constant 0 : i32
    return %arg0, %arg3, %arg1 : i32, i32, i32
  }
  func.func @transform_3(%arg0: i32, %arg1: i32, %arg2: i32, %arg3: i32) -> (i32, i32, i32) {
    %c0_i32 = arith.constant 0 : i32
    return %arg0, %arg2, %arg1 : i32, i32, i32
  }
}

module attributes {stable_mosaic.version = 11 : i64} {
  func.func @_ln_mlp_kernel(%arg0: i32, %arg1: i32, %arg2: memref<16x32xf32, #tpu.memory_space<vmem>>, %arg3: memref<1x32xf32, #tpu.memory_space<vmem>>, %arg4: memref<1x32xf32, #tpu.memory_space<vmem>>, %arg5: memref<32x128xf32, #tpu.memory_space<vmem>>, %arg6: memref<1x128xf32, #tpu.memory_space<vmem>>, %arg7: memref<128x32xf32, #tpu.memory_space<vmem>>, %arg8: memref<1x32xf32, #tpu.memory_space<vmem>>, %arg9: memref<16x32xf32, #tpu.memory_space<vmem>>, %arg10: memref<16x32xf32, #tpu.memory_space<vmem>>, %arg11: memref<16x32xf32, #tpu.memory_space<vmem>>) attributes {dimension_semantics = [#tpu.dimension_semantics<parallel>, #tpu.dimension_semantics<arbitrary>], iteration_bounds = array<i64: 1, 1>, scalar_prefetch = 0 : i64, scratch_operands = 2 : i64, tpu.core_type = #tpu.core_type<tc>, window_params = [{transform_indices = @transform_0, window_bounds = array<i64: 16, 32>}, {pipeline_mode = #tpu.pipeline_mode<synchronous>, transform_indices = @transform_1, window_bounds = array<i64: 1, 32>}, {pipeline_mode = #tpu.pipeline_mode<synchronous>, transform_indices = @transform_2, window_bounds = array<i64: 1, 32>}, {transform_indices = @transform_3, window_bounds = array<i64: 32, 128>}, {transform_indices = @transform_4, window_bounds = array<i64: 1, 128>}, {transform_indices = @transform_5, window_bounds = array<i64: 128, 32>}, {pipeline_mode = #tpu.pipeline_mode<synchronous>, transform_indices = @transform_6, window_bounds = array<i64: 1, 32>}, {transform_indices = @transform_7, window_bounds = array<i64: 16, 32>}]} {
    %c0_i32 = arith.constant 0 : i32
    %0 = arith.cmpi eq, %arg1, %c0_i32 : i32
    %1 = arith.extui %0 : i1 to i32
    %c0_i32_0 = arith.constant 0 : i32
    %2 = arith.cmpi ne, %1, %c0_i32_0 : i32
    scf.if %2 {
      %c0_31 = arith.constant 0 : index
      %c0_32 = arith.constant 0 : index
      %58 = vector.load %arg2[%c0_31, %c0_32] : memref<16x32xf32, #tpu.memory_space<vmem>>, vector<16x32xf32>
      %cst_33 = arith.constant dense<0.000000e+00> : vector<16xf32>
      %59 = vector.multi_reduction <add>, %58, %cst_33 [1] : vector<16x32xf32> to vector<16xf32>
      %60 = vector.shape_cast %59 : vector<16xf32> to vector<16x1xf32>
      %cst_34 = arith.constant 3.200000e+01 : f32
      %61 = vector.broadcast %cst_34 : f32 to vector<16x1xf32>
      %62 = arith.divf %60, %61 : vector<16x1xf32>
      %63 = vector.broadcast %62 : vector<16x1xf32> to vector<16x32xf32>
      %64 = arith.subf %58, %63 : vector<16x32xf32>
      %65 = arith.mulf %64, %64 : vector<16x32xf32>
      %cst_35 = arith.constant dense<0.000000e+00> : vector<16xf32>
      %66 = vector.multi_reduction <add>, %65, %cst_35 [1] : vector<16x32xf32> to vector<16xf32>
      %67 = vector.shape_cast %66 : vector<16xf32> to vector<16x1xf32>
      %cst_36 = arith.constant 3.200000e+01 : f32
      %68 = vector.broadcast %cst_36 : f32 to vector<16x1xf32>
      %69 = arith.divf %67, %68 : vector<16x1xf32>
      %70 = vector.broadcast %62 : vector<16x1xf32> to vector<16x32xf32>
      %71 = arith.subf %58, %70 : vector<16x32xf32>
      %cst_37 = arith.constant 9.99999974E-6 : f32
      %72 = vector.broadcast %cst_37 : f32 to vector<16x1xf32>
      %73 = arith.addf %69, %72 : vector<16x1xf32>
      %74 = math.rsqrt %73 : vector<16x1xf32>
      %75 = vector.broadcast %74 : vector<16x1xf32> to vector<16x32xf32>
      %76 = arith.mulf %71, %75 : vector<16x32xf32>
      %c0_38 = arith.constant 0 : index
      %c0_39 = arith.constant 0 : index
      %77 = vector.load %arg3[%c0_38, %c0_39] : memref<1x32xf32, #tpu.memory_space<vmem>>, vector<1x32xf32>
      %78 = vector.broadcast %77 : vector<1x32xf32> to vector<16x32xf32>
      %79 = arith.mulf %76, %78 : vector<16x32xf32>
      %c0_40 = arith.constant 0 : index
      %c0_41 = arith.constant 0 : index
      %80 = vector.load %arg4[%c0_40, %c0_41] : memref<1x32xf32, #tpu.memory_space<vmem>>, vector<1x32xf32>
      %81 = vector.broadcast %80 : vector<1x32xf32> to vector<16x32xf32>
      %82 = arith.addf %79, %81 : vector<16x32xf32>
      %c0_42 = arith.constant 0 : index
      %c0_43 = arith.constant 0 : index
      %83 = vector.load %arg10[%c0_42, %c0_43] : memref<16x32xf32, #tpu.memory_space<vmem>>, vector<16x32xf32>
      tpu.vector_store %arg10[%c0_42, %c0_43], %82 {strides = array<i32>} : memref<16x32xf32, #tpu.memory_space<vmem>>, vector<16x32xf32>,
      %cst_44 = arith.constant 0.000000e+00 : f32
      %84 = vector.broadcast %cst_44 : f32 to vector<16x32xf32>
      %c0_45 = arith.constant 0 : index
      %c0_46 = arith.constant 0 : index
      %85 = vector.load %arg11[%c0_45, %c0_46] : memref<16x32xf32, #tpu.memory_space<vmem>>, vector<16x32xf32>
      tpu.vector_store %arg11[%c0_45, %c0_46], %84 {strides = array<i32>} : memref<16x32xf32, #tpu.memory_space<vmem>>, vector<16x32xf32>,
    } else {
    }
    %c0 = arith.constant 0 : index
    %c0_1 = arith.constant 0 : index
    %3 = vector.load %arg10[%c0, %c0_1] : memref<16x32xf32, #tpu.memory_space<vmem>>, vector<16x32xf32>
    %c0_2 = arith.constant 0 : index
    %c0_3 = arith.constant 0 : index
    %4 = vector.load %arg5[%c0_2, %c0_3] : memref<32x128xf32, #tpu.memory_space<vmem>>, vector<32x128xf32>
    %cst = arith.constant dense<0.000000e+00> : vector<16x128xf32>
    %5 = tpu.matmul %3, %4, %cst {dimension_numbers = #tpu.dot_dimension_numbers<[1], [0], [0], [1], [0, 0, 1, 1], [], []>} : vector<16x32xf32>, vector<32x128xf32>, vector<16x128xf32> -> vector<16x128xf32>
    %c0_4 = arith.constant 0 : index
    %c0_5 = arith.constant 0 : index
    %6 = vector.load %arg6[%c0_4, %c0_5] : memref<1x128xf32, #tpu.memory_space<vmem>>, vector<1x128xf32>
    %7 = vector.broadcast %6 : vector<1x128xf32> to vector<16x128xf32>
    %8 = arith.addf %5, %7 : vector<16x128xf32>
    %cst_6 = arith.constant 5.000000e-01 : f32
    %9 = vector.broadcast %cst_6 : f32 to vector<16x128xf32>
    %10 = arith.mulf %9, %8 : vector<16x128xf32>
    %cst_7 = arith.constant 0.707106769 : f32
    %11 = vector.broadcast %cst_7 : f32 to vector<16x128xf32>
    %12 = arith.mulf %8, %11 : vector<16x128xf32>
    %cst_8 = arith.constant 0.000000e+00 : f32
    %13 = vector.broadcast %cst_8 : f32 to vector<16x128xf32>
    %14 = arith.cmpf olt, %12, %13 : vector<16x128xf32>
    %cst_9 = arith.constant -1.000000e+00 : f32
    %cst_10 = arith.constant 1.000000e+00 : f32
    %15 = vector.broadcast %cst_9 : f32 to vector<16x128xf32>
    %16 = vector.broadcast %cst_10 : f32 to vector<16x128xf32>
    %17 = arith.select %14, %15, %16 : vector<16x128xi1>, vector<16x128xf32>
    %18 = math.absf %12 : vector<16x128xf32>
    %cst_11 = arith.constant 0.327591091 : f32
    %19 = vector.broadcast %cst_11 : f32 to vector<16x128xf32>
    %20 = arith.mulf %19, %18 : vector<16x128xf32>
    %cst_12 = arith.constant 1.000000e+00 : f32
    %21 = vector.broadcast %cst_12 : f32 to vector<16x128xf32>
    %22 = arith.addf %21, %20 : vector<16x128xf32>
    %cst_13 = arith.constant 1.000000e+00 : f32
    %23 = vector.broadcast %cst_13 : f32 to vector<16x128xf32>
    %24 = arith.divf %23, %22 : vector<16x128xf32>
    %cst_14 = arith.constant 1.06140542 : f32
    %25 = vector.broadcast %cst_14 : f32 to vector<16x128xf32>
    %26 = arith.mulf %25, %24 : vector<16x128xf32>
    %cst_15 = arith.constant -1.45315206 : f32
    %27 = vector.broadcast %cst_15 : f32 to vector<16x128xf32>
    %28 = arith.addf %26, %27 : vector<16x128xf32>
    %29 = arith.mulf %28, %24 : vector<16x128xf32>
    %cst_16 = arith.constant 1.42141378 : f32
    %30 = vector.broadcast %cst_16 : f32 to vector<16x128xf32>
    %31 = arith.addf %29, %30 : vector<16x128xf32>
    %32 = arith.mulf %31, %24 : vector<16x128xf32>
    %cst_17 = arith.constant -0.284496725 : f32
    %33 = vector.broadcast %cst_17 : f32 to vector<16x128xf32>
    %34 = arith.addf %32, %33 : vector<16x128xf32>
    %35 = arith.mulf %34, %24 : vector<16x128xf32>
    %cst_18 = arith.constant 0.254829586 : f32
    %36 = vector.broadcast %cst_18 : f32 to vector<16x128xf32>
    %37 = arith.addf %35, %36 : vector<16x128xf32>
    %38 = arith.mulf %37, %24 : vector<16x128xf32>
    %cst_19 = arith.constant 0.000000e+00 : f32
    %39 = vector.broadcast %cst_19 : f32 to vector<16x128xf32>
    %40 = arith.subf %39, %18 : vector<16x128xf32>
    %41 = arith.mulf %40, %18 : vector<16x128xf32>
    %42 = math.exp %41 : vector<16x128xf32>
    %43 = arith.mulf %38, %42 : vector<16x128xf32>
    %cst_20 = arith.constant 1.000000e+00 : f32
    %44 = vector.broadcast %cst_20 : f32 to vector<16x128xf32>
    %45 = arith.subf %44, %43 : vector<16x128xf32>
    %46 = arith.mulf %17, %45 : vector<16x128xf32>
    %cst_21 = arith.constant 1.000000e+00 : f32
    %47 = vector.broadcast %cst_21 : f32 to vector<16x128xf32>
    %48 = arith.addf %47, %46 : vector<16x128xf32>
    %49 = arith.mulf %10, %48 : vector<16x128xf32>
    %c0_22 = arith.constant 0 : index
    %c0_23 = arith.constant 0 : index
    %50 = vector.load %arg11[%c0_22, %c0_23] : memref<16x32xf32, #tpu.memory_space<vmem>>, vector<16x32xf32>
    %c0_24 = arith.constant 0 : index
    %c0_25 = arith.constant 0 : index
    %51 = vector.load %arg7[%c0_24, %c0_25] : memref<128x32xf32, #tpu.memory_space<vmem>>, vector<128x32xf32>
    %cst_26 = arith.constant dense<0.000000e+00> : vector<16x32xf32>
    %52 = tpu.matmul %49, %51, %cst_26 {dimension_numbers = #tpu.dot_dimension_numbers<[1], [0], [0], [1], [0, 0, 1, 1], [], []>} : vector<16x128xf32>, vector<128x32xf32>, vector<16x32xf32> -> vector<16x32xf32>
    %53 = arith.addf %50, %52 : vector<16x32xf32>
    %c0_27 = arith.constant 0 : index
    %c0_28 = arith.constant 0 : index
    %54 = vector.load %arg11[%c0_27, %c0_28] : memref<16x32xf32, #tpu.memory_space<vmem>>, vector<16x32xf32>
    tpu.vector_store %arg11[%c0_27, %c0_28], %53 {strides = array<i32>} : memref<16x32xf32, #tpu.memory_space<vmem>>, vector<16x32xf32>,
    %c0_i32_29 = arith.constant 0 : i32
    %55 = arith.cmpi eq, %arg1, %c0_i32_29 : i32
    %56 = arith.extui %55 : i1 to i32
    %c0_i32_30 = arith.constant 0 : i32
    %57 = arith.cmpi ne, %56, %c0_i32_30 : i32
    scf.if %57 {
      %c0_31 = arith.constant 0 : index
      %c0_32 = arith.constant 0 : index
      %58 = vector.load %arg11[%c0_31, %c0_32] : memref<16x32xf32, #tpu.memory_space<vmem>>, vector<16x32xf32>
      %c0_33 = arith.constant 0 : index
      %c0_34 = arith.constant 0 : index
      %59 = vector.load %arg8[%c0_33, %c0_34] : memref<1x32xf32, #tpu.memory_space<vmem>>, vector<1x32xf32>
      %60 = vector.broadcast %59 : vector<1x32xf32> to vector<16x32xf32>
      %61 = arith.addf %58, %60 : vector<16x32xf32>
      %c0_35 = arith.constant 0 : index
      %c0_36 = arith.constant 0 : index
      %62 = vector.load %arg2[%c0_35, %c0_36] : memref<16x32xf32, #tpu.memory_space<vmem>>, vector<16x32xf32>
      %63 = arith.addf %61, %62 : vector<16x32xf32>
      %c0_37 = arith.constant 0 : index
      %c0_38 = arith.constant 0 : index
      %64 = vector.load %arg9[%c0_37, %c0_38] : memref<16x32xf32, #tpu.memory_space<vmem>>, vector<16x32xf32>
      tpu.vector_store %arg9[%c0_37, %c0_38], %63 {strides = array<i32>} : memref<16x32xf32, #tpu.memory_space<vmem>>, vector<16x32xf32>,
    } else {
    }
    return
  }
  func.func @transform_0(%arg0: i32, %arg1: i32) -> (i32, i32) {
    %c0_i32 = arith.constant 0 : i32
    %c0_i32_0 = arith.constant 0 : i32
    return %arg0, %c0_i32 : i32, i32
  }
  func.func @transform_1(%arg0: i32, %arg1: i32) -> (i32, i32) {
    %c0_i32 = arith.constant 0 : i32
    %c0_i32_0 = arith.constant 0 : i32
    %c0_i32_1 = arith.constant 0 : i32
    return %c0_i32, %c0_i32_0 : i32, i32
  }
  func.func @transform_2(%arg0: i32, %arg1: i32) -> (i32, i32) {
    %c0_i32 = arith.constant 0 : i32
    %c0_i32_0 = arith.constant 0 : i32
    %c0_i32_1 = arith.constant 0 : i32
    return %c0_i32, %c0_i32_0 : i32, i32
  }
  func.func @transform_3(%arg0: i32, %arg1: i32) -> (i32, i32) {
    %c0_i32 = arith.constant 0 : i32
    %c0_i32_0 = arith.constant 0 : i32
    return %c0_i32, %arg1 : i32, i32
  }
  func.func @transform_4(%arg0: i32, %arg1: i32) -> (i32, i32) {
    %c0_i32 = arith.constant 0 : i32
    %c0_i32_0 = arith.constant 0 : i32
    return %c0_i32, %arg1 : i32, i32
  }
  func.func @transform_5(%arg0: i32, %arg1: i32) -> (i32, i32) {
    %c0_i32 = arith.constant 0 : i32
    %c0_i32_0 = arith.constant 0 : i32
    return %arg1, %c0_i32 : i32, i32
  }
  func.func @transform_6(%arg0: i32, %arg1: i32) -> (i32, i32) {
    %c0_i32 = arith.constant 0 : i32
    %c0_i32_0 = arith.constant 0 : i32
    %c0_i32_1 = arith.constant 0 : i32
    return %c0_i32, %c0_i32_0 : i32, i32
  }
  func.func @transform_7(%arg0: i32, %arg1: i32) -> (i32, i32) {
    %c0_i32 = arith.constant 0 : i32
    %c0_i32_0 = arith.constant 0 : i32
    return %arg0, %c0_i32 : i32, i32
  }
}

</mosaic_0001>

<llo_original>
// kernel: residual_attention_block.10
$region0: #{residual_attention_block.10}
  #allocation0 [shape = 'u32[]', space=smem, size = 0x4, offset = 0x4, fixed_abs, tag = 'smem constant byte address 0x4 - core index']
  #allocation1 [shape = 'u32[144,128]{1,0:T(1,128)}', space=vmem, size = 0x12000, scoped, tag = 'internal scratch']
  #allocation2 [shape = 'f32[16,32]{1,0:T(8,128)}', space=vmem, size = 0x2000, scoped, tag = 'scratch operand']
  %s0 = inlined_call_operand.vmem [shape: f32[16,32], index: 0, kind: input, shape index: {}]
  %s1 = inlined_call_operand.vmem [shape: f32[32,32], index: 1, kind: input, shape index: {}]
  %s2 = inlined_call_operand.vmem [shape: f32[1,32], index: 2, kind: input, shape index: {}]
  %s3 = inlined_call_operand.vmem [shape: f32[16,32], index: 3, kind: input, shape index: {}]
  %s4 = inlined_call_operand.vmem [shape: f32[16,32], index: 4, kind: output, shape index: {}]
  %s5 = sld [smem:[#allocation0]]
  $region34: #{residual_attention_block.10} parent=0
    _
  %s7 = ssub.s32 1, %s5
  %s8 = scalar_select 0, %s7, %s5
  // Predicated region
  $region2: #{residual_attention_block.10} parent=0 // pred_check
    _
  $region3: #{residual_attention_block.10} parent=0 // pred_check_branch
    %10 = sbr.rel (0) target = $region5
  $region4: #{residual_attention_block.10} parent=0 // pred_region
    _
  $region5: #{residual_attention_block.10} parent=0 // pred_fallthru
    _
  // Predicated region
  $region6: #{residual_attention_block.10} parent=0 // pred_check
    _
  $region7: #{residual_attention_block.10} parent=0 // pred_check_branch
    %12 = sbr.rel (0) target = $region9
  $region8: #{residual_attention_block.10} parent=0 // pred_region
    _
  $region9: #{residual_attention_block.10} parent=0 // pred_fallthru
    _
  // Predicated region
  $region10: #{residual_attention_block.10} parent=0 // pred_check
    _
  $region11: #{residual_attention_block.10} parent=0 // pred_check_branch
    %14 = sbr.rel (0) target = $region13
  $region12: #{residual_attention_block.10} parent=0 // pred_region
    _
  $region13: #{residual_attention_block.10} parent=0 // pred_fallthru
    _
  // Predicated region
  $region14: #{residual_attention_block.10} parent=0 // pred_check
    _
  $region15: #{residual_attention_block.10} parent=0 // pred_check_branch
    %16 = sbr.rel (0) target = $region17
  $region16: #{residual_attention_block.10} parent=0 // pred_region
    _
  $region17: #{residual_attention_block.10} parent=0 // pred_fallthru
    _
  %p17 = scmp.eq.s32.totalorder 0, 0
  // Predicated region
  $region18: #{residual_attention_block.10} parent=0 // pred_check
    %p18 = pneg %p17
  $region19: #{residual_attention_block.10} parent=0 // pred_check_branch
    %20 = sbr.rel (%p18) target = $region21
  $region20: #{residual_attention_block.10} parent=0 // pred_region
    %vm21 = vcmask 261120
    %22 = vst.msk [vmem:[#allocation2] sm:$0xff] %vm21, 0.0
    %23 = vst.msk [vmem:[#allocation2 + $0x8] sm:$0xff] %vm21, 0.0
  $region21: #{residual_attention_block.10} parent=0 // pred_fallthru
    _
  %v24 = vld [vmem:[#allocation2] sm:$0xff]
  %v25 = vld [vmem:[#allocation2 + $0x8] sm:$0xff]
  %v26 = vld [vmem:[%s0] sm:$0xff]
  %v27 = vld [vmem:[%s0 + $0x8] sm:$0xff]
  %v28 = vld [vmem:[%s1] sm:$0xff]
  %v29 = vld [vmem:[%s1 + $0x8] sm:$0xff]
  %v30 = vld [vmem:[%s1 + $0x10] sm:$0xff]
  %v31 = vld [vmem:[%s1 + $0x18] sm:$0xff]
  %vm32 = vcmask 261120
  %v34 = vsel %vm32, %v26, 0
  %v37 = vsel %vm32, %v27, 0
  %39 = vmatprep.subr.mxu0 0.0
  %40 = vmatpush1.msra.mxu0 %v28
  %41 = vmatprep.subr.mxu0 0.0
  %42 = vmatpush1.msra.mxu0 %v29
  %43 = vmatprep.subr.mxu0 0.0
  %44 = vmatpush1.msra.mxu0 %v30
  %45 = vmatprep.subr.mxu0 0.0
  %46 = vmatpush1.msra.mxu0 %v31
  %47 = vmatprep.subr.mxu0 0.0
  %48 = vmatpush1.msra.mxu0 0.0
  %49 = vmatprep.subr.mxu0 0.0
  %50 = vmatpush1.msra.mxu0 0.0
  %51 = vmatprep.subr.mxu0 0.0
  %52 = vmatpush1.msra.mxu0 0.0
  %53 = vmatprep.subr.mxu0 0.0
  %54 = vmatpush1.msra.mxu0 0.0
  %55 = vmatprep.subr.mxu0 0.0
  %56 = vmatpush1.msra.mxu0 0.0
  %57 = vmatprep.subr.mxu0 0.0
  %58 = vmatpush1.msra.mxu0 0.0
  %59 = vmatprep.subr.mxu0 0.0
  %60 = vmatpush1.msra.mxu0 0.0
  %61 = vmatprep.subr.mxu0 0.0
  %62 = vmatpush1.msra.mxu0 0.0
  %63 = vmatprep.subr.mxu0 0.0
  %64 = vmatpush1.msra.mxu0 0.0
  %65 = vmatprep.subr.mxu0 0.0
  %66 = vmatpush1.msra.mxu0 0.0
  %67 = vmatprep.subr.mxu0 0.0
  %68 = vmatpush1.msra.mxu0 0.0
  %69 = vmatprep.subr.mxu0 0.0
  %70 = vmatpush1.msra.mxu0 0.0
  %71 = vmatprep.subr.mxu0 0.0
  %72 = vmatpush1.msra.mxu0 0.0
  %73 = vmatprep.subr.mxu0 0.0
  %74 = vmatpush1.msra.mxu0 0.0
  %75 = vmatprep.subr.mxu0 0.0
  %76 = vmatpush1.msra.mxu0 0.0
  %77 = vmatprep.subr.mxu0 0.0
  %78 = vmatpush1.msra.mxu0 0.0
  %79 = vmatprep.subr.mxu0 0.0
  %80 = vmatpush1.msra.mxu0 0.0
  %81 = vmatprep.subr.mxu0 0.0
  %82 = vmatpush1.msra.mxu0 0.0
  %83 = vmatprep.subr.mxu0 0.0
  %84 = vmatpush1.msra.mxu0 0.0
  %85 = vmatprep.subr.mxu0 0.0
  %86 = vmatpush1.msra.mxu0 0.0
  %87 = vmatprep.subr.mxu0 0.0
  %88 = vmatpush1.msra.mxu0 0.0
  %89 = vmatprep.subr.mxu0 0.0
  %90 = vmatpush1.msra.mxu0 0.0
  %91 = vmatprep.subr.mxu0 0.0
  %92 = vmatpush1.msra.mxu0 0.0
  %93 = vmatprep.subr.mxu0 0.0
  %94 = vmatpush1.msra.mxu0 0.0
  %95 = vmatprep.subr.mxu0 0.0
  %96 = vmatpush1.msra.mxu0 0.0
  %97 = vmatprep.subr.mxu0 0.0
  %98 = vmatpush1.msra.mxu0 0.0
  %99 = vmatprep.subr.mxu0 0.0
  %100 = vmatpush1.msra.mxu0 0.0
  %101 = vmatprep.subr.mxu0 0.0
  %102 = vmatpush1.msra.mxu0 0.0
  %103 = vmatprep.mubr.f32.mxu0 0.0
  %104 = vmatmul.mubr.f32.gmra.mrb[0].mxu0 %v34
  %v105 = vpop.f32.mrb[0].mxu0
  %v106 = vadd.f32 0.0, %v105
  %v107 = vpop.f32.mrb[0].mxu0
  %108 = vmatprep.mubr.f32.mxu0 0.0
  %109 = vmatmul.mubr.f32.gmra.mrb[0].mxu0 %v37
  %v110 = vpop.f32.mrb[0].mxu0
  %v111 = vadd.f32 0.0, %v110
  %v112 = vpop.f32.mrb[0].mxu0
  %113 = vdwg.mxu0
  %v114 = vadd.f32 %v24, %v106
  %v115 = vadd.f32 %v25, %v111
  %116 = vst.msk [vmem:[#allocation2] sm:$0xff] %vm32, %v114
  %117 = vst.msk [vmem:[#allocation2 + $0x8] sm:$0xff] %vm32, %v115
  // Predicated region
  $region22: #{residual_attention_block.10} parent=0 // pred_check
    %p118 = pneg %p17
  $region23: #{residual_attention_block.10} parent=0 // pred_check_branch
    %120 = sbr.rel (%p118) target = $region25
  $region24: #{residual_attention_block.10} parent=0 // pred_region
    %v121 = vld [vmem:[#allocation2] sm:$0xff]
    %v122 = vld [vmem:[#allocation2 + $0x8] sm:$0xff]
    %v123 = vld [vmem:[%s2] sm:$0x1]
    %v125 = vlaneseq
    %v126 = vshrl.u32 %v125, 7
    %v127 = vsub.s32 0, %v126
    %v128 = vrot.slane %v123, %v127
    %v130 = vadd.f32 %v121, %v128
    %v131 = vadd.f32 %v122, %v128
    %v132 = vld [vmem:[%s3] sm:$0xff]
    %v133 = vld [vmem:[%s3 + $0x8] sm:$0xff]
    %v134 = vadd.f32 %v130, %v132
    %v135 = vadd.f32 %v131, %v133
    %136 = vst.msk [vmem:[%s4] sm:$0xff] %vm32, %v134
    %137 = vst.msk [vmem:[%s4 + $0x8] sm:$0xff] %vm32, %v135
  $region25: #{residual_attention_block.10} parent=0 // pred_fallthru
    _
  // Predicated region
  $region26: #{residual_attention_block.10} parent=0 // pred_check
    _
  $region27: #{residual_attention_block.10} parent=0 // pred_check_branch
    %139 = sbr.rel (0) target = $region29
  $region28: #{residual_attention_block.10} parent=0 // pred_region
    _
  $region29: #{residual_attention_block.10} parent=0 // pred_fallthru
    _
  // Predicated region
  $region30: #{residual_attention_block.10} parent=0 // pred_check
    _
  $region31: #{residual_attention_block.10} parent=0 // pred_check_branch
    %141 = sbr.rel (0) target = $region33
  $region32: #{residual_attention_block.10} parent=0 // pred_region
    _
  $region33: #{residual_attention_block.10} parent=0 // pred_fallthru
    _

// kernel: residual_attention_block.8
$region0: #{residual_attention_block.8}
  #allocation0 [shape = 'u32[]', space=smem, size = 0x4, offset = 0x4, fixed_abs, tag = 'smem constant byte address 0x4 - core index']
  #allocation1 [shape = 'u32[144,128]{1,0:T(1,128)}', space=vmem, size = 0x12000, scoped, tag = 'internal scratch']
  #allocation2 [shape = 'f32[16,32]{1,0:T(8,128)}', space=vmem, size = 0x2000, scoped, tag = 'scratch operand']
  %s0 = inlined_call_operand.vmem [shape: f32[16,32], index: 0, kind: input, shape index: {}]
  %s1 = inlined_call_operand.vmem [shape: f32[1,32], index: 1, kind: input, shape index: {}]
  %s2 = inlined_call_operand.vmem [shape: f32[1,32], index: 2, kind: input, shape index: {}]
  %s3 = inlined_call_operand.vmem [shape: f32[32,32], index: 3, kind: input, shape index: {}]
  %s4 = inlined_call_operand.vmem [shape: f32[1,32], index: 4, kind: input, shape index: {}]
  %s5 = inlined_call_operand.hbm [shape: f32[32,32], index: 5, kind: input, shape index: {}]
  %s6 = inlined_call_operand.vmem [shape: f32[32,32], index: 6, kind: input, shape index: {}]
  %s7 = inlined_call_operand.vmem [shape: f32[1,32], index: 7, kind: input, shape index: {}]
  %s8 = inlined_call_operand.vmem [shape: f32[16,32], index: 8, kind: output, shape index: {0}]
  %s9 = inlined_call_operand.vmem [shape: f32[16,32], index: 9, kind: output, shape index: {1}]
  %s10 = inlined_call_operand.vmem [shape: f32[16,32], index: 10, kind: output, shape index: {2}]
  %11 = xla_tuple %s8, %s9, %s10
  %s12 = sld [smem:[#allocation0]]
  $region66: #{residual_attention_block.8} parent=0
    _
  %s14 = ssub.s32 1, %s12
  %s15 = scalar_select 0, %s14, %s12
  $region1: #{residual_attention_block.8} parent=0
    #allocation3 [shape = 'u8[16384]{0}', space=vmem, size = 0x4000, scoped, tag = 'input window, operand 5, single buffered']
    #allocation4 [shape = 's32[1]{0}', space=sflag, size = 0x4, scoped, tag = 'scoped memory for residual_attention_block.8']
    %16 = vsyncpa [#allocation4], 0
    // Predicated region
    $region2: #{residual_attention_block.8} parent=1 // pred_check
      _
    $region3: #{residual_attention_block.8} parent=1 // pred_check_branch
      %18 = sbr.rel (0) target = $region5
    $region4: #{residual_attention_block.8} parent=1 // pred_region
      _
    $region5: #{residual_attention_block.8} parent=1 // pred_fallthru
      _
    // Predicated region
    $region6: #{residual_attention_block.8} parent=1 // pred_check
      _
    $region7: #{residual_attention_block.8} parent=1 // pred_check_branch
      %20 = sbr.rel (0) target = $region9
    $region8: #{residual_attention_block.8} parent=1 // pred_region
      _
    $region9: #{residual_attention_block.8} parent=1 // pred_fallthru
      _
    // Predicated region
    $region10: #{residual_attention_block.8} parent=1 // pred_check
      _
    $region11: #{residual_attention_block.8} parent=1 // pred_check_branch
      %22 = sbr.rel (0) target = $region13
    $region12: #{residual_attention_block.8} parent=1 // pred_region
      _
    $region13: #{residual_attention_block.8} parent=1 // pred_fallthru
      _
    // Predicated region
    $region14: #{residual_attention_block.8} parent=1 // pred_check
      _
    $region15: #{residual_attention_block.8} parent=1 // pred_check_branch
      %24 = sbr.rel (0) target = $region17
    $region16: #{residual_attention_block.8} parent=1 // pred_region
      _
    $region17: #{residual_attention_block.8} parent=1 // pred_fallthru
      _
    // Predicated region
    $region18: #{residual_attention_block.8} parent=1 // pred_check
      _
    $region19: #{residual_attention_block.8} parent=1 // pred_check_branch
      %26 = sbr.rel (0) target = $region21
    $region20: #{residual_attention_block.8} parent=1 // pred_region
      _
    $region21: #{residual_attention_block.8} parent=1 // pred_fallthru
      _
    // Predicated region
    $region22: #{residual_attention_block.8} parent=1 // pred_check
      _
    $region23: #{residual_attention_block.8} parent=1 // pred_check_branch
      %28 = sbr.rel (0) target = $region25
    $region24: #{residual_attention_block.8} parent=1 // pred_region
      %s30 = ssub.s32 512, 512
      %31 = vsyncadd [#allocation4], %s30
      %s32 = sshll.u32 [#allocation3], 4
      %s33 = int_to_ptr.vmem [resolvable:$true] %s32
      %38 = dma.hbm_to_vmem [thread:$0]  %s5, 512, %s33, [#allocation4], 128, 128, 8
    $region25: #{residual_attention_block.8} parent=1 // pred_fallthru
      _
    // Predicated region
    $region26: #{residual_attention_block.8} parent=1 // pred_check
      _
    $region27: #{residual_attention_block.8} parent=1 // pred_check_branch
      %40 = sbr.rel (0) target = $region29
    $region28: #{residual_attention_block.8} parent=1 // pred_region
      _
    $region29: #{residual_attention_block.8} parent=1 // pred_fallthru
      _
    // Predicated region
    $region30: #{residual_attention_block.8} parent=1 // pred_check
      _
    $region31: #{residual_attention_block.8} parent=1 // pred_check_branch
      %42 = sbr.rel (0) target = $region33
    $region32: #{residual_attention_block.8} parent=1 // pred_region
      _
    $region33: #{residual_attention_block.8} parent=1 // pred_fallthru
      _
    // Predicated region
    $region34: #{residual_attention_block.8} parent=1 // pred_check
      _
    $region35: #{residual_attention_block.8} parent=1 // pred_check_branch
      %44 = sbr.rel (0) target = $region37
    $region36: #{residual_attention_block.8} parent=1 // pred_region
      %45 = dma.done [#allocation4], 512
    $region37: #{residual_attention_block.8} parent=1 // pred_fallthru
      _
    %p46 = scmp.eq.s32.totalorder 0, 0
    // Predicated region
    $region38: #{residual_attention_block.8} parent=1 // pred_check
      %p47 = pneg %p46
    $region39: #{residual_attention_block.8} parent=1 // pred_check_branch
      %49 = sbr.rel (%p47) target = $region41
    $region40: #{residual_attention_block.8} parent=1 // pred_region
      %v50 = vld [vmem:[%s0] sm:$0xff]
      %v51 = vld [vmem:[%s0 + $0x8] sm:$0xff]
      %vm52 = vcmask 261120
      %v53 = vsel %vm52, %v50, 0.0
      %54 = vadd.xlane.f32.xlu0 %v53
      %v55 = vpop.xlane.xlu0 %54
      %v56 = vsel %vm52, %v51, 0.0
      %57 = vadd.xlane.f32.xlu0 %v56
      %v58 = vpop.xlane.xlu0 %57
      %v59 = vrcp.pop 32.0
      %v60 = vmul.f32 %v55, %v59
      %v61 = vmul.f32 %v58, %v59
      %v62 = vsub.f32 %v50, %v60
      %v63 = vsub.f32 %v51, %v61
      %v64 = vmul.f32 %v62, %v62
      %v65 = vmul.f32 %v63, %v63
      %v66 = vsel %vm52, %v64, 0.0
      %67 = vadd.xlane.f32.xlu0 %v66
      %v68 = vpop.xlane.xlu0 %67
      %v69 = vsel %vm52, %v65, 0.0
      %70 = vadd.xlane.f32.xlu0 %v69
      %v71 = vpop.xlane.xlu0 %70
      %v72 = vmul.f32 %v68, %v59
      %v73 = vmul.f32 %v71, %v59
      %v74 = vadd.f32 %v72, 1e-05
      %v75 = vadd.f32 %v73, 1e-05
      %v76 = vrsqrt.pop %v74
      %v77 = vrsqrt.pop %v75
      %v78 = vmul.f32 %v62, %v76
      %v79 = vmul.f32 %v63, %v77
      %v80 = vld [vmem:[%s1] sm:$0x1]
      %v82 = vlaneseq
      %v83 = vshrl.u32 %v82, 7
      %v84 = vsub.s32 0, %v83
      %v85 = vrot.slane %v80, %v84
      %v87 = vmul.f32 %v78, %v85
      %v88 = vmul.f32 %v79, %v85
      %v89 = vld [vmem:[%s2] sm:$0x1]
      %v91 = vlaneseq
      %v92 = vshrl.u32 %v91, 7
      %v93 = vsub.s32 0, %v92
      %v94 = vrot.slane %v89, %v93
      %v96 = vadd.f32 %v87, %v94
      %v97 = vadd.f32 %v88, %v94
      %98 = vst.msk [vmem:[#allocation2] sm:$0xff] %vm52, %v96
      %99 = vst.msk [vmem:[#allocation2 + $0x8] sm:$0xff] %vm52, %v97
    $region41: #{residual_attention_block.8} parent=1 // pred_fallthru
      _
    %v100 = vld [vmem:[#allocation2] sm:$0xff]
    %v101 = vld [vmem:[#allocation2 + $0x8] sm:$0xff]
    %v102 = vld [vmem:[%s3] sm:$0xff]
    %v103 = vld [vmem:[%s3 + $0x8] sm:$0xff]
    %v104 = vld [vmem:[%s3 + $0x10] sm:$0xff]
    %v105 = vld [vmem:[%s3 + $0x18] sm:$0xff]
    %v106 = vld [vmem:[%s4] sm:$0x1]
    %v108 = vlaneseq
    %v109 = vshrl.u32 %v108, 7
    %v110 = vsub.s32 0, %v109
    %v111 = vrot.slane %v106, %v110
    %vm113 = vcmask 261120
    %v115 = vsel %vm113, %v100, 0
    %v118 = vsel %vm113, %v101, 0
    %120 = vmatprep.subr.mxu0 0.0
    %121 = vmatpush1.msra.mxu0 %v102
    %122 = vmatprep.subr.mxu0 0.0
    %123 = vmatpush1.msra.mxu0 %v103
    %124 = vmatprep.subr.mxu0 0.0
    %125 = vmatpush1.msra.mxu0 %v104
    %126 = vmatprep.subr.mxu0 0.0
    %127 = vmatpush1.msra.mxu0 %v105
    %128 = vmatprep.subr.mxu0 0.0
    %129 = vmatpush1.msra.mxu0 0.0
    %130 = vmatprep.subr.mxu0 0.0
    %131 = vmatpush1.msra.mxu0 0.0
    %132 = vmatprep.subr.mxu0 0.0
    %133 = vmatpush1.msra.mxu0 0.0
    %134 = vmatprep.subr.mxu0 0.0
    %135 = vmatpush1.msra.mxu0 0.0
    %136 = vmatprep.subr.mxu0 0.0
    %137 = vmatpush1.msra.mxu0 0.0
    %138 = vmatprep.subr.mxu0 0.0
    %139 = vmatpush1.msra.mxu0 0.0
    %140 = vmatprep.subr.mxu0 0.0
    %141 = vmatpush1.msra.mxu0 0.0
    %142 = vmatprep.subr.mxu0 0.0
    %143 = vmatpush1.msra.mxu0 0.0
    %144 = vmatprep.subr.mxu0 0.0
    %145 = vmatpush1.msra.mxu0 0.0
    %146 = vmatprep.subr.mxu0 0.0
    %147 = vmatpush1.msra.mxu0 0.0
    %148 = vmatprep.subr.mxu0 0.0
    %149 = vmatpush1.msra.mxu0 0.0
    %150 = vmatprep.subr.mxu0 0.0
    %151 = vmatpush1.msra.mxu0 0.0
    %152 = vmatprep.subr.mxu0 0.0
    %153 = vmatpush1.msra.mxu0 0.0
    %154 = vmatprep.subr.mxu0 0.0
    %155 = vmatpush1.msra.mxu0 0.0
    %156 = vmatprep.subr.mxu0 0.0
    %157 = vmatpush1.msra.mxu0 0.0
    %158 = vmatprep.subr.mxu0 0.0
    %159 = vmatpush1.msra.mxu0 0.0
    %160 = vmatprep.subr.mxu0 0.0
    %161 = vmatpush1.msra.mxu0 0.0
    %162 = vmatprep.subr.mxu0 0.0
    %163 = vmatpush1.msra.mxu0 0.0
    %164 = vmatprep.subr.mxu0 0.0
    %165 = vmatpush1.msra.mxu0 0.0
    %166 = vmatprep.subr.mxu0 0.0
    %167 = vmatpush1.msra.mxu0 0.0
    %168 = vmatprep.subr.mxu0 0.0
    %169 = vmatpush1.msra.mxu0 0.0
    %170 = vmatprep.subr.mxu0 0.0
    %171 = vmatpush1.msra.mxu0 0.0
    %172 = vmatprep.subr.mxu0 0.0
    %173 = vmatpush1.msra.mxu0 0.0
    %174 = vmatprep.subr.mxu0 0.0
    %175 = vmatpush1.msra.mxu0 0.0
    %176 = vmatprep.subr.mxu0 0.0
    %177 = vmatpush1.msra.mxu0 0.0
    %178 = vmatprep.subr.mxu0 0.0
    %179 = vmatpush1.msra.mxu0 0.0
    %180 = vmatprep.subr.mxu0 0.0
    %181 = vmatpush1.msra.mxu0 0.0
    %182 = vmatprep.subr.mxu0 0.0
    %183 = vmatpush1.msra.mxu0 0.0
    %184 = vmatprep.mubr.f32.mxu0 0.0
    %185 = vmatmul.mubr.f32.gmra.mrb[0].mxu0 %v115
    %v186 = vpop.f32.mrb[0].mxu0
    %v187 = vadd.f32 %v111, %v186
    %v188 = vpop.f32.mrb[0].mxu0
    %189 = vmatprep.mubr.f32.mxu0 0.0
    %190 = vmatmul.mubr.f32.gmra.mrb[0].mxu0 %v118
    %v191 = vpop.f32.mrb[0].mxu0
    %v192 = vadd.f32 %v111, %v191
    %v193 = vpop.f32.mrb[0].mxu0
    %194 = vdwg.mxu0
    %195 = vst.msk [vmem:[%s8] sm:$0xff] %vm113, %v187
    %196 = vst.msk [vmem:[%s8 + $0x8] sm:$0xff] %vm113, %v192
    %v197 = vld [vmem:[#allocation3] sm:$0xff]
    %v198 = vld [vmem:[#allocation3 + $0x8] sm:$0xff]
    %v199 = vld [vmem:[#allocation3 + $0x10] sm:$0xff]
    %v200 = vld [vmem:[#allocation3 + $0x18] sm:$0xff]
    %201 = vmatprep.subr.mxu0 0.0
    %202 = vmatpush1.msra.mxu0 %v197
    %203 = vmatprep.subr.mxu0 0.0
    %204 = vmatpush1.msra.mxu0 %v198
    %205 = vmatprep.subr.mxu0 0.0
    %206 = vmatpush1.msra.mxu0 %v199
    %207 = vmatprep.subr.mxu0 0.0
    %208 = vmatpush1.msra.mxu0 %v200
    %209 = vmatprep.subr.mxu0 0.0
    %210 = vmatpush1.msra.mxu0 0.0
    %211 = vmatprep.subr.mxu0 0.0
    %212 = vmatpush1.msra.mxu0 0.0
    %213 = vmatprep.subr.mxu0 0.0
    %214 = vmatpush1.msra.mxu0 0.0
    %215 = vmatprep.subr.mxu0 0.0
    %216 = vmatpush1.msra.mxu0 0.0
    %217 = vmatprep.subr.mxu0 0.0
    %218 = vmatpush1.msra.mxu0 0.0
    %219 = vmatprep.subr.mxu0 0.0
    %220 = vmatpush1.msra.mxu0 0.0
    %221 = vmatprep.subr.mxu0 0.0
    %222 = vmatpush1.msra.mxu0 0.0
    %223 = vmatprep.subr.mxu0 0.0
    %224 = vmatpush1.msra.mxu0 0.0
    %225 = vmatprep.subr.mxu0 0.0
    %226 = vmatpush1.msra.mxu0 0.0
    %227 = vmatprep.subr.mxu0 0.0
    %228 = vmatpush1.msra.mxu0 0.0
    %229 = vmatprep.subr.mxu0 0.0
    %230 = vmatpush1.msra.mxu0 0.0
    %231 = vmatprep.subr.mxu0 0.0
    %232 = vmatpush1.msra.mxu0 0.0
    %233 = vmatprep.subr.mxu0 0.0
    %234 = vmatpush1.msra.mxu0 0.0
    %235 = vmatprep.subr.mxu0 0.0
    %236 = vmatpush1.msra.mxu0 0.0
    %237 = vmatprep.subr.mxu0 0.0
    %238 = vmatpush1.msra.mxu0 0.0
    %239 = vmatprep.subr.mxu0 0.0
    %240 = vmatpush1.msra.mxu0 0.0
    %241 = vmatprep.subr.mxu0 0.0
    %242 = vmatpush1.msra.mxu0 0.0
    %243 = vmatprep.subr.mxu0 0.0
    %244 = vmatpush1.msra.mxu0 0.0
    %245 = vmatprep.subr.mxu0 0.0
    %246 = vmatpush1.msra.mxu0 0.0
    %247 = vmatprep.subr.mxu0 0.0
    %248 = vmatpush1.msra.mxu0 0.0
    %249 = vmatprep.subr.mxu0 0.0
    %250 = vmatpush1.msra.mxu0 0.0
    %251 = vmatprep.subr.mxu0 0.0
    %252 = vmatpush1.msra.mxu0 0.0
    %253 = vmatprep.subr.mxu0 0.0
    %254 = vmatpush1.msra.mxu0 0.0
    %255 = vmatprep.subr.mxu0 0.0
    %256 = vmatpush1.msra.mxu0 0.0
    %257 = vmatprep.subr.mxu0 0.0
    %258 = vmatpush1.msra.mxu0 0.0
    %259 = vmatprep.subr.mxu0 0.0
    %260 = vmatpush1.msra.mxu0 0.0
    %261 = vmatprep.subr.mxu0 0.0
    %262 = vmatpush1.msra.mxu0 0.0
    %263 = vmatprep.subr.mxu0 0.0
    %264 = vmatpush1.msra.mxu0 0.0
    %265 = vmatprep.mubr.f32.mxu0 0.0
    %266 = vmatmul.mubr.f32.gmra.mrb[0].mxu0 %v115
    %v267 = vpop.f32.mrb[0].mxu0
    %v268 = vadd.f32 0.0, %v267
    %v269 = vpop.f32.mrb[0].mxu0
    %270 = vmatprep.mubr.f32.mxu0 0.0
    %271 = vmatmul.mubr.f32.gmra.mrb[0].mxu0 %v118
    %v272 = vpop.f32.mrb[0].mxu0
    %v273 = vadd.f32 0.0, %v272
    %v274 = vpop.f32.mrb[0].mxu0
    %275 = vdwg.mxu0
    %276 = vst.msk [vmem:[%s9] sm:$0xff] %vm113, %v268
    %277 = vst.msk [vmem:[%s9 + $0x8] sm:$0xff] %vm113, %v273
    %v278 = vld [vmem:[%s6] sm:$0xff]
    %v279 = vld [vmem:[%s6 + $0x8] sm:$0xff]
    %v280 = vld [vmem:[%s6 + $0x10] sm:$0xff]
    %v281 = vld [vmem:[%s6 + $0x18] sm:$0xff]
    %v282 = vld [vmem:[%s7] sm:$0x1]
    %v284 = vlaneseq
    %v285 = vshrl.u32 %v284, 7
    %v286 = vsub.s32 0, %v285
    %v287 = vrot.slane %v282, %v286
    %289 = vmatprep.subr.mxu0 0.0
    %290 = vmatpush1.msra.mxu0 %v278
    %291 = vmatprep.subr.mxu0 0.0
    %292 = vmatpush1.msra.mxu0 %v279
    %293 = vmatprep.subr.mxu0 0.0
    %294 = vmatpush1.msra.mxu0 %v280
    %295 = vmatprep.subr.mxu0 0.0
    %296 = vmatpush1.msra.mxu0 %v281
    %297 = vmatprep.subr.mxu0 0.0
    %298 = vmatpush1.msra.mxu0 0.0
    %299 = vmatprep.subr.mxu0 0.0
    %300 = vmatpush1.msra.mxu0 0.0
    %301 = vmatprep.subr.mxu0 0.0
    %302 = vmatpush1.msra.mxu0 0.0
    %303 = vmatprep.subr.mxu0 0.0
    %304 = vmatpush1.msra.mxu0 0.0
    %305 = vmatprep.subr.mxu0 0.0
    %306 = vmatpush1.msra.mxu0 0.0
    %307 = vmatprep.subr.mxu0 0.0
    %308 = vmatpush1.msra.mxu0 0.0
    %309 = vmatprep.subr.mxu0 0.0
    %310 = vmatpush1.msra.mxu0 0.0
    %311 = vmatprep.subr.mxu0 0.0
    %312 = vmatpush1.msra.mxu0 0.0
    %313 = vmatprep.subr.mxu0 0.0
    %314 = vmatpush1.msra.mxu0 0.0
    %315 = vmatprep.subr.mxu0 0.0
    %316 = vmatpush1.msra.mxu0 0.0
    %317 = vmatprep.subr.mxu0 0.0
    %318 = vmatpush1.msra.mxu0 0.0
    %319 = vmatprep.subr.mxu0 0.0
    %320 = vmatpush1.msra.mxu0 0.0
    %321 = vmatprep.subr.mxu0 0.0
    %322 = vmatpush1.msra.mxu0 0.0
    %323 = vmatprep.subr.mxu0 0.0
    %324 = vmatpush1.msra.mxu0 0.0
    %325 = vmatprep.subr.mxu0 0.0
    %326 = vmatpush1.msra.mxu0 0.0
    %327 = vmatprep.subr.mxu0 0.0
    %328 = vmatpush1.msra.mxu0 0.0
    %329 = vmatprep.subr.mxu0 0.0
    %330 = vmatpush1.msra.mxu0 0.0
    %331 = vmatprep.subr.mxu0 0.0
    %332 = vmatpush1.msra.mxu0 0.0
    %333 = vmatprep.subr.mxu0 0.0
    %334 = vmatpush1.msra.mxu0 0.0
    %335 = vmatprep.subr.mxu0 0.0
    %336 = vmatpush1.msra.mxu0 0.0
    %337 = vmatprep.subr.mxu0 0.0
    %338 = vmatpush1.msra.mxu0 0.0
    %339 = vmatprep.subr.mxu0 0.0
    %340 = vmatpush1.msra.mxu0 0.0
    %341 = vmatprep.subr.mxu0 0.0
    %342 = vmatpush1.msra.mxu0 0.0
    %343 = vmatprep.subr.mxu0 0.0
    %344 = vmatpush1.msra.mxu0 0.0
    %345 = vmatprep.subr.mxu0 0.0
    %346 = vmatpush1.msra.mxu0 0.0
    %347 = vmatprep.subr.mxu0 0.0
    %348 = vmatpush1.msra.mxu0 0.0
    %349 = vmatprep.subr.mxu0 0.0
    %350 = vmatpush1.msra.mxu0 0.0
    %351 = vmatprep.subr.mxu0 0.0
    %352 = vmatpush1.msra.mxu0 0.0
    %353 = vmatprep.mubr.f32.mxu0 0.0
    %354 = vmatmul.mubr.f32.gmra.mrb[0].mxu0 %v115
    %v355 = vpop.f32.mrb[0].mxu0
    %v356 = vadd.f32 %v287, %v355
    %v357 = vpop.f32.mrb[0].mxu0
    %358 = vmatprep.mubr.f32.mxu0 0.0
    %359 = vmatmul.mubr.f32.gmra.mrb[0].mxu0 %v118
    %v360 = vpop.f32.mrb[0].mxu0
    %v361 = vadd.f32 %v287, %v360
    %v362 = vpop.f32.mrb[0].mxu0
    %363 = vdwg.mxu0
    %364 = vst.msk [vmem:[%s10] sm:$0xff] %vm113, %v356
    %365 = vst.msk [vmem:[%s10 + $0x8] sm:$0xff] %vm113, %v361
    // Predicated region
    $region42: #{residual_attention_block.8} parent=1 // pred_check
      _
    $region43: #{residual_attention_block.8} parent=1 // pred_check_branch
      %367 = sbr.rel (0) target = $region45
    $region44: #{residual_attention_block.8} parent=1 // pred_region
      _
    $region45: #{residual_attention_block.8} parent=1 // pred_fallthru
      _
    // Predicated region
    $region46: #{residual_attention_block.8} parent=1 // pred_check
      _
    $region47: #{residual_attention_block.8} parent=1 // pred_check_branch
      %369 = sbr.rel (0) target = $region49
    $region48: #{residual_attention_block.8} parent=1 // pred_region
      _
    $region49: #{residual_attention_block.8} parent=1 // pred_fallthru
      _
    // Predicated region
    $region50: #{residual_attention_block.8} parent=1 // pred_check
      _
    $region51: #{residual_attention_block.8} parent=1 // pred_check_branch
      %371 = sbr.rel (0) target = $region53
    $region52: #{residual_attention_block.8} parent=1 // pred_region
      _
    $region53: #{residual_attention_block.8} parent=1 // pred_fallthru
      _
    // Predicated region
    $region54: #{residual_attention_block.8} parent=1 // pred_check
      _
    $region55: #{residual_attention_block.8} parent=1 // pred_check_branch
      %373 = sbr.rel (0) target = $region57
    $region56: #{residual_attention_block.8} parent=1 // pred_region
      _
    $region57: #{residual_attention_block.8} parent=1 // pred_fallthru
      _
    // Predicated region
    $region58: #{residual_attention_block.8} parent=1 // pred_check
      _
    $region59: #{residual_attention_block.8} parent=1 // pred_check_branch
      %375 = sbr.rel (0) target = $region61
    $region60: #{residual_attention_block.8} parent=1 // pred_region
      _
    $region61: #{residual_attention_block.8} parent=1 // pred_fallthru
      _
    // Predicated region
    $region62: #{residual_attention_block.8} parent=1 // pred_check
      _
    $region63: #{residual_attention_block.8} parent=1 // pred_check_branch
      %377 = sbr.rel (0) target = $region65
    $region64: #{residual_attention_block.8} parent=1 // pred_region
      _
    $region65: #{residual_attention_block.8} parent=1 // pred_fallthru
      _
    %378 = vsyncpa [#allocation4], 1

// kernel: residual_attention_block.11
$region0: #{residual_attention_block.11}
  #allocation0 [shape = 'u32[]', space=smem, size = 0x4, offset = 0x4, fixed_abs, tag = 'smem constant byte address 0x4 - core index']
  #allocation1 [shape = 'u32[144,128]{1,0:T(1,128)}', space=vmem, size = 0x12000, scoped, tag = 'internal scratch']
  #allocation2 [shape = 'f32[16,32]{1,0:T(8,128)}', space=vmem, size = 0x2000, scoped, tag = 'scratch operand']
  %s0 = inlined_call_operand.vmem [shape: f32[16,32], index: 0, kind: input, shape index: {}]
  %s1 = inlined_call_operand.vmem [shape: f32[1,32], index: 1, kind: input, shape index: {}]
  %s2 = inlined_call_operand.vmem [shape: f32[1,32], index: 2, kind: input, shape index: {}]
  %s3 = inlined_call_operand.vmem [shape: f32[32,32], index: 3, kind: input, shape index: {}]
  %s4 = inlined_call_operand.vmem [shape: f32[1,32], index: 4, kind: input, shape index: {}]
  %s5 = inlined_call_operand.vmem [shape: f32[16,32], index: 5, kind: output, shape index: {}]
  %s6 = sld [smem:[#allocation0]]
  $region34: #{residual_attention_block.11} parent=0
    _
  %s8 = ssub.s32 1, %s6
  %s9 = scalar_select 0, %s8, %s6
  // Predicated region
  $region2: #{residual_attention_block.11} parent=0 // pred_check
    _
  $region3: #{residual_attention_block.11} parent=0 // pred_check_branch
    %11 = sbr.rel (0) target = $region5
  $region4: #{residual_attention_block.11} parent=0 // pred_region
    _
  $region5: #{residual_attention_block.11} parent=0 // pred_fallthru
    _
  // Predicated region
  $region6: #{residual_attention_block.11} parent=0 // pred_check
    _
  $region7: #{residual_attention_block.11} parent=0 // pred_check_branch
    %13 = sbr.rel (0) target = $region9
  $region8: #{residual_attention_block.11} parent=0 // pred_region
    _
  $region9: #{residual_attention_block.11} parent=0 // pred_fallthru
    _
  // Predicated region
  $region10: #{residual_attention_block.11} parent=0 // pred_check
    _
  $region11: #{residual_attention_block.11} parent=0 // pred_check_branch
    %15 = sbr.rel (0) target = $region13
  $region12: #{residual_attention_block.11} parent=0 // pred_region
    _
  $region13: #{residual_attention_block.11} parent=0 // pred_fallthru
    _
  // Predicated region
  $region14: #{residual_attention_block.11} parent=0 // pred_check
    _
  $region15: #{residual_attention_block.11} parent=0 // pred_check_branch
    %17 = sbr.rel (0) target = $region17
  $region16: #{residual_attention_block.11} parent=0 // pred_region
    _
  $region17: #{residual_attention_block.11} parent=0 // pred_fallthru
    _
  // Predicated region
  $region18: #{residual_attention_block.11} parent=0 // pred_check
    _
  $region19: #{residual_attention_block.11} parent=0 // pred_check_branch
    %19 = sbr.rel (0) target = $region21
  $region20: #{residual_attention_block.11} parent=0 // pred_region
    _
  $region21: #{residual_attention_block.11} parent=0 // pred_fallthru
    _
  %p20 = scmp.eq.s32.totalorder 0, 0
  // Predicated region
  $region22: #{residual_attention_block.11} parent=0 // pred_check
    %p21 = pneg %p20
  $region23: #{residual_attention_block.11} parent=0 // pred_check_branch
    %23 = sbr.rel (%p21) target = $region25
  $region24: #{residual_attention_block.11} parent=0 // pred_region
    %v24 = vld [vmem:[%s0] sm:$0xff]
    %v25 = vld [vmem:[%s0 + $0x8] sm:$0xff]
    %vm26 = vcmask 261120
    %v27 = vsel %vm26, %v24, 0.0
    %28 = vadd.xlane.f32.xlu0 %v27
    %v29 = vpop.xlane.xlu0 %28
    %v30 = vsel %vm26, %v25, 0.0
    %31 = vadd.xlane.f32.xlu0 %v30
    %v32 = vpop.xlane.xlu0 %31
    %v33 = vrcp.pop 32.0
    %v34 = vmul.f32 %v29, %v33
    %v35 = vmul.f32 %v32, %v33
    %v36 = vsub.f32 %v24, %v34
    %v37 = vsub.f32 %v25, %v35
    %v38 = vmul.f32 %v36, %v36
    %v39 = vmul.f32 %v37, %v37
    %v40 = vsel %vm26, %v38, 0.0
    %41 = vadd.xlane.f32.xlu0 %v40
    %v42 = vpop.xlane.xlu0 %41
    %v43 = vsel %vm26, %v39, 0.0
    %44 = vadd.xlane.f32.xlu0 %v43
    %v45 = vpop.xlane.xlu0 %44
    %v46 = vmul.f32 %v42, %v33
    %v47 = vmul.f32 %v45, %v33
    %v48 = vadd.f32 %v46, 1e-05
    %v49 = vadd.f32 %v47, 1e-05
    %v50 = vrsqrt.pop %v48
    %v51 = vrsqrt.pop %v49
    %v52 = vmul.f32 %v36, %v50
    %v53 = vmul.f32 %v37, %v51
    %v54 = vld [vmem:[%s1] sm:$0x1]
    %v56 = vlaneseq
    %v57 = vshrl.u32 %v56, 7
    %v58 = vsub.s32 0, %v57
    %v59 = vrot.slane %v54, %v58
    %v61 = vmul.f32 %v52, %v59
    %v62 = vmul.f32 %v53, %v59
    %v63 = vld [vmem:[%s2] sm:$0x1]
    %v65 = vlaneseq
    %v66 = vshrl.u32 %v65, 7
    %v67 = vsub.s32 0, %v66
    %v68 = vrot.slane %v63, %v67
    %v70 = vadd.f32 %v61, %v68
    %v71 = vadd.f32 %v62, %v68
    %72 = vst.msk [vmem:[#allocation2] sm:$0xff] %vm26, %v70
    %73 = vst.msk [vmem:[#allocation2 + $0x8] sm:$0xff] %vm26, %v71
  $region25: #{residual_attention_block.11} parent=0 // pred_fallthru
    _
  %v74 = vld [vmem:[#allocation2] sm:$0xff]
  %v75 = vld [vmem:[#allocation2 + $0x8] sm:$0xff]
  %v76 = vld [vmem:[%s3] sm:$0xff]
  %v77 = vld [vmem:[%s3 + $0x8] sm:$0xff]
  %v78 = vld [vmem:[%s3 + $0x10] sm:$0xff]
  %v79 = vld [vmem:[%s3 + $0x18] sm:$0xff]
  %v80 = vld [vmem:[%s4] sm:$0x1]
  %v82 = vlaneseq
  %v83 = vshrl.u32 %v82, 7
  %v84 = vsub.s32 0, %v83
  %v85 = vrot.slane %v80, %v84
  %vm87 = vcmask 261120
  %v89 = vsel %vm87, %v74, 0
  %v92 = vsel %vm87, %v75, 0
  %94 = vmatprep.subr.mxu0 0.0
  %95 = vmatpush1.msra.mxu0 %v76
  %96 = vmatprep.subr.mxu0 0.0
  %97 = vmatpush1.msra.mxu0 %v77
  %98 = vmatprep.subr.mxu0 0.0
  %99 = vmatpush1.msra.mxu0 %v78
  %100 = vmatprep.subr.mxu0 0.0
  %101 = vmatpush1.msra.mxu0 %v79
  %102 = vmatprep.subr.mxu0 0.0
  %103 = vmatpush1.msra.mxu0 0.0
  %104 = vmatprep.subr.mxu0 0.0
  %105 = vmatpush1.msra.mxu0 0.0
  %106 = vmatprep.subr.mxu0 0.0
  %107 = vmatpush1.msra.mxu0 0.0
  %108 = vmatprep.subr.mxu0 0.0
  %109 = vmatpush1.msra.mxu0 0.0
  %110 = vmatprep.subr.mxu0 0.0
  %111 = vmatpush1.msra.mxu0 0.0
  %112 = vmatprep.subr.mxu0 0.0
  %113 = vmatpush1.msra.mxu0 0.0
  %114 = vmatprep.subr.mxu0 0.0
  %115 = vmatpush1.msra.mxu0 0.0
  %116 = vmatprep.subr.mxu0 0.0
  %117 = vmatpush1.msra.mxu0 0.0
  %118 = vmatprep.subr.mxu0 0.0
  %119 = vmatpush1.msra.mxu0 0.0
  %120 = vmatprep.subr.mxu0 0.0
  %121 = vmatpush1.msra.mxu0 0.0
  %122 = vmatprep.subr.mxu0 0.0
  %123 = vmatpush1.msra.mxu0 0.0
  %124 = vmatprep.subr.mxu0 0.0
  %125 = vmatpush1.msra.mxu0 0.0
  %126 = vmatprep.subr.mxu0 0.0
  %127 = vmatpush1.msra.mxu0 0.0
  %128 = vmatprep.subr.mxu0 0.0
  %129 = vmatpush1.msra.mxu0 0.0
  %130 = vmatprep.subr.mxu0 0.0
  %131 = vmatpush1.msra.mxu0 0.0
  %132 = vmatprep.subr.mxu0 0.0
  %133 = vmatpush1.msra.mxu0 0.0
  %134 = vmatprep.subr.mxu0 0.0
  %135 = vmatpush1.msra.mxu0 0.0
  %136 = vmatprep.subr.mxu0 0.0
  %137 = vmatpush1.msra.mxu0 0.0
  %138 = vmatprep.subr.mxu0 0.0
  %139 = vmatpush1.msra.mxu0 0.0
  %140 = vmatprep.subr.mxu0 0.0
  %141 = vmatpush1.msra.mxu0 0.0
  %142 = vmatprep.subr.mxu0 0.0
  %143 = vmatpush1.msra.mxu0 0.0
  %144 = vmatprep.subr.mxu0 0.0
  %145 = vmatpush1.msra.mxu0 0.0
  %146 = vmatprep.subr.mxu0 0.0
  %147 = vmatpush1.msra.mxu0 0.0
  %148 = vmatprep.subr.mxu0 0.0
  %149 = vmatpush1.msra.mxu0 0.0
  %150 = vmatprep.subr.mxu0 0.0
  %151 = vmatpush1.msra.mxu0 0.0
  %152 = vmatprep.subr.mxu0 0.0
  %153 = vmatpush1.msra.mxu0 0.0
  %154 = vmatprep.subr.mxu0 0.0
  %155 = vmatpush1.msra.mxu0 0.0
  %156 = vmatprep.subr.mxu0 0.0
  %157 = vmatpush1.msra.mxu0 0.0
  %158 = vmatprep.mubr.f32.mxu0 0.0
  %159 = vmatmul.mubr.f32.gmra.mrb[0].mxu0 %v89
  %v160 = vpop.f32.mrb[0].mxu0
  %v161 = vadd.f32 %v85, %v160
  %v162 = vpop.f32.mrb[0].mxu0
  %163 = vmatprep.mubr.f32.mxu0 0.0
  %164 = vmatmul.mubr.f32.gmra.mrb[0].mxu0 %v92
  %v165 = vpop.f32.mrb[0].mxu0
  %v166 = vadd.f32 %v85, %v165
  %v167 = vpop.f32.mrb[0].mxu0
  %168 = vdwg.mxu0
  %169 = vst.msk [vmem:[%s5] sm:$0xff] %vm87, %v161
  %170 = vst.msk [vmem:[%s5 + $0x8] sm:$0xff] %vm87, %v166
  // Predicated region
  $region26: #{residual_attention_block.11} parent=0 // pred_check
    _
  $region27: #{residual_attention_block.11} parent=0 // pred_check_branch
    %172 = sbr.rel (0) target = $region29
  $region28: #{residual_attention_block.11} parent=0 // pred_region
    _
  $region29: #{residual_attention_block.11} parent=0 // pred_fallthru
    _
  // Predicated region
  $region30: #{residual_attention_block.11} parent=0 // pred_check
    _
  $region31: #{residual_attention_block.11} parent=0 // pred_check_branch
    %174 = sbr.rel (0) target = $region33
  $region32: #{residual_attention_block.11} parent=0 // pred_region
    _
  $region33: #{residual_attention_block.11} parent=0 // pred_fallthru
    _

// kernel: residual_attention_block.9
$region0: #{residual_attention_block.9}
  #allocation0 [shape = 'u32[]', space=smem, size = 0x4, offset = 0x4, fixed_abs, tag = 'smem constant byte address 0x4 - core index']
  #allocation1 [shape = 'u32[144,128]{1,0:T(1,128)}', space=vmem, size = 0x12000, scoped, tag = 'internal scratch']
  #allocation2 [shape = 'f32[8,4]{1,0:T(8,128)}', space=vmem, size = 0x1000, scoped, tag = 'scratch operand']
  #allocation3 [shape = 'f32[8,4]{1,0:T(8,128)}', space=vmem, size = 0x1000, scoped, tag = 'scratch operand']
  #allocation4 [shape = 'f32[8,32]{1,0:T(8,128)}', space=vmem, size = 0x1000, scoped, tag = 'scratch operand']
  %s0 = inlined_call_operand.vmem [shape: f32[2,8,32], index: 0, kind: input, shape index: {}]
  %s1 = inlined_call_operand.vmem [shape: f32[2,8,32], index: 1, kind: input, shape index: {}]
  %s2 = inlined_call_operand.vmem [shape: f32[2,8,32], index: 2, kind: input, shape index: {}]
  %s3 = inlined_call_operand.vmem [shape: f32[2,8,32], index: 3, kind: output, shape index: {}]
  %s4 = sld [smem:[#allocation0]]
  $region57: #{residual_attention_block.9} parent=0
    _
  %s6 = ssub.s32 1, %s4
  %s7 = scalar_select 0, %s6, %s4
  loop: start=0, step=1, limit=4
  $region2: #{residual_attention_block.9} parent=0 // loop_pre_header
    _
  $region3: #{residual_attention_block.9} parent=0 // loop_header
    %s9 = sphi 0, %s13
    %p10 = scmp.ge.s32.totalorder %s9, 4
    %s16 = sphi 0, %s42
    %s17 = sphi 0, %s38
    %s18 = sphi 0, %s34
    %s19 = sphi 0, %s30
    %s20 = sphi 0, %s16
    %s21 = sphi 0, %s17
    %s22 = sphi 0, %s18
    %s23 = sphi 0, %s19
    %s24 = sphi 0, %s20
    %s25 = sphi 0, %s21
    %s26 = sphi 0, %s22
    %s27 = sphi 0, %s23
    %s49 = sphi 0, %s51
    %s52 = sphi 0, %s49
    %s53 = sphi 0, %s52
    %s69 = sphi 0, %s53
    %s79 = sphi 0, %s81
    %s82 = sphi 0, %s79
    %s83 = sphi 0, %s82
    %s99 = sphi 0, %s83
    %s109 = sphi 0, %s111
    %s112 = sphi 0, %s109
    %s113 = sphi 0, %s112
    %s129 = sphi 0, %s113
    %s139 = sphi 0, %s141
    %s142 = sphi 0, %s139
    %s143 = sphi 0, %s142
    %s159 = sphi 0, %s143
  $region4: #{residual_attention_block.9} parent=0 // loop_header_branch
    %12 = sbr.rel (%p10) target = $region8
  $region5: #{residual_attention_block.9} parent=0 // loop_body
    %s14 = ssub.s32 %s9, 1
    %s15 = ssub.s32 %s9, 2
    %s28 = sadd.s32 1, %s19
    %p29 = scmp.ge.s32.totalorder %s28, 1
    %s30 = scalar_select %p29, 0, %s28
    %s31 = sadd.s32 1, %s18
    %s32 = scalar_select %p29, %s31, %s18
    %p33 = scmp.ge.s32.totalorder %s32, 1
    %s34 = scalar_select %p33, 0, %s32
    %s35 = sadd.s32 1, %s17
    %s36 = scalar_select %p33, %s35, %s17
    %p37 = scmp.ge.s32.totalorder %s36, 1
    %s38 = scalar_select %p37, 0, %s36
    %s39 = sadd.s32 1, %s16
    %s40 = scalar_select %p37, %s39, %s16
    %p41 = scmp.ge.s32.totalorder %s40, 2
    %s42 = scalar_select %p41, 0, %s40
    %s43 = ssub.s32 %s16, %s42
    %s44 = ssub.s32 %s18, %s34
    %s45 = sor.u32 %s43, %s44
    %s46 = ssub.s32 %s17, %s38
    %s47 = sor.u32 %s45, %s46
    %p48 = scmp.eq.s32.totalorder %s47, 0
    %s50 = sadd.s32 %s49, 1
    %s51 = scalar_select %p48, %s49, %s50
    %p54 = pneg %p48
    %p55 = scmp.eq.s32.totalorder %s9, 1
    %p56 = por %p54, %p55
    %p57 = scmp.ne.s32.totalorder %s49, %s52
    %p58 = scmp.eq.s32.totalorder %s9, 0
    %p59 = por %p57, %p58
    %p60 = scmp.ne.s32.totalorder %s49, %s52
    %p61 = scmp.eq.s32.totalorder %s14, 1
    %p62 = por %p60, %p61
    %p63 = scmp.ne.s32.totalorder %s52, %s53
    %p64 = scmp.eq.s32.totalorder %s14, 0
    %p65 = por %p63, %p64
    %p66 = scmp.ne.s32.totalorder %s52, %s53
    %p67 = scmp.eq.s32.totalorder %s15, 1
    %p68 = por %p66, %p67
    %p70 = scmp.ne.s32.totalorder %s53, %s69
    %p71 = scmp.eq.s32.totalorder %s15, 0
    %p72 = por %p70, %p71
    %s73 = ssub.s32 %s16, %s42
    %s74 = ssub.s32 %s19, %s30
    %s75 = sor.u32 %s73, %s74
    %s76 = ssub.s32 %s17, %s38
    %s77 = sor.u32 %s75, %s76
    %p78 = scmp.eq.s32.totalorder %s77, 0
    %s80 = sadd.s32 %s79, 1
    %s81 = scalar_select %p78, %s79, %s80
    %p84 = pneg %p78
    %p85 = scmp.eq.s32.totalorder %s9, 1
    %p86 = por %p84, %p85
    %p87 = scmp.ne.s32.totalorder %s79, %s82
    %p88 = scmp.eq.s32.totalorder %s9, 0
    %p89 = por %p87, %p88
    %p90 = scmp.ne.s32.totalorder %s79, %s82
    %p91 = scmp.eq.s32.totalorder %s14, 1
    %p92 = por %p90, %p91
    %p93 = scmp.ne.s32.totalorder %s82, %s83
    %p94 = scmp.eq.s32.totalorder %s14, 0
    %p95 = por %p93, %p94
    %p96 = scmp.ne.s32.totalorder %s82, %s83
    %p97 = scmp.eq.s32.totalorder %s15, 1
    %p98 = por %p96, %p97
    %p100 = scmp.ne.s32.totalorder %s83, %s99
    %p101 = scmp.eq.s32.totalorder %s15, 0
    %p102 = por %p100, %p101
    %s103 = ssub.s32 %s16, %s42
    %s104 = ssub.s32 %s19, %s30
    %s105 = sor.u32 %s103, %s104
    %s106 = ssub.s32 %s17, %s38
    %s107 = sor.u32 %s105, %s106
    %p108 = scmp.eq.s32.totalorder %s107, 0
    %s110 = sadd.s32 %s109, 1
    %s111 = scalar_select %p108, %s109, %s110
    %p114 = pneg %p108
    %p115 = scmp.eq.s32.totalorder %s9, 1
    %p116 = por %p114, %p115
    %p117 = scmp.ne.s32.totalorder %s109, %s112
    %p118 = scmp.eq.s32.totalorder %s9, 0
    %p119 = por %p117, %p118
    %p120 = scmp.ne.s32.totalorder %s109, %s112
    %p121 = scmp.eq.s32.totalorder %s14, 1
    %p122 = por %p120, %p121
    %p123 = scmp.ne.s32.totalorder %s112, %s113
    %p124 = scmp.eq.s32.totalorder %s14, 0
    %p125 = por %p123, %p124
    %p126 = scmp.ne.s32.totalorder %s112, %s113
    %p127 = scmp.eq.s32.totalorder %s15, 1
    %p128 = por %p126, %p127
    %p130 = scmp.ne.s32.totalorder %s113, %s129
    %p131 = scmp.eq.s32.totalorder %s15, 0
    %p132 = por %p130, %p131
    %s133 = ssub.s32 %s16, %s42
    %s134 = ssub.s32 %s18, %s34
    %s135 = sor.u32 %s133, %s134
    %s136 = ssub.s32 %s17, %s38
    %s137 = sor.u32 %s135, %s136
    %p138 = scmp.eq.s32.totalorder %s137, 0
    %s140 = sadd.s32 %s139, 1
    %s141 = scalar_select %p138, %s139, %s140
    %p144 = pneg %p138
    %p145 = scmp.eq.s32.totalorder %s9, 1
    %p146 = por %p144, %p145
    %p147 = scmp.ne.s32.totalorder %s139, %s142
    %p148 = scmp.eq.s32.totalorder %s9, 0
    %p149 = por %p147, %p148
    %p150 = scmp.ne.s32.totalorder %s139, %s142
    %p151 = scmp.eq.s32.totalorder %s14, 1
    %p152 = por %p150, %p151
    %p153 = scmp.ne.s32.totalorder %s142, %s143
    %p154 = scmp.eq.s32.totalorder %s14, 0
    %p155 = por %p153, %p154
    %p156 = scmp.ne.s32.totalorder %s142, %s143
    %p157 = scmp.eq.s32.totalorder %s15, 1
    %p158 = por %p156, %p157
    %p160 = scmp.ne.s32.totalorder %s143, %s159
    %p161 = scmp.eq.s32.totalorder %s15, 0
    %p162 = por %p160, %p161
    %p163 = scmp.le.s32.totalorder 1, %s9
    %p164 = scmp.lt.s32.totalorder %s9, 3
    %p165 = pnand %p163, %p164
    %p166 = pneg %p165
    // Predicated region
    $region9: #{residual_attention_block.9} parent=5 // pred_check
      _
    $region10: #{residual_attention_block.9} parent=5 // pred_check_branch
      %168 = sbr.rel (%p165) target = $region12
    $region11: #{residual_attention_block.9} parent=5 // pred_region
      %s169 = ssub.s32 %s9, 1
    $region12: #{residual_attention_block.9} parent=5 // pred_fallthru
      _
    %p170 = scmp.lt.s32.totalorder %s9, 2
    // Predicated region
    $region13: #{residual_attention_block.9} parent=5 // pred_check
      %p171 = pneg %p170
    $region14: #{residual_attention_block.9} parent=5 // pred_check_branch
      %173 = sbr.rel (%p171) target = $region16
    $region15: #{residual_attention_block.9} parent=5 // pred_region
      // Predicated region
      $region17: #{residual_attention_block.9} parent=15 // pred_check
        %p174 = pneg %p59
      $region18: #{residual_attention_block.9} parent=15 // pred_check_branch
        %176 = sbr.rel (%p174) target = $region20
      $region19: #{residual_attention_block.9} parent=15 // pred_region
        %p177 = scmp.lt.s32.totalorder %s16, 1
        %s178 = scalar_select %p177, %s16, 1
        %p179 = scmp.lt.s32.totalorder %s18, 0
        %s180 = scalar_select %p179, %s18, 0
        %p181 = scmp.lt.s32.totalorder %s17, 0
        %s182 = scalar_select %p181, %s17, 0
        %s183 = sadd.s32 %s182, %s180
        %s184 = sadd.s32 %s183, %s178
        %s185 = smul.addr %s184, 8
        %s186 = scalar_lea.vmem %s0, %s185
      $region20: #{residual_attention_block.9} parent=15 // pred_fallthru
        _
      // Predicated region
      $region21: #{residual_attention_block.9} parent=15 // pred_check
        %p187 = pneg %p89
      $region22: #{residual_attention_block.9} parent=15 // pred_check_branch
        %189 = sbr.rel (%p187) target = $region24
      $region23: #{residual_attention_block.9} parent=15 // pred_region
        %p190 = scmp.lt.s32.totalorder %s16, 1
        %s191 = scalar_select %p190, %s16, 1
        %p192 = scmp.lt.s32.totalorder %s19, 0
        %s193 = scalar_select %p192, %s19, 0
        %p194 = scmp.lt.s32.totalorder %s17, 0
        %s195 = scalar_select %p194, %s17, 0
        %s196 = sadd.s32 %s195, %s193
        %s197 = sadd.s32 %s196, %s191
        %s198 = smul.addr %s197, 8
        %s199 = scalar_lea.vmem %s1, %s198
      $region24: #{residual_attention_block.9} parent=15 // pred_fallthru
        _
      // Predicated region
      $region25: #{residual_attention_block.9} parent=15 // pred_check
        %p200 = pneg %p119
      $region26: #{residual_attention_block.9} parent=15 // pred_check_branch
        %202 = sbr.rel (%p200) target = $region28
      $region27: #{residual_attention_block.9} parent=15 // pred_region
        %p203 = scmp.lt.s32.totalorder %s16, 1
        %s204 = scalar_select %p203, %s16, 1
        %p205 = scmp.lt.s32.totalorder %s19, 0
        %s206 = scalar_select %p205, %s19, 0
        %p207 = scmp.lt.s32.totalorder %s17, 0
        %s208 = scalar_select %p207, %s17, 0
        %s209 = sadd.s32 %s208, %s206
        %s210 = sadd.s32 %s209, %s204
        %s211 = smul.addr %s210, 8
        %s212 = scalar_lea.vmem %s2, %s211
      $region28: #{residual_attention_block.9} parent=15 // pred_fallthru
        _
    $region16: #{residual_attention_block.9} parent=5 // pred_fallthru
      _
    %p213 = scmp.le.s32.totalorder 1, %s9
    %p214 = scmp.lt.s32.totalorder %s9, 3
    %p215 = pnand %p213, %p214
    %p216 = pneg %p215
    // Predicated region
    $region29: #{residual_attention_block.9} parent=5 // pred_check
      _
    $region30: #{residual_attention_block.9} parent=5 // pred_check_branch
      %218 = sbr.rel (%p215) target = $region32
    $region31: #{residual_attention_block.9} parent=5 // pred_region
      %s219 = ssub.s32 %s9, 1
      %p220 = scmp.lt.s32.totalorder %s20, 1
      %s221 = scalar_select %p220, %s20, 1
      %p222 = scmp.lt.s32.totalorder %s22, 0
      %s223 = scalar_select %p222, %s22, 0
      %p224 = scmp.lt.s32.totalorder %s21, 0
      %s225 = scalar_select %p224, %s21, 0
      %s226 = sadd.s32 %s225, %s223
      %s227 = sadd.s32 %s226, %s221
      %s228 = smul.addr %s227, 8
      %s229 = scalar_lea.vmem %s0, %s228
      %p230 = pneg %p65
      %p231 = pneg %p62
      %p232 = scmp.lt.s32.totalorder %s20, 1
      %s233 = scalar_select %p232, %s20, 1
      %p234 = scmp.lt.s32.totalorder %s23, 0
      %s235 = scalar_select %p234, %s23, 0
      %p236 = scmp.lt.s32.totalorder %s21, 0
      %s237 = scalar_select %p236, %s21, 0
      %s238 = sadd.s32 %s237, %s235
      %s239 = sadd.s32 %s238, %s233
      %s240 = smul.addr %s239, 8
      %s241 = scalar_lea.vmem %s1, %s240
      %p242 = pneg %p95
      %p243 = pneg %p92
      %p244 = scmp.lt.s32.totalorder %s20, 1
      %s245 = scalar_select %p244, %s20, 1
      %p246 = scmp.lt.s32.totalorder %s23, 0
      %s247 = scalar_select %p246, %s23, 0
      %p248 = scmp.lt.s32.totalorder %s21, 0
      %s249 = scalar_select %p248, %s21, 0
      %s250 = sadd.s32 %s249, %s247
      %s251 = sadd.s32 %s250, %s245
      %s252 = smul.addr %s251, 8
      %s253 = scalar_lea.vmem %s2, %s252
      %p254 = pneg %p125
      %p255 = pneg %p122
      %p256 = pneg %p155
      %p257 = pneg %p152
      %p258 = scmp.lt.s32.totalorder %s20, 1
      %s259 = scalar_select %p258, %s20, 1
      %p260 = scmp.lt.s32.totalorder %s22, 0
      %s261 = scalar_select %p260, %s22, 0
      %p262 = scmp.lt.s32.totalorder %s21, 0
      %s263 = scalar_select %p262, %s21, 0
      %s264 = sadd.s32 %s263, %s261
      %s265 = sadd.s32 %s264, %s259
      %s266 = smul.addr %s265, 8
      %s267 = scalar_lea.vmem %s3, %s266
      %p268 = scmp.lt.s32.totalorder %s20, 1
      %s269 = scalar_select %p268, %s20, 1
      %p270 = scmp.lt.s32.totalorder %s22, 0
      %s271 = scalar_select %p270, %s22, 0
      %p272 = scmp.lt.s32.totalorder %s21, 0
      %s273 = scalar_select %p272, %s21, 0
      %s274 = sadd.s32 %s273, %s271
      %s275 = sadd.s32 %s274, %s269
      %s276 = smul.addr %s275, 8
      %s277 = scalar_lea.vmem %s0, %s276
      %p278 = scmp.lt.s32.totalorder %s20, 1
      %s279 = scalar_select %p278, %s20, 1
      %p280 = scmp.lt.s32.totalorder %s23, 0
      %s281 = scalar_select %p280, %s23, 0
      %p282 = scmp.lt.s32.totalorder %s21, 0
      %s283 = scalar_select %p282, %s21, 0
      %s284 = sadd.s32 %s283, %s281
      %s285 = sadd.s32 %s284, %s279
      %s286 = smul.addr %s285, 8
      %s287 = scalar_lea.vmem %s1, %s286
      %p288 = scmp.lt.s32.totalorder %s20, 1
      %s289 = scalar_select %p288, %s20, 1
      %p290 = scmp.lt.s32.totalorder %s23, 0
      %s291 = scalar_select %p290, %s23, 0
      %p292 = scmp.lt.s32.totalorder %s21, 0
      %s293 = scalar_select %p292, %s21, 0
      %s294 = sadd.s32 %s293, %s291
      %s295 = sadd.s32 %s294, %s289
      %s296 = smul.addr %s295, 8
      %s297 = scalar_lea.vmem %s2, %s296
      %p298 = scmp.lt.s32.totalorder %s20, 1
      %s299 = scalar_select %p298, %s20, 1
      %p300 = scmp.lt.s32.totalorder %s22, 0
      %s301 = scalar_select %p300, %s22, 0
      %p302 = scmp.lt.s32.totalorder %s21, 0
      %s303 = scalar_select %p302, %s21, 0
      %s304 = sadd.s32 %s303, %s301
      %s305 = sadd.s32 %s304, %s299
      %s306 = smul.addr %s305, 8
      %s307 = scalar_lea.vmem %s3, %s306
      %p308 = scmp.eq.s32.totalorder %s23, 0
      // Predicated region
      $region33: #{residual_attention_block.9} parent=31 // pred_check
        %p309 = pneg %p308
      $region34: #{residual_attention_block.9} parent=31 // pred_check_branch
        %311 = sbr.rel (%p309) target = $region36
      $region35: #{residual_attention_block.9} parent=31 // pred_region
        %vm312 = vcmask 31744
        %313 = vst.msk [vmem:[#allocation2] sm:$0xff] %vm312, -1e+30
        %314 = vst.msk [vmem:[#allocation3] sm:$0xff] %vm312, 0.0
        %vm315 = vcmask 261120
        %316 = vst.msk [vmem:[#allocation4] sm:$0xff] %vm315, 0.0
      $region36: #{residual_attention_block.9} parent=31 // pred_fallthru
        _
      %s317 = sadd.s32 %s22, 1
      %s318 = smul.u32 %s317, 8
      %s319 = ssub.s32 %s318, 1
      %s320 = smul.u32 %s23, 8
      %p321 = scmp.le.s32.totalorder %s320, %s319
      // Predicated region
      $region37: #{residual_attention_block.9} parent=31 // pred_check
        %p322 = pneg %p321
      $region38: #{residual_attention_block.9} parent=31 // pred_check_branch
        %324 = sbr.rel (%p322) target = $region40
      $region39: #{residual_attention_block.9} parent=31 // pred_region
        %v325 = vld [vmem:[%s277] sm:$0xff]
        %v326 = vld [vmem:[%s287] sm:$0xff]
        %v327 = vld [vmem:[%s297] sm:$0xff]
        %v328 = vlaneseq
        %v329 = vand.u32 %v328, 127
        %v330 = vstv %s320
        %v331 = vadd.s32 %v330, %v329
        %vm332 = vcmp.ge.s32.totalorder %v331, 8
        %s333 = smul.u32 %s22, 8
        %v334 = vlaneseq
        %v335 = vshrl.u32 %v334, 7
        %v336 = vstv %s333
        %v337 = vadd.s32 %v336, %v335
        %vm338 = vcmp.gt.s32.totalorder %v331, %v337
        %vm339 = vmor %vm332, %vm338
        %v340 = vmul.f32 %v325, 0.35355338
        %vm341 = vcmask 64512
        %v343 = vsel %vm341, %v340, 0
        %v346 = vsel %vm341, %v326, 0
        %348 = vmatprep.subr.mxu0 0.0
        %349 = vmatpush1.xpose.msra.mxu0 %v346
        %350 = vmatprep.subr.mxu0 0.0
        %351 = vmatpush1.xpose.msra.mxu0 0.0
        %352 = vmatprep.subr.mxu0 0.0
        %353 = vmatpush1.xpose.msra.mxu0 0.0
        %354 = vmatprep.subr.mxu0 0.0
        %355 = vmatpush1.xpose.msra.mxu0 0.0
        %356 = vmatprep.subr.mxu0 0.0
        %357 = vmatpush1.xpose.msra.mxu0 0.0
        %358 = vmatprep.subr.mxu0 0.0
        %359 = vmatpush1.xpose.msra.mxu0 0.0
        %360 = vmatprep.subr.mxu0 0.0
        %361 = vmatpush1.xpose.msra.mxu0 0.0
        %362 = vmatprep.subr.mxu0 0.0
        %363 = vmatpush1.xpose.msra.mxu0 0.0
        %364 = vmatprep.subr.mxu0 0.0
        %365 = vmatpush1.xpose.msra.mxu0 0.0
        %366 = vmatprep.subr.mxu0 0.0
        %367 = vmatpush1.xpose.msra.mxu0 0.0
        %368 = vmatprep.subr.mxu0 0.0
        %369 = vmatpush1.xpose.msra.mxu0 0.0
        %370 = vmatprep.subr.mxu0 0.0
        %371 = vmatpush1.xpose.msra.mxu0 0.0
        %372 = vmatprep.subr.mxu0 0.0
        %373 = vmatpush1.xpose.msra.mxu0 0.0
        %374 = vmatprep.subr.mxu0 0.0
        %375 = vmatpush1.xpose.msra.mxu0 0.0
        %376 = vmatprep.subr.mxu0 0.0
        %377 = vmatpush1.xpose.msra.mxu0 0.0
        %378 = vmatprep.subr.mxu0 0.0
        %379 = vmatpush1.xpose.msra.mxu0 0.0
        %380 = vmatprep.subr.mxu0 0.0
        %381 = vmatpush1.xpose.msra.mxu0 0.0
        %382 = vmatprep.subr.mxu0 0.0
        %383 = vmatpush1.xpose.msra.mxu0 0.0
        %384 = vmatprep.subr.mxu0 0.0
        %385 = vmatpush1.xpose.msra.mxu0 0.0
        %386 = vmatprep.subr.mxu0 0.0
        %387 = vmatpush1.xpose.msra.mxu0 0.0
        %388 = vmatprep.subr.mxu0 0.0
        %389 = vmatpush1.xpose.msra.mxu0 0.0
        %390 = vmatprep.subr.mxu0 0.0
        %391 = vmatpush1.xpose.msra.mxu0 0.0
        %392 = vmatprep.subr.mxu0 0.0
        %393 = vmatpush1.xpose.msra.mxu0 0.0
        %394 = vmatprep.subr.mxu0 0.0
        %395 = vmatpush1.xpose.msra.mxu0 0.0
        %396 = vmatprep.subr.mxu0 0.0
        %397 = vmatpush1.xpose.msra.mxu0 0.0
        %398 = vmatprep.subr.mxu0 0.0
        %399 = vmatpush1.xpose.msra.mxu0 0.0
        %400 = vmatprep.subr.mxu0 0.0
        %401 = vmatpush1.xpose.msra.mxu0 0.0
        %402 = vmatprep.subr.mxu0 0.0
        %403 = vmatpush1.xpose.msra.mxu0 0.0
        %404 = vmatprep.subr.mxu0 0.0
        %405 = vmatpush1.xpose.msra.mxu0 0.0
        %406 = vmatprep.subr.mxu0 0.0
        %407 = vmatpush1.xpose.msra.mxu0 0.0
        %408 = vmatprep.subr.mxu0 0.0
        %409 = vmatpush1.xpose.msra.mxu0 0.0
        %410 = vmatprep.subr.mxu0 0.0
        %411 = vmatpush1.xpose.msra.mxu0 0.0
        %412 = vmatprep.mubr.f32.mxu0 0.0
        %413 = vmatmul.mubr.f32.gmra.mrb[0].mxu0 %v343
        %v414 = vpop.f32.mrb[0].mxu0
        %v415 = vadd.f32 0.0, %v414
        %v416 = vpop.f32.mrb[0].mxu0
        %417 = vdwg.mxu0
        %v418 = vsel %vm339, -1e+30, %v415
        %v419 = vld [vmem:[#allocation2] sm:$0xff]
        %v420 = vsel %vm341, %v418, -inf
        %421 = vmax.xlane.f32.xlu0 %v420
        %v422 = vpop.xlane.xlu0 %421
        %v423 = vmax.f32 %v419, %v422
        %v424 = vsub.f32 %v419, %v423
        %v425 = vmul.f32 %v424, 1.442695
        %v426 = vpow.pop %v425
        %428 = vset.pattern.permute.xlu0 0
        %429 = vperm.xlu0 %428, %v423
        %v430 = vpop.permute.xlu0 %429
        %v432 = vsub.f32 %v418, %v430
        %v433 = vmul.f32 %v432, 1.442695
        %v434 = vpow.pop %v433
        %v435 = vld [vmem:[#allocation3] sm:$0xff]
        %v436 = vmul.f32 %v426, %v435
        %v437 = vsel %vm341, %v434, 0.0
        %438 = vadd.xlane.f32.xlu0 %v437
        %v439 = vpop.xlane.xlu0 %438
        %v440 = vadd.f32 %v436, %v439
        %vm441 = vcmask 7168
        %442 = vst.msk [vmem:[#allocation3] sm:$0xff] %vm441, %v440
        %v444 = vsel %vm341, %v434, 0
        %446 = vmatprep.subr.mxu0 0.0
        %447 = vmatpush1.msra.mxu0 %v327
        %448 = vmatprep.subr.mxu0 0.0
        %449 = vmatpush1.msra.mxu0 0.0
        %450 = vmatprep.subr.mxu0 0.0
        %451 = vmatpush1.msra.mxu0 0.0
        %452 = vmatprep.subr.mxu0 0.0
        %453 = vmatpush1.msra.mxu0 0.0
        %454 = vmatprep.subr.mxu0 0.0
        %455 = vmatpush1.msra.mxu0 0.0
        %456 = vmatprep.subr.mxu0 0.0
        %457 = vmatpush1.msra.mxu0 0.0
        %458 = vmatprep.subr.mxu0 0.0
        %459 = vmatpush1.msra.mxu0 0.0
        %460 = vmatprep.subr.mxu0 0.0
        %461 = vmatpush1.msra.mxu0 0.0
        %462 = vmatprep.subr.mxu0 0.0
        %463 = vmatpush1.msra.mxu0 0.0
        %464 = vmatprep.subr.mxu0 0.0
        %465 = vmatpush1.msra.mxu0 0.0
        %466 = vmatprep.subr.mxu0 0.0
        %467 = vmatpush1.msra.mxu0 0.0
        %468 = vmatprep.subr.mxu0 0.0
        %469 = vmatpush1.msra.mxu0 0.0
        %470 = vmatprep.subr.mxu0 0.0
        %471 = vmatpush1.msra.mxu0 0.0
        %472 = vmatprep.subr.mxu0 0.0
        %473 = vmatpush1.msra.mxu0 0.0
        %474 = vmatprep.subr.mxu0 0.0
        %475 = vmatpush1.msra.mxu0 0.0
        %476 = vmatprep.subr.mxu0 0.0
        %477 = vmatpush1.msra.mxu0 0.0
        %478 = vmatprep.subr.mxu0 0.0
        %479 = vmatpush1.msra.mxu0 0.0
        %480 = vmatprep.subr.mxu0 0.0
        %481 = vmatpush1.msra.mxu0 0.0
        %482 = vmatprep.subr.mxu0 0.0
        %483 = vmatpush1.msra.mxu0 0.0
        %484 = vmatprep.subr.mxu0 0.0
        %485 = vmatpush1.msra.mxu0 0.0
        %486 = vmatprep.subr.mxu0 0.0
        %487 = vmatpush1.msra.mxu0 0.0
        %488 = vmatprep.subr.mxu0 0.0
        %489 = vmatpush1.msra.mxu0 0.0
        %490 = vmatprep.subr.mxu0 0.0
        %491 = vmatpush1.msra.mxu0 0.0
        %492 = vmatprep.subr.mxu0 0.0
        %493 = vmatpush1.msra.mxu0 0.0
        %494 = vmatprep.subr.mxu0 0.0
        %495 = vmatpush1.msra.mxu0 0.0
        %496 = vmatprep.subr.mxu0 0.0
        %497 = vmatpush1.msra.mxu0 0.0
        %498 = vmatprep.subr.mxu0 0.0
        %499 = vmatpush1.msra.mxu0 0.0
        %500 = vmatprep.subr.mxu0 0.0
        %501 = vmatpush1.msra.mxu0 0.0
        %502 = vmatprep.subr.mxu0 0.0
        %503 = vmatpush1.msra.mxu0 0.0
        %504 = vmatprep.subr.mxu0 0.0
        %505 = vmatpush1.msra.mxu0 0.0
        %506 = vmatprep.subr.mxu0 0.0
        %507 = vmatpush1.msra.mxu0 0.0
        %508 = vmatprep.subr.mxu0 0.0
        %509 = vmatpush1.msra.mxu0 0.0
        %510 = vmatprep.mubr.f32.mxu0 0.0
        %511 = vmatmul.mubr.f32.gmra.mrb[0].mxu0 %v444
        %v512 = vpop.f32.mrb[0].mxu0
        %v513 = vadd.f32 0.0, %v512
        %v514 = vpop.f32.mrb[0].mxu0
        %515 = vdwg.mxu0
        %v516 = vld [vmem:[#allocation4] sm:$0xff]
        %518 = vset.pattern.permute.xlu0 0
        %519 = vperm.xlu0 %518, %v426
        %v520 = vpop.permute.xlu0 %519
        %v522 = vmul.f32 %v520, %v516
        %v523 = vadd.f32 %v522, %v513
        %524 = vst.msk [vmem:[#allocation4] sm:$0xff] %vm341, %v523
        %525 = vst.msk [vmem:[#allocation2] sm:$0xff] %vm441, %v423
        %526 = vrot.lane.b32.xlu0 %v340, 120
        %v527 = vpop.permute.xlu0 %526
        %528 = vrot.lane.b32.xlu0 %v326, 120
        %v529 = vpop.permute.xlu0 %528
        %v530 = vsel %vm341, %v527, 0
        %v532 = vsel %vm341, %v529, 0
        %534 = vmatprep.subr.mxu0 0.0
        %535 = vmatpush1.xpose.msra.mxu0 %v532
        %536 = vmatprep.subr.mxu0 0.0
        %537 = vmatpush1.xpose.msra.mxu0 0.0
        %538 = vmatprep.subr.mxu0 0.0
        %539 = vmatpush1.xpose.msra.mxu0 0.0
        %540 = vmatprep.subr.mxu0 0.0
        %541 = vmatpush1.xpose.msra.mxu0 0.0
        %542 = vmatprep.subr.mxu0 0.0
        %543 = vmatpush1.xpose.msra.mxu0 0.0
        %544 = vmatprep.subr.mxu0 0.0
        %545 = vmatpush1.xpose.msra.mxu0 0.0
        %546 = vmatprep.subr.mxu0 0.0
        %547 = vmatpush1.xpose.msra.mxu0 0.0
        %548 = vmatprep.subr.mxu0 0.0
        %549 = vmatpush1.xpose.msra.mxu0 0.0
        %550 = vmatprep.subr.mxu0 0.0
        %551 = vmatpush1.xpose.msra.mxu0 0.0
        %552 = vmatprep.subr.mxu0 0.0
        %553 = vmatpush1.xpose.msra.mxu0 0.0
        %554 = vmatprep.subr.mxu0 0.0
        %555 = vmatpush1.xpose.msra.mxu0 0.0
        %556 = vmatprep.subr.mxu0 0.0
        %557 = vmatpush1.xpose.msra.mxu0 0.0
        %558 = vmatprep.subr.mxu0 0.0
        %559 = vmatpush1.xpose.msra.mxu0 0.0
        %560 = vmatprep.subr.mxu0 0.0
        %561 = vmatpush1.xpose.msra.mxu0 0.0
        %562 = vmatprep.subr.mxu0 0.0
        %563 = vmatpush1.xpose.msra.mxu0 0.0
        %564 = vmatprep.subr.mxu0 0.0
        %565 = vmatpush1.xpose.msra.mxu0 0.0
        %566 = vmatprep.subr.mxu0 0.0
        %567 = vmatpush1.xpose.msra.mxu0 0.0
        %568 = vmatprep.subr.mxu0 0.0
        %569 = vmatpush1.xpose.msra.mxu0 0.0
        %570 = vmatprep.subr.mxu0 0.0
        %571 = vmatpush1.xpose.msra.mxu0 0.0
        %572 = vmatprep.subr.mxu0 0.0
        %573 = vmatpush1.xpose.msra.mxu0 0.0
        %574 = vmatprep.subr.mxu0 0.0
        %575 = vmatpush1.xpose.msra.mxu0 0.0
        %576 = vmatprep.subr.mxu0 0.0
        %577 = vmatpush1.xpose.msra.mxu0 0.0
        %578 = vmatprep.subr.mxu0 0.0
        %579 = vmatpush1.xpose.msra.mxu0 0.0
        %580 = vmatprep.subr.mxu0 0.0
        %581 = vmatpush1.xpose.msra.mxu0 0.0
        %582 = vmatprep.subr.mxu0 0.0
        %583 = vmatpush1.xpose.msra.mxu0 0.0
        %584 = vmatprep.subr.mxu0 0.0
        %585 = vmatpush1.xpose.msra.mxu0 0.0
        %586 = vmatprep.subr.mxu0 0.0
        %587 = vmatpush1.xpose.msra.mxu0 0.0
        %588 = vmatprep.subr.mxu0 0.0
        %589 = vmatpush1.xpose.msra.mxu0 0.0
        %590 = vmatprep.subr.mxu0 0.0
        %591 = vmatpush1.xpose.msra.mxu0 0.0
        %592 = vmatprep.subr.mxu0 0.0
        %593 = vmatpush1.xpose.msra.mxu0 0.0
        %594 = vmatprep.subr.mxu0 0.0
        %595 = vmatpush1.xpose.msra.mxu0 0.0
        %596 = vmatprep.subr.mxu0 0.0
        %597 = vmatpush1.xpose.msra.mxu0 0.0
        %598 = vmatprep.mubr.f32.mxu0 0.0
        %599 = vmatmul.mubr.f32.gmra.mrb[0].mxu0 %v530
        %v600 = vpop.f32.mrb[0].mxu0
        %v601 = vadd.f32 0.0, %v600
        %v602 = vpop.f32.mrb[0].mxu0
        %603 = vdwg.mxu0
        %v604 = vsel %vm339, -1e+30, %v601
        %v605 = vld [vmem:[#allocation2] sm:$0xff]
        %v606 = vsel %vm341, %v604, -inf
        %607 = vmax.xlane.f32.xlu0 %v606
        %v608 = vpop.xlane.xlu0 %607
        %v609 = vmax.f32 %v605, %v608
        %v610 = vsub.f32 %v605, %v609
        %v611 = vmul.f32 %v610, 1.442695
        %v612 = vpow.pop %v611
        %614 = vset.pattern.permute.xlu0 1
        %615 = vperm.xlu0 %614, %v609
        %v616 = vpop.permute.xlu0 %615
        %v618 = vsub.f32 %v604, %v616
        %v619 = vmul.f32 %v618, 1.442695
        %v620 = vpow.pop %v619
        %v621 = vld [vmem:[#allocation3] sm:$0xff]
        %v622 = vmul.f32 %v612, %v621
        %v623 = vsel %vm341, %v620, 0.0
        %624 = vadd.xlane.f32.xlu0 %v623
        %v625 = vpop.xlane.xlu0 %624
        %v626 = vadd.f32 %v622, %v625
        %vm627 = vcmask 15368
        %628 = vst.msk [vmem:[#allocation3] sm:$0xff] %vm627, %v626
        %630 = vrot.lane.b32.xlu0 %v327, 120
        %v631 = vpop.permute.xlu0 %630
        %v634 = vsel %vm341, %v620, 0
        %636 = vmatprep.subr.mxu0 0.0
        %637 = vmatpush1.msra.mxu0 %v631
        %638 = vmatprep.subr.mxu0 0.0
        %639 = vmatpush1.msra.mxu0 0.0
        %640 = vmatprep.subr.mxu0 0.0
        %641 = vmatpush1.msra.mxu0 0.0
        %642 = vmatprep.subr.mxu0 0.0
        %643 = vmatpush1.msra.mxu0 0.0
        %644 = vmatprep.subr.mxu0 0.0
        %645 = vmatpush1.msra.mxu0 0.0
        %646 = vmatprep.subr.mxu0 0.0
        %647 = vmatpush1.msra.mxu0 0.0
        %648 = vmatprep.subr.mxu0 0.0
        %649 = vmatpush1.msra.mxu0 0.0
        %650 = vmatprep.subr.mxu0 0.0
        %651 = vmatpush1.msra.mxu0 0.0
        %652 = vmatprep.subr.mxu0 0.0
        %653 = vmatpush1.msra.mxu0 0.0
        %654 = vmatprep.subr.mxu0 0.0
        %655 = vmatpush1.msra.mxu0 0.0
        %656 = vmatprep.subr.mxu0 0.0
        %657 = vmatpush1.msra.mxu0 0.0
        %658 = vmatprep.subr.mxu0 0.0
        %659 = vmatpush1.msra.mxu0 0.0
        %660 = vmatprep.subr.mxu0 0.0
        %661 = vmatpush1.msra.mxu0 0.0
        %662 = vmatprep.subr.mxu0 0.0
        %663 = vmatpush1.msra.mxu0 0.0
        %664 = vmatprep.subr.mxu0 0.0
        %665 = vmatpush1.msra.mxu0 0.0
        %666 = vmatprep.subr.mxu0 0.0
        %667 = vmatpush1.msra.mxu0 0.0
        %668 = vmatprep.subr.mxu0 0.0
        %669 = vmatpush1.msra.mxu0 0.0
        %670 = vmatprep.subr.mxu0 0.0
        %671 = vmatpush1.msra.mxu0 0.0
        %672 = vmatprep.subr.mxu0 0.0
        %673 = vmatpush1.msra.mxu0 0.0
        %674 = vmatprep.subr.mxu0 0.0
        %675 = vmatpush1.msra.mxu0 0.0
        %676 = vmatprep.subr.mxu0 0.0
        %677 = vmatpush1.msra.mxu0 0.0
        %678 = vmatprep.subr.mxu0 0.0
        %679 = vmatpush1.msra.mxu0 0.0
        %680 = vmatprep.subr.mxu0 0.0
        %681 = vmatpush1.msra.mxu0 0.0
        %682 = vmatprep.subr.mxu0 0.0
        %683 = vmatpush1.msra.mxu0 0.0
        %684 = vmatprep.subr.mxu0 0.0
        %685 = vmatpush1.msra.mxu0 0.0
        %686 = vmatprep.subr.mxu0 0.0
        %687 = vmatpush1.msra.mxu0 0.0
        %688 = vmatprep.subr.mxu0 0.0
        %689 = vmatpush1.msra.mxu0 0.0
        %690 = vmatprep.subr.mxu0 0.0
        %691 = vmatpush1.msra.mxu0 0.0
        %692 = vmatprep.subr.mxu0 0.0
        %693 = vmatpush1.msra.mxu0 0.0
        %694 = vmatprep.subr.mxu0 0.0
        %695 = vmatpush1.msra.mxu0 0.0
        %696 = vmatprep.subr.mxu0 0.0
        %697 = vmatpush1.msra.mxu0 0.0
        %698 = vmatprep.subr.mxu0 0.0
        %699 = vmatpush1.msra.mxu0 0.0
        %700 = vmatprep.mubr.f32.mxu0 0.0
        %701 = vmatmul.mubr.f32.gmra.mrb[0].mxu0 %v634
        %v702 = vpop.f32.mrb[0].mxu0
        %v703 = vadd.f32 0.0, %v702
        %v704 = vpop.f32.mrb[0].mxu0
        %705 = vdwg.mxu0
        %v706 = vld [vmem:[#allocation4] sm:$0xff]
        %708 = vset.pattern.permute.xlu0 1
        %709 = vperm.xlu0 %708, %v612
        %v710 = vpop.permute.xlu0 %709
        %v712 = vmul.f32 %v710, %v706
        %714 = vrot.lane.b32.xlu0 %v703, 8
        %v715 = vpop.permute.xlu0 %714
        %v717 = vadd.f32 %v712, %v715
        %vm718 = vcmask 130112
        %719 = vst.msk [vmem:[#allocation4] sm:$0xff] %vm718, %v717
        %720 = vst.msk [vmem:[#allocation2] sm:$0xff] %vm627, %v609
        %721 = vrot.lane.b32.xlu0 %v340, 112
        %v722 = vpop.permute.xlu0 %721
        %723 = vrot.lane.b32.xlu0 %v326, 112
        %v724 = vpop.permute.xlu0 %723
        %v725 = vsel %vm341, %v722, 0
        %v727 = vsel %vm341, %v724, 0
        %729 = vmatprep.subr.mxu0 0.0
        %730 = vmatpush1.xpose.msra.mxu0 %v727
        %731 = vmatprep.subr.mxu0 0.0
        %732 = vmatpush1.xpose.msra.mxu0 0.0
        %733 = vmatprep.subr.mxu0 0.0
        %734 = vmatpush1.xpose.msra.mxu0 0.0
        %735 = vmatprep.subr.mxu0 0.0
        %736 = vmatpush1.xpose.msra.mxu0 0.0
        %737 = vmatprep.subr.mxu0 0.0
        %738 = vmatpush1.xpose.msra.mxu0 0.0
        %739 = vmatprep.subr.mxu0 0.0
        %740 = vmatpush1.xpose.msra.mxu0 0.0
        %741 = vmatprep.subr.mxu0 0.0
        %742 = vmatpush1.xpose.msra.mxu0 0.0
        %743 = vmatprep.subr.mxu0 0.0
        %744 = vmatpush1.xpose.msra.mxu0 0.0
        %745 = vmatprep.subr.mxu0 0.0
        %746 = vmatpush1.xpose.msra.mxu0 0.0
        %747 = vmatprep.subr.mxu0 0.0
        %748 = vmatpush1.xpose.msra.mxu0 0.0
        %749 = vmatprep.subr.mxu0 0.0
        %750 = vmatpush1.xpose.msra.mxu0 0.0
        %751 = vmatprep.subr.mxu0 0.0
        %752 = vmatpush1.xpose.msra.mxu0 0.0
        %753 = vmatprep.subr.mxu0 0.0
        %754 = vmatpush1.xpose.msra.mxu0 0.0
        %755 = vmatprep.subr.mxu0 0.0
        %756 = vmatpush1.xpose.msra.mxu0 0.0
        %757 = vmatprep.subr.mxu0 0.0
        %758 = vmatpush1.xpose.msra.mxu0 0.0
        %759 = vmatprep.subr.mxu0 0.0
        %760 = vmatpush1.xpose.msra.mxu0 0.0
        %761 = vmatprep.subr.mxu0 0.0
        %762 = vmatpush1.xpose.msra.mxu0 0.0
        %763 = vmatprep.subr.mxu0 0.0
        %764 = vmatpush1.xpose.msra.mxu0 0.0
        %765 = vmatprep.subr.mxu0 0.0
        %766 = vmatpush1.xpose.msra.mxu0 0.0
        %767 = vmatprep.subr.mxu0 0.0
        %768 = vmatpush1.xpose.msra.mxu0 0.0
        %769 = vmatprep.subr.mxu0 0.0
        %770 = vmatpush1.xpose.msra.mxu0 0.0
        %771 = vmatprep.subr.mxu0 0.0
        %772 = vmatpush1.xpose.msra.mxu0 0.0
        %773 = vmatprep.subr.mxu0 0.0
        %774 = vmatpush1.xpose.msra.mxu0 0.0
        %775 = vmatprep.subr.mxu0 0.0
        %776 = vmatpush1.xpose.msra.mxu0 0.0
        %777 = vmatprep.subr.mxu0 0.0
        %778 = vmatpush1.xpose.msra.mxu0 0.0
        %779 = vmatprep.subr.mxu0 0.0
        %780 = vmatpush1.xpose.msra.mxu0 0.0
        %781 = vmatprep.subr.mxu0 0.0
        %782 = vmatpush1.xpose.msra.mxu0 0.0
        %783 = vmatprep.subr.mxu0 0.0
        %784 = vmatpush1.xpose.msra.mxu0 0.0
        %785 = vmatprep.subr.mxu0 0.0
        %786 = vmatpush1.xpose.msra.mxu0 0.0
        %787 = vmatprep.subr.mxu0 0.0
        %788 = vmatpush1.xpose.msra.mxu0 0.0
        %789 = vmatprep.subr.mxu0 0.0
        %790 = vmatpush1.xpose.msra.mxu0 0.0
        %791 = vmatprep.subr.mxu0 0.0
        %792 = vmatpush1.xpose.msra.mxu0 0.0
        %793 = vmatprep.mubr.f32.mxu0 0.0
        %794 = vmatmul.mubr.f32.gmra.mrb[0].mxu0 %v725
        %v795 = vpop.f32.mrb[0].mxu0
        %v796 = vadd.f32 0.0, %v795
        %v797 = vpop.f32.mrb[0].mxu0
        %798 = vdwg.mxu0
        %v799 = vsel %vm339, -1e+30, %v796
        %v800 = vld [vmem:[#allocation2] sm:$0xff]
        %v801 = vsel %vm341, %v799, -inf
        %802 = vmax.xlane.f32.xlu0 %v801
        %v803 = vpop.xlane.xlu0 %802
        %v804 = vmax.f32 %v800, %v803
        %v805 = vsub.f32 %v800, %v804
        %v806 = vmul.f32 %v805, 1.442695
        %v807 = vpow.pop %v806
        %809 = vset.pattern.permute.xlu0 2
        %810 = vperm.xlu0 %809, %v804
        %v811 = vpop.permute.xlu0 %810
        %v813 = vsub.f32 %v799, %v811
        %v814 = vmul.f32 %v813, 1.442695
        %v815 = vpow.pop %v814
        %v816 = vld [vmem:[#allocation3] sm:$0xff]
        %v817 = vmul.f32 %v807, %v816
        %v818 = vsel %vm341, %v815, 0.0
        %819 = vadd.xlane.f32.xlu0 %v818
        %v820 = vpop.xlane.xlu0 %819
        %v821 = vadd.f32 %v817, %v820
        %vm822 = vcmask 23568
        %823 = vst.msk [vmem:[#allocation3] sm:$0xff] %vm822, %v821
        %824 = vrot.lane.b32.xlu0 %v327, 112
        %v825 = vpop.permute.xlu0 %824
        %v828 = vsel %vm341, %v815, 0
        %830 = vmatprep.subr.mxu0 0.0
        %831 = vmatpush1.msra.mxu0 %v825
        %832 = vmatprep.subr.mxu0 0.0
        %833 = vmatpush1.msra.mxu0 0.0
        %834 = vmatprep.subr.mxu0 0.0
        %835 = vmatpush1.msra.mxu0 0.0
        %836 = vmatprep.subr.mxu0 0.0
        %837 = vmatpush1.msra.mxu0 0.0
        %838 = vmatprep.subr.mxu0 0.0
        %839 = vmatpush1.msra.mxu0 0.0
        %840 = vmatprep.subr.mxu0 0.0
        %841 = vmatpush1.msra.mxu0 0.0
        %842 = vmatprep.subr.mxu0 0.0
        %843 = vmatpush1.msra.mxu0 0.0
        %844 = vmatprep.subr.mxu0 0.0
        %845 = vmatpush1.msra.mxu0 0.0
        %846 = vmatprep.subr.mxu0 0.0
        %847 = vmatpush1.msra.mxu0 0.0
        %848 = vmatprep.subr.mxu0 0.0
        %849 = vmatpush1.msra.mxu0 0.0
        %850 = vmatprep.subr.mxu0 0.0
        %851 = vmatpush1.msra.mxu0 0.0
        %852 = vmatprep.subr.mxu0 0.0
        %853 = vmatpush1.msra.mxu0 0.0
        %854 = vmatprep.subr.mxu0 0.0
        %855 = vmatpush1.msra.mxu0 0.0
        %856 = vmatprep.subr.mxu0 0.0
        %857 = vmatpush1.msra.mxu0 0.0
        %858 = vmatprep.subr.mxu0 0.0
        %859 = vmatpush1.msra.mxu0 0.0
        %860 = vmatprep.subr.mxu0 0.0
        %861 = vmatpush1.msra.mxu0 0.0
        %862 = vmatprep.subr.mxu0 0.0
        %863 = vmatpush1.msra.mxu0 0.0
        %864 = vmatprep.subr.mxu0 0.0
        %865 = vmatpush1.msra.mxu0 0.0
        %866 = vmatprep.subr.mxu0 0.0
        %867 = vmatpush1.msra.mxu0 0.0
        %868 = vmatprep.subr.mxu0 0.0
        %869 = vmatpush1.msra.mxu0 0.0
        %870 = vmatprep.subr.mxu0 0.0
        %871 = vmatpush1.msra.mxu0 0.0
        %872 = vmatprep.subr.mxu0 0.0
        %873 = vmatpush1.msra.mxu0 0.0
        %874 = vmatprep.subr.mxu0 0.0
        %875 = vmatpush1.msra.mxu0 0.0
        %876 = vmatprep.subr.mxu0 0.0
        %877 = vmatpush1.msra.mxu0 0.0
        %878 = vmatprep.subr.mxu0 0.0
        %879 = vmatpush1.msra.mxu0 0.0
        %880 = vmatprep.subr.mxu0 0.0
        %881 = vmatpush1.msra.mxu0 0.0
        %882 = vmatprep.subr.mxu0 0.0
        %883 = vmatpush1.msra.mxu0 0.0
        %884 = vmatprep.subr.mxu0 0.0
        %885 = vmatpush1.msra.mxu0 0.0
        %886 = vmatprep.subr.mxu0 0.0
        %887 = vmatpush1.msra.mxu0 0.0
        %888 = vmatprep.subr.mxu0 0.0
        %889 = vmatpush1.msra.mxu0 0.0
        %890 = vmatprep.subr.mxu0 0.0
        %891 = vmatpush1.msra.mxu0 0.0
        %892 = vmatprep.subr.mxu0 0.0
        %893 = vmatpush1.msra.mxu0 0.0
        %894 = vmatprep.mubr.f32.mxu0 0.0
        %895 = vmatmul.mubr.f32.gmra.mrb[0].mxu0 %v828
        %v896 = vpop.f32.mrb[0].mxu0
        %v897 = vadd.f32 0.0, %v896
        %v898 = vpop.f32.mrb[0].mxu0
        %899 = vdwg.mxu0
        %v900 = vld [vmem:[#allocation4] sm:$0xff]
        %902 = vset.pattern.permute.xlu0 2
        %903 = vperm.xlu0 %902, %v807
        %v904 = vpop.permute.xlu0 %903
        %v906 = vmul.f32 %v904, %v900
        %908 = vrot.lane.b32.xlu0 %v897, 16
        %v909 = vpop.permute.xlu0 %908
        %v911 = vadd.f32 %v906, %v909
        %vm912 = vcmask 195712
        %913 = vst.msk [vmem:[#allocation4] sm:$0xff] %vm912, %v911
        %914 = vst.msk [vmem:[#allocation2] sm:$0xff] %vm822, %v804
        %915 = vrot.lane.b32.xlu0 %v340, 104
        %v916 = vpop.permute.xlu0 %915
        %917 = vrot.lane.b32.xlu0 %v326, 104
        %v918 = vpop.permute.xlu0 %917
        %v919 = vsel %vm341, %v916, 0
        %v921 = vsel %vm341, %v918, 0
        %923 = vmatprep.subr.mxu0 0.0
        %924 = vmatpush1.xpose.msra.mxu0 %v921
        %925 = vmatprep.subr.mxu0 0.0
        %926 = vmatpush1.xpose.msra.mxu0 0.0
        %927 = vmatprep.subr.mxu0 0.0
        %928 = vmatpush1.xpose.msra.mxu0 0.0
        %929 = vmatprep.subr.mxu0 0.0
        %930 = vmatpush1.xpose.msra.mxu0 0.0
        %931 = vmatprep.subr.mxu0 0.0
        %932 = vmatpush1.xpose.msra.mxu0 0.0
        %933 = vmatprep.subr.mxu0 0.0
        %934 = vmatpush1.xpose.msra.mxu0 0.0
        %935 = vmatprep.subr.mxu0 0.0
        %936 = vmatpush1.xpose.msra.mxu0 0.0
        %937 = vmatprep.subr.mxu0 0.0
        %938 = vmatpush1.xpose.msra.mxu0 0.0
        %939 = vmatprep.subr.mxu0 0.0
        %940 = vmatpush1.xpose.msra.mxu0 0.0
        %941 = vmatprep.subr.mxu0 0.0
        %942 = vmatpush1.xpose.msra.mxu0 0.0
        %943 = vmatprep.subr.mxu0 0.0
        %944 = vmatpush1.xpose.msra.mxu0 0.0
        %945 = vmatprep.subr.mxu0 0.0
        %946 = vmatpush1.xpose.msra.mxu0 0.0
        %947 = vmatprep.subr.mxu0 0.0
        %948 = vmatpush1.xpose.msra.mxu0 0.0
        %949 = vmatprep.subr.mxu0 0.0
        %950 = vmatpush1.xpose.msra.mxu0 0.0
        %951 = vmatprep.subr.mxu0 0.0
        %952 = vmatpush1.xpose.msra.mxu0 0.0
        %953 = vmatprep.subr.mxu0 0.0
        %954 = vmatpush1.xpose.msra.mxu0 0.0
        %955 = vmatprep.subr.mxu0 0.0
        %956 = vmatpush1.xpose.msra.mxu0 0.0
        %957 = vmatprep.subr.mxu0 0.0
        %958 = vmatpush1.xpose.msra.mxu0 0.0
        %959 = vmatprep.subr.mxu0 0.0
        %960 = vmatpush1.xpose.msra.mxu0 0.0
        %961 = vmatprep.subr.mxu0 0.0
        %962 = vmatpush1.xpose.msra.mxu0 0.0
        %963 = vmatprep.subr.mxu0 0.0
        %964 = vmatpush1.xpose.msra.mxu0 0.0
        %965 = vmatprep.subr.mxu0 0.0
        %966 = vmatpush1.xpose.msra.mxu0 0.0
        %967 = vmatprep.subr.mxu0 0.0
        %968 = vmatpush1.xpose.msra.mxu0 0.0
        %969 = vmatprep.subr.mxu0 0.0
        %970 = vmatpush1.xpose.msra.mxu0 0.0
        %971 = vmatprep.subr.mxu0 0.0
        %972 = vmatpush1.xpose.msra.mxu0 0.0
        %973 = vmatprep.subr.mxu0 0.0
        %974 = vmatpush1.xpose.msra.mxu0 0.0
        %975 = vmatprep.subr.mxu0 0.0
        %976 = vmatpush1.xpose.msra.mxu0 0.0
        %977 = vmatprep.subr.mxu0 0.0
        %978 = vmatpush1.xpose.msra.mxu0 0.0
        %979 = vmatprep.subr.mxu0 0.0
        %980 = vmatpush1.xpose.msra.mxu0 0.0
        %981 = vmatprep.subr.mxu0 0.0
        %982 = vmatpush1.xpose.msra.mxu0 0.0
        %983 = vmatprep.subr.mxu0 0.0
        %984 = vmatpush1.xpose.msra.mxu0 0.0
        %985 = vmatprep.subr.mxu0 0.0
        %986 = vmatpush1.xpose.msra.mxu0 0.0
        %987 = vmatprep.mubr.f32.mxu0 0.0
        %988 = vmatmul.mubr.f32.gmra.mrb[0].mxu0 %v919
        %v989 = vpop.f32.mrb[0].mxu0
        %v990 = vadd.f32 0.0, %v989
        %v991 = vpop.f32.mrb[0].mxu0
        %992 = vdwg.mxu0
        %v993 = vsel %vm339, -1e+30, %v990
        %v994 = vld [vmem:[#allocation2] sm:$0xff]
        %v995 = vsel %vm341, %v993, -inf
        %996 = vmax.xlane.f32.xlu0 %v995
        %v997 = vpop.xlane.xlu0 %996
        %v998 = vmax.f32 %v994, %v997
        %v999 = vsub.f32 %v994, %v998
        %v1000 = vmul.f32 %v999, 1.442695
        %v1001 = vpow.pop %v1000
        %1003 = vset.pattern.permute.xlu0 3
        %1004 = vperm.xlu0 %1003, %v998
        %v1005 = vpop.permute.xlu0 %1004
        %v1007 = vsub.f32 %v993, %v1005
        %v1008 = vmul.f32 %v1007, 1.442695
        %v1009 = vpow.pop %v1008
        %v1010 = vld [vmem:[#allocation3] sm:$0xff]
        %v1011 = vmul.f32 %v1001, %v1010
        %v1012 = vsel %vm341, %v1009, 0.0
        %1013 = vadd.xlane.f32.xlu0 %v1012
        %v1014 = vpop.xlane.xlu0 %1013
        %v1015 = vadd.f32 %v1011, %v1014
        %vm1016 = vcmask 31768
        %1017 = vst.msk [vmem:[#allocation3] sm:$0xff] %vm1016, %v1015
        %1018 = vrot.lane.b32.xlu0 %v327, 104
        %v1019 = vpop.permute.xlu0 %1018
        %v1022 = vsel %vm341, %v1009, 0
        %1024 = vmatprep.subr.mxu0 0.0
        %1025 = vmatpush1.msra.mxu0 %v1019
        %1026 = vmatprep.subr.mxu0 0.0
        %1027 = vmatpush1.msra.mxu0 0.0
        %1028 = vmatprep.subr.mxu0 0.0
        %1029 = vmatpush1.msra.mxu0 0.0
        %1030 = vmatprep.subr.mxu0 0.0
        %1031 = vmatpush1.msra.mxu0 0.0
        %1032 = vmatprep.subr.mxu0 0.0
        %1033 = vmatpush1.msra.mxu0 0.0
        %1034 = vmatprep.subr.mxu0 0.0
        %1035 = vmatpush1.msra.mxu0 0.0
        %1036 = vmatprep.subr.mxu0 0.0
        %1037 = vmatpush1.msra.mxu0 0.0
        %1038 = vmatprep.subr.mxu0 0.0
        %1039 = vmatpush1.msra.mxu0 0.0
        %1040 = vmatprep.subr.mxu0 0.0
        %1041 = vmatpush1.msra.mxu0 0.0
        %1042 = vmatprep.subr.mxu0 0.0
        %1043 = vmatpush1.msra.mxu0 0.0
        %1044 = vmatprep.subr.mxu0 0.0
        %1045 = vmatpush1.msra.mxu0 0.0
        %1046 = vmatprep.subr.mxu0 0.0
        %1047 = vmatpush1.msra.mxu0 0.0
        %1048 = vmatprep.subr.mxu0 0.0
        %1049 = vmatpush1.msra.mxu0 0.0
        %1050 = vmatprep.subr.mxu0 0.0
        %1051 = vmatpush1.msra.mxu0 0.0
        %1052 = vmatprep.subr.mxu0 0.0
        %1053 = vmatpush1.msra.mxu0 0.0
        %1054 = vmatprep.subr.mxu0 0.0
        %1055 = vmatpush1.msra.mxu0 0.0
        %1056 = vmatprep.subr.mxu0 0.0
        %1057 = vmatpush1.msra.mxu0 0.0
        %1058 = vmatprep.subr.mxu0 0.0
        %1059 = vmatpush1.msra.mxu0 0.0
        %1060 = vmatprep.subr.mxu0 0.0
        %1061 = vmatpush1.msra.mxu0 0.0
        %1062 = vmatprep.subr.mxu0 0.0
        %1063 = vmatpush1.msra.mxu0 0.0
        %1064 = vmatprep.subr.mxu0 0.0
        %1065 = vmatpush1.msra.mxu0 0.0
        %1066 = vmatprep.subr.mxu0 0.0
        %1067 = vmatpush1.msra.mxu0 0.0
        %1068 = vmatprep.subr.mxu0 0.0
        %1069 = vmatpush1.msra.mxu0 0.0
        %1070 = vmatprep.subr.mxu0 0.0
        %1071 = vmatpush1.msra.mxu0 0.0
        %1072 = vmatprep.subr.mxu0 0.0
        %1073 = vmatpush1.msra.mxu0 0.0
        %1074 = vmatprep.subr.mxu0 0.0
        %1075 = vmatpush1.msra.mxu0 0.0
        %1076 = vmatprep.subr.mxu0 0.0
        %1077 = vmatpush1.msra.mxu0 0.0
        %1078 = vmatprep.subr.mxu0 0.0
        %1079 = vmatpush1.msra.mxu0 0.0
        %1080 = vmatprep.subr.mxu0 0.0
        %1081 = vmatpush1.msra.mxu0 0.0
        %1082 = vmatprep.subr.mxu0 0.0
        %1083 = vmatpush1.msra.mxu0 0.0
        %1084 = vmatprep.subr.mxu0 0.0
        %1085 = vmatpush1.msra.mxu0 0.0
        %1086 = vmatprep.subr.mxu0 0.0
        %1087 = vmatpush1.msra.mxu0 0.0
        %1088 = vmatprep.mubr.f32.mxu0 0.0
        %1089 = vmatmul.mubr.f32.gmra.mrb[0].mxu0 %v1022
        %v1090 = vpop.f32.mrb[0].mxu0
        %v1091 = vadd.f32 0.0, %v1090
        %v1092 = vpop.f32.mrb[0].mxu0
        %1093 = vdwg.mxu0
        %v1094 = vld [vmem:[#allocation4] sm:$0xff]
        %1096 = vset.pattern.permute.xlu0 3
        %1097 = vperm.xlu0 %1096, %v1001
        %v1098 = vpop.permute.xlu0 %1097
        %v1100 = vmul.f32 %v1098, %v1094
        %1102 = vrot.lane.b32.xlu0 %v1091, 24
        %v1103 = vpop.permute.xlu0 %1102
        %v1105 = vadd.f32 %v1100, %v1103
        %vm1106 = vcmask 261312
        %1107 = vst.msk [vmem:[#allocation4] sm:$0xff] %vm1106, %v1105
        %1108 = vst.msk [vmem:[#allocation2] sm:$0xff] %vm1016, %v998
      $region40: #{residual_attention_block.9} parent=31 // pred_fallthru
        _
      // Predicated region
      $region41: #{residual_attention_block.9} parent=31 // pred_check
        %p1109 = pneg %p308
      $region42: #{residual_attention_block.9} parent=31 // pred_check_branch
        %1111 = sbr.rel (%p1109) target = $region44
      $region43: #{residual_attention_block.9} parent=31 // pred_region
        %v1112 = vld [vmem:[#allocation3] sm:$0xff]
        %v1113 = vrcp.pop %v1112
        %v1114 = vld [vmem:[#allocation4] sm:$0xff]
        %1116 = vset.pattern.permute.xlu0 0
        %1117 = vperm.xlu0 %1116, %v1113
        %v1118 = vpop.permute.xlu0 %1117
        %v1120 = vmul.f32 %v1114, %v1118
        %vm1121 = vcmask 64512
        %1122 = vst.msk [vmem:[#allocation4] sm:$0xff] %vm1121, %v1120
        %v1123 = vld [vmem:[#allocation4] sm:$0xff]
        %1124 = vset.pattern.permute.xlu0 1
        %1125 = vperm.xlu0 %1124, %v1113
        %v1126 = vpop.permute.xlu0 %1125
        %v1128 = vmul.f32 %v1123, %v1126
        %vm1129 = vcmask 130112
        %1130 = vst.msk [vmem:[#allocation4] sm:$0xff] %vm1129, %v1128
        %v1131 = vld [vmem:[#allocation4] sm:$0xff]
        %1132 = vset.pattern.permute.xlu0 2
        %1133 = vperm.xlu0 %1132, %v1113
        %v1134 = vpop.permute.xlu0 %1133
        %v1136 = vmul.f32 %v1131, %v1134
        %vm1137 = vcmask 195712
        %1138 = vst.msk [vmem:[#allocation4] sm:$0xff] %vm1137, %v1136
        %v1139 = vld [vmem:[#allocation4] sm:$0xff]
        %1140 = vset.pattern.permute.xlu0 3
        %1141 = vperm.xlu0 %1140, %v1113
        %v1142 = vpop.permute.xlu0 %1141
        %v1144 = vmul.f32 %v1139, %v1142
        %vm1145 = vcmask 261312
        %1146 = vst.msk [vmem:[#allocation4] sm:$0xff] %vm1145, %v1144
        %v1147 = vld [vmem:[#allocation4] sm:$0xff]
        %vm1148 = vcmask 261120
        %1149 = vst.msk [vmem:[%s307] sm:$0xff] %vm1148, %v1147
      $region44: #{residual_attention_block.9} parent=31 // pred_fallthru
        _
      %p1150 = scmp.lt.s32.totalorder %s20, 1
      %s1151 = scalar_select %p1150, %s20, 1
      %p1152 = scmp.lt.s32.totalorder %s22, 0
      %s1153 = scalar_select %p1152, %s22, 0
      %p1154 = scmp.lt.s32.totalorder %s21, 0
      %s1155 = scalar_select %p1154, %s21, 0
      %s1156 = sadd.s32 %s1155, %s1153
      %s1157 = sadd.s32 %s1156, %s1151
      %s1158 = smul.addr %s1157, 8
      %s1159 = scalar_lea.vmem %s3, %s1158
      // Predicated region
      $region45: #{residual_attention_block.9} parent=31 // pred_check
        %p1160 = pneg %p152
      $region46: #{residual_attention_block.9} parent=31 // pred_check_branch
        %1162 = sbr.rel (%p1160) target = $region48
      $region47: #{residual_attention_block.9} parent=31 // pred_region
        _
      $region48: #{residual_attention_block.9} parent=31 // pred_fallthru
        _
    $region32: #{residual_attention_block.9} parent=5 // pred_fallthru
      _
    %p1163 = scmp.le.s32.totalorder 2, %s9
    // Predicated region
    $region49: #{residual_attention_block.9} parent=5 // pred_check
      %p1164 = pneg %p1163
    $region50: #{residual_attention_block.9} parent=5 // pred_check_branch
      %1166 = sbr.rel (%p1164) target = $region52
    $region51: #{residual_attention_block.9} parent=5 // pred_region
      %s1167 = ssub.s32 %s9, 2
      // Predicated region
      $region53: #{residual_attention_block.9} parent=51 // pred_check
        %p1168 = pneg %p158
      $region54: #{residual_attention_block.9} parent=51 // pred_check_branch
        %1170 = sbr.rel (%p1168) target = $region56
      $region55: #{residual_attention_block.9} parent=51 // pred_region
        %p1171 = scmp.lt.s32.totalorder %s24, 1
        %s1172 = scalar_select %p1171, %s24, 1
        %p1173 = scmp.lt.s32.totalorder %s26, 0
        %s1174 = scalar_select %p1173, %s26, 0
        %p1175 = scmp.lt.s32.totalorder %s25, 0
        %s1176 = scalar_select %p1175, %s25, 0
        %s1177 = sadd.s32 %s1176, %s1174
        %s1178 = sadd.s32 %s1177, %s1172
        %s1179 = smul.addr %s1178, 8
        %s1180 = scalar_lea.vmem %s3, %s1179
      $region56: #{residual_attention_block.9} parent=51 // pred_fallthru
        _
    $region52: #{residual_attention_block.9} parent=5 // pred_fallthru
      _
  $region6: #{residual_attention_block.9} parent=0 // loop_footer
    %s13 = sadd.s32 1, %s9
  $region7: #{residual_attention_block.9} parent=0 // loop_footer_branch
    %8 = sbr.rel target = $region3
  $region8: #{residual_attention_block.9} parent=0 // loop_exit
    _

// kernel: residual_attention_block.12
$region0: #{residual_attention_block.12}
  #allocation0 [shape = 'u32[]', space=smem, size = 0x4, offset = 0x4, fixed_abs, tag = 'smem constant byte address 0x4 - core index']
  #allocation1 [shape = 'u32[144,128]{1,0:T(1,128)}', space=vmem, size = 0x12000, scoped, tag = 'internal scratch']
  %s0 = inlined_call_operand.vmem [shape: f32[32,32], index: 0, kind: input, shape index: {}]
  %s1 = inlined_call_operand.vmem [shape: f32[32,32], index: 1, kind: input, shape index: {}]
  %s2 = inlined_call_operand.vmem [shape: f32[32,32], index: 2, kind: input, shape index: {}]
  %s3 = inlined_call_operand.vmem [shape: f32[1,32], index: 3, kind: input, shape index: {}]
  %s4 = inlined_call_operand.vmem [shape: f32[32,32], index: 4, kind: output, shape index: {0}]
  %s5 = inlined_call_operand.vmem [shape: f32[32,32], index: 5, kind: output, shape index: {1}]
  %6 = xla_tuple %s4, %s5
  %s7 = sld [smem:[#allocation0]]
  $region34: #{residual_attention_block.12} parent=0
    _
  %s9 = ssub.s32 1, %s7
  %s10 = scalar_select 0, %s9, %s7
  // Predicated region
  $region2: #{residual_attention_block.12} parent=0 // pred_check
    _
  $region3: #{residual_attention_block.12} parent=0 // pred_check_branch
    %12 = sbr.rel (0) target = $region5
  $region4: #{residual_attention_block.12} parent=0 // pred_region
    _
  $region5: #{residual_attention_block.12} parent=0 // pred_fallthru
    _
  // Predicated region
  $region6: #{residual_attention_block.12} parent=0 // pred_check
    _
  $region7: #{residual_attention_block.12} parent=0 // pred_check_branch
    %14 = sbr.rel (0) target = $region9
  $region8: #{residual_attention_block.12} parent=0 // pred_region
    _
  $region9: #{residual_attention_block.12} parent=0 // pred_fallthru
    _
  // Predicated region
  $region10: #{residual_attention_block.12} parent=0 // pred_check
    _
  $region11: #{residual_attention_block.12} parent=0 // pred_check_branch
    %16 = sbr.rel (0) target = $region13
  $region12: #{residual_attention_block.12} parent=0 // pred_region
    _
  $region13: #{residual_attention_block.12} parent=0 // pred_fallthru
    _
  // Predicated region
  $region14: #{residual_attention_block.12} parent=0 // pred_check
    _
  $region15: #{residual_attention_block.12} parent=0 // pred_check_branch
    %18 = sbr.rel (0) target = $region17
  $region16: #{residual_attention_block.12} parent=0 // pred_region
    _
  $region17: #{residual_attention_block.12} parent=0 // pred_fallthru
    _
  %v19 = vld [vmem:[%s0] sm:$0xff]
  %v20 = vld [vmem:[%s0 + $0x8] sm:$0xff]
  %v21 = vld [vmem:[%s0 + $0x10] sm:$0xff]
  %v22 = vld [vmem:[%s0 + $0x18] sm:$0xff]
  %v23 = vld [vmem:[%s1] sm:$0xff]
  %v24 = vld [vmem:[%s1 + $0x8] sm:$0xff]
  %v25 = vld [vmem:[%s1 + $0x10] sm:$0xff]
  %v26 = vld [vmem:[%s1 + $0x18] sm:$0xff]
  %vm27 = vcmask 261120
  %v29 = vsel %vm27, %v19, 0
  %v32 = vsel %vm27, %v20, 0
  %v35 = vsel %vm27, %v21, 0
  %v38 = vsel %vm27, %v22, 0
  %40 = vmatprep.subr.mxu0 0.0
  %41 = vmatpush1.msra.mxu0 %v23
  %42 = vmatprep.subr.mxu0 0.0
  %43 = vmatpush1.msra.mxu0 %v24
  %44 = vmatprep.subr.mxu0 0.0
  %45 = vmatpush1.msra.mxu0 %v25
  %46 = vmatprep.subr.mxu0 0.0
  %47 = vmatpush1.msra.mxu0 %v26
  %48 = vmatprep.subr.mxu0 0.0
  %49 = vmatpush1.msra.mxu0 0.0
  %50 = vmatprep.subr.mxu0 0.0
  %51 = vmatpush1.msra.mxu0 0.0
  %52 = vmatprep.subr.mxu0 0.0
  %53 = vmatpush1.msra.mxu0 0.0
  %54 = vmatprep.subr.mxu0 0.0
  %55 = vmatpush1.msra.mxu0 0.0
  %56 = vmatprep.subr.mxu0 0.0
  %57 = vmatpush1.msra.mxu0 0.0
  %58 = vmatprep.subr.mxu0 0.0
  %59 = vmatpush1.msra.mxu0 0.0
  %60 = vmatprep.subr.mxu0 0.0
  %61 = vmatpush1.msra.mxu0 0.0
  %62 = vmatprep.subr.mxu0 0.0
  %63 = vmatpush1.msra.mxu0 0.0
  %64 = vmatprep.subr.mxu0 0.0
  %65 = vmatpush1.msra.mxu0 0.0
  %66 = vmatprep.subr.mxu0 0.0
  %67 = vmatpush1.msra.mxu0 0.0
  %68 = vmatprep.subr.mxu0 0.0
  %69 = vmatpush1.msra.mxu0 0.0
  %70 = vmatprep.subr.mxu0 0.0
  %71 = vmatpush1.msra.mxu0 0.0
  %72 = vmatprep.subr.mxu0 0.0
  %73 = vmatpush1.msra.mxu0 0.0
  %74 = vmatprep.subr.mxu0 0.0
  %75 = vmatpush1.msra.mxu0 0.0
  %76 = vmatprep.subr.mxu0 0.0
  %77 = vmatpush1.msra.mxu0 0.0
  %78 = vmatprep.subr.mxu0 0.0
  %79 = vmatpush1.msra.mxu0 0.0
  %80 = vmatprep.subr.mxu0 0.0
  %81 = vmatpush1.msra.mxu0 0.0
  %82 = vmatprep.subr.mxu0 0.0
  %83 = vmatpush1.msra.mxu0 0.0
  %84 = vmatprep.subr.mxu0 0.0
  %85 = vmatpush1.msra.mxu0 0.0
  %86 = vmatprep.subr.mxu0 0.0
  %87 = vmatpush1.msra.mxu0 0.0
  %88 = vmatprep.subr.mxu0 0.0
  %89 = vmatpush1.msra.mxu0 0.0
  %90 = vmatprep.subr.mxu0 0.0
  %91 = vmatpush1.msra.mxu0 0.0
  %92 = vmatprep.subr.mxu0 0.0
  %93 = vmatpush1.msra.mxu0 0.0
  %94 = vmatprep.subr.mxu0 0.0
  %95 = vmatpush1.msra.mxu0 0.0
  %96 = vmatprep.subr.mxu0 0.0
  %97 = vmatpush1.msra.mxu0 0.0
  %98 = vmatprep.subr.mxu0 0.0
  %99 = vmatpush1.msra.mxu0 0.0
  %100 = vmatprep.subr.mxu0 0.0
  %101 = vmatpush1.msra.mxu0 0.0
  %102 = vmatprep.subr.mxu0 0.0
  %103 = vmatpush1.msra.mxu0 0.0
  %104 = vmatprep.mubr.f32.mxu0 0.0
  %105 = vmatmul.mubr.f32.gmra.mrb[0].mxu0 %v29
  %v106 = vpop.f32.mrb[0].mxu0
  %v107 = vadd.f32 0.0, %v106
  %v108 = vpop.f32.mrb[0].mxu0
  %109 = vmatprep.mubr.f32.mxu0 0.0
  %110 = vmatmul.mubr.f32.gmra.mrb[0].mxu0 %v32
  %v111 = vpop.f32.mrb[0].mxu0
  %v112 = vadd.f32 0.0, %v111
  %v113 = vpop.f32.mrb[0].mxu0
  %114 = vmatprep.mubr.f32.mxu0 0.0
  %115 = vmatmul.mubr.f32.gmra.mrb[0].mxu0 %v35
  %v116 = vpop.f32.mrb[0].mxu0
  %v117 = vadd.f32 0.0, %v116
  %v118 = vpop.f32.mrb[0].mxu0
  %119 = vmatprep.mubr.f32.mxu0 0.0
  %120 = vmatmul.mubr.f32.gmra.mrb[0].mxu0 %v38
  %v121 = vpop.f32.mrb[0].mxu0
  %v122 = vadd.f32 0.0, %v121
  %v123 = vpop.f32.mrb[0].mxu0
  %124 = vdwg.mxu0
  %125 = vst.msk [vmem:[%s4] sm:$0xff] %vm27, %v107
  %126 = vst.msk [vmem:[%s4 + $0x8] sm:$0xff] %vm27, %v112
  %127 = vst.msk [vmem:[%s4 + $0x10] sm:$0xff] %vm27, %v117
  %128 = vst.msk [vmem:[%s4 + $0x18] sm:$0xff] %vm27, %v122
  %v129 = vld [vmem:[%s2] sm:$0xff]
  %v130 = vld [vmem:[%s2 + $0x8] sm:$0xff]
  %v131 = vld [vmem:[%s2 + $0x10] sm:$0xff]
  %v132 = vld [vmem:[%s2 + $0x18] sm:$0xff]
  %v133 = vld [vmem:[%s3] sm:$0x1]
  %v135 = vlaneseq
  %v136 = vshrl.u32 %v135, 7
  %v137 = vsub.s32 0, %v136
  %v138 = vrot.slane %v133, %v137
  %140 = vmatprep.subr.mxu0 0.0
  %141 = vmatpush1.msra.mxu0 %v129
  %142 = vmatprep.subr.mxu0 0.0
  %143 = vmatpush1.msra.mxu0 %v130
  %144 = vmatprep.subr.mxu0 0.0
  %145 = vmatpush1.msra.mxu0 %v131
  %146 = vmatprep.subr.mxu0 0.0
  %147 = vmatpush1.msra.mxu0 %v132
  %148 = vmatprep.subr.mxu0 0.0
  %149 = vmatpush1.msra.mxu0 0.0
  %150 = vmatprep.subr.mxu0 0.0
  %151 = vmatpush1.msra.mxu0 0.0
  %152 = vmatprep.subr.mxu0 0.0
  %153 = vmatpush1.msra.mxu0 0.0
  %154 = vmatprep.subr.mxu0 0.0
  %155 = vmatpush1.msra.mxu0 0.0
  %156 = vmatprep.subr.mxu0 0.0
  %157 = vmatpush1.msra.mxu0 0.0
  %158 = vmatprep.subr.mxu0 0.0
  %159 = vmatpush1.msra.mxu0 0.0
  %160 = vmatprep.subr.mxu0 0.0
  %161 = vmatpush1.msra.mxu0 0.0
  %162 = vmatprep.subr.mxu0 0.0
  %163 = vmatpush1.msra.mxu0 0.0
  %164 = vmatprep.subr.mxu0 0.0
  %165 = vmatpush1.msra.mxu0 0.0
  %166 = vmatprep.subr.mxu0 0.0
  %167 = vmatpush1.msra.mxu0 0.0
  %168 = vmatprep.subr.mxu0 0.0
  %169 = vmatpush1.msra.mxu0 0.0
  %170 = vmatprep.subr.mxu0 0.0
  %171 = vmatpush1.msra.mxu0 0.0
  %172 = vmatprep.subr.mxu0 0.0
  %173 = vmatpush1.msra.mxu0 0.0
  %174 = vmatprep.subr.mxu0 0.0
  %175 = vmatpush1.msra.mxu0 0.0
  %176 = vmatprep.subr.mxu0 0.0
  %177 = vmatpush1.msra.mxu0 0.0
  %178 = vmatprep.subr.mxu0 0.0
  %179 = vmatpush1.msra.mxu0 0.0
  %180 = vmatprep.subr.mxu0 0.0
  %181 = vmatpush1.msra.mxu0 0.0
  %182 = vmatprep.subr.mxu0 0.0
  %183 = vmatpush1.msra.mxu0 0.0
  %184 = vmatprep.subr.mxu0 0.0
  %185 = vmatpush1.msra.mxu0 0.0
  %186 = vmatprep.subr.mxu0 0.0
  %187 = vmatpush1.msra.mxu0 0.0
  %188 = vmatprep.subr.mxu0 0.0
  %189 = vmatpush1.msra.mxu0 0.0
  %190 = vmatprep.subr.mxu0 0.0
  %191 = vmatpush1.msra.mxu0 0.0
  %192 = vmatprep.subr.mxu0 0.0
  %193 = vmatpush1.msra.mxu0 0.0
  %194 = vmatprep.subr.mxu0 0.0
  %195 = vmatpush1.msra.mxu0 0.0
  %196 = vmatprep.subr.mxu0 0.0
  %197 = vmatpush1.msra.mxu0 0.0
  %198 = vmatprep.subr.mxu0 0.0
  %199 = vmatpush1.msra.mxu0 0.0
  %200 = vmatprep.subr.mxu0 0.0
  %201 = vmatpush1.msra.mxu0 0.0
  %202 = vmatprep.subr.mxu0 0.0
  %203 = vmatpush1.msra.mxu0 0.0
  %204 = vmatprep.mubr.f32.mxu0 0.0
  %205 = vmatmul.mubr.f32.gmra.mrb[0].mxu0 %v29
  %v206 = vpop.f32.mrb[0].mxu0
  %v207 = vadd.f32 %v138, %v206
  %v208 = vpop.f32.mrb[0].mxu0
  %209 = vmatprep.mubr.f32.mxu0 0.0
  %210 = vmatmul.mubr.f32.gmra.mrb[0].mxu0 %v32
  %v211 = vpop.f32.mrb[0].mxu0
  %v212 = vadd.f32 %v138, %v211
  %v213 = vpop.f32.mrb[0].mxu0
  %214 = vmatprep.mubr.f32.mxu0 0.0
  %215 = vmatmul.mubr.f32.gmra.mrb[0].mxu0 %v35
  %v216 = vpop.f32.mrb[0].mxu0
  %v217 = vadd.f32 %v138, %v216
  %v218 = vpop.f32.mrb[0].mxu0
  %219 = vmatprep.mubr.f32.mxu0 0.0
  %220 = vmatmul.mubr.f32.gmra.mrb[0].mxu0 %v38
  %v221 = vpop.f32.mrb[0].mxu0
  %v222 = vadd.f32 %v138, %v221
  %v223 = vpop.f32.mrb[0].mxu0
  %224 = vdwg.mxu0
  %225 = vst.msk [vmem:[%s5] sm:$0xff] %vm27, %v207
  %226 = vst.msk [vmem:[%s5 + $0x8] sm:$0xff] %vm27, %v212
  %227 = vst.msk [vmem:[%s5 + $0x10] sm:$0xff] %vm27, %v217
  %228 = vst.msk [vmem:[%s5 + $0x18] sm:$0xff] %vm27, %v222
  // Predicated region
  $region18: #{residual_attention_block.12} parent=0 // pred_check
    _
  $region19: #{residual_attention_block.12} parent=0 // pred_check_branch
    %230 = sbr.rel (0) target = $region21
  $region20: #{residual_attention_block.12} parent=0 // pred_region
    _
  $region21: #{residual_attention_block.12} parent=0 // pred_fallthru
    _
  // Predicated region
  $region22: #{residual_attention_block.12} parent=0 // pred_check
    _
  $region23: #{residual_attention_block.12} parent=0 // pred_check_branch
    %232 = sbr.rel (0) target = $region25
  $region24: #{residual_attention_block.12} parent=0 // pred_region
    _
  $region25: #{residual_attention_block.12} parent=0 // pred_fallthru
    _
  // Predicated region
  $region26: #{residual_attention_block.12} parent=0 // pred_check
    _
  $region27: #{residual_attention_block.12} parent=0 // pred_check_branch
    %234 = sbr.rel (0) target = $region29
  $region28: #{residual_attention_block.12} parent=0 // pred_region
    _
  $region29: #{residual_attention_block.12} parent=0 // pred_fallthru
    _
  // Predicated region
  $region30: #{residual_attention_block.12} parent=0 // pred_check
    _
  $region31: #{residual_attention_block.12} parent=0 // pred_check_branch
    %236 = sbr.rel (0) target = $region33
  $region32: #{residual_attention_block.12} parent=0 // pred_region
    _
  $region33: #{residual_attention_block.12} parent=0 // pred_fallthru
    _

// kernel: residual_attention_block.15
$region0: #{residual_attention_block.15}
  #allocation0 [shape = 'u32[]', space=smem, size = 0x4, offset = 0x4, fixed_abs, tag = 'smem constant byte address 0x4 - core index']
  #allocation1 [shape = 'u32[144,128]{1,0:T(1,128)}', space=vmem, size = 0x12000, scoped, tag = 'internal scratch']
  #allocation2 [shape = 'f32[16,32]{1,0:T(8,128)}', space=vmem, size = 0x2000, scoped, tag = 'scratch operand']
  #allocation3 [shape = 'f32[16,32]{1,0:T(8,128)}', space=vmem, size = 0x2000, scoped, tag = 'scratch operand']
  %s0 = inlined_call_operand.vmem [shape: f32[16,32], index: 0, kind: input, shape index: {}]
  %s1 = inlined_call_operand.vmem [shape: f32[1,32], index: 1, kind: input, shape index: {}]
  %s2 = inlined_call_operand.vmem [shape: f32[1,32], index: 2, kind: input, shape index: {}]
  %s3 = inlined_call_operand.vmem [shape: f32[32,128], index: 3, kind: input, shape index: {}]
  %s4 = inlined_call_operand.vmem [shape: f32[1,128], index: 4, kind: input, shape index: {}]
  %s5 = inlined_call_operand.vmem [shape: f32[128,32], index: 5, kind: input, shape index: {}]
  %s6 = inlined_call_operand.vmem [shape: f32[1,32], index: 6, kind: input, shape index: {}]
  %s7 = inlined_call_operand.hbm [shape: f32[16,32], index: 7, kind: output, shape index: {}]
  %s8 = sld [smem:[#allocation0]]
  $region46: #{residual_attention_block.15} parent=0
    _
  %s10 = ssub.s32 1, %s8
  %s11 = scalar_select 0, %s10, %s8
  $region1: #{residual_attention_block.15} parent=0
    #allocation4 [shape = 'u8[8192]{0}', space=vmem, size = 0x2000, scoped, tag = 'output window, operand 0, single buffered']
    #allocation5 [shape = 's32[1]{0}', space=sflag, size = 0x4, scoped, tag = 'scoped memory for residual_attention_block.15']
    %12 = vsyncpa [#allocation5], 0
    // Predicated region
    $region2: #{residual_attention_block.15} parent=1 // pred_check
      _
    $region3: #{residual_attention_block.15} parent=1 // pred_check_branch
      %14 = sbr.rel (0) target = $region5
    $region4: #{residual_attention_block.15} parent=1 // pred_region
      _
    $region5: #{residual_attention_block.15} parent=1 // pred_fallthru
      _
    // Predicated region
    $region6: #{residual_attention_block.15} parent=1 // pred_check
      _
    $region7: #{residual_attention_block.15} parent=1 // pred_check_branch
      %16 = sbr.rel (0) target = $region9
    $region8: #{residual_attention_block.15} parent=1 // pred_region
      _
    $region9: #{residual_attention_block.15} parent=1 // pred_fallthru
      _
    // Predicated region
    $region10: #{residual_attention_block.15} parent=1 // pred_check
      _
    $region11: #{residual_attention_block.15} parent=1 // pred_check_branch
      %18 = sbr.rel (0) target = $region13
    $region12: #{residual_attention_block.15} parent=1 // pred_region
      _
    $region13: #{residual_attention_block.15} parent=1 // pred_fallthru
      _
    // Predicated region
    $region14: #{residual_attention_block.15} parent=1 // pred_check
      _
    $region15: #{residual_attention_block.15} parent=1 // pred_check_branch
      %20 = sbr.rel (0) target = $region17
    $region16: #{residual_attention_block.15} parent=1 // pred_region
      _
    $region17: #{residual_attention_block.15} parent=1 // pred_fallthru
      _
    // Predicated region
    $region18: #{residual_attention_block.15} parent=1 // pred_check
      _
    $region19: #{residual_attention_block.15} parent=1 // pred_check_branch
      %22 = sbr.rel (0) target = $region21
    $region20: #{residual_attention_block.15} parent=1 // pred_region
      _
    $region21: #{residual_attention_block.15} parent=1 // pred_fallthru
      _
    // Predicated region
    $region22: #{residual_attention_block.15} parent=1 // pred_check
      _
    $region23: #{residual_attention_block.15} parent=1 // pred_check_branch
      %24 = sbr.rel (0) target = $region25
    $region24: #{residual_attention_block.15} parent=1 // pred_region
      _
    $region25: #{residual_attention_block.15} parent=1 // pred_fallthru
      _
    // Predicated region
    $region26: #{residual_attention_block.15} parent=1 // pred_check
      _
    $region27: #{residual_attention_block.15} parent=1 // pred_check_branch
      %26 = sbr.rel (0) target = $region29
    $region28: #{residual_attention_block.15} parent=1 // pred_region
      _
    $region29: #{residual_attention_block.15} parent=1 // pred_fallthru
      _
    %p27 = scmp.eq.s32.totalorder 0, 0
    // Predicated region
    $region30: #{residual_attention_block.15} parent=1 // pred_check
      %p28 = pneg %p27
    $region31: #{residual_attention_block.15} parent=1 // pred_check_branch
      %30 = sbr.rel (%p28) target = $region33
    $region32: #{residual_attention_block.15} parent=1 // pred_region
      %v31 = vld [vmem:[%s0] sm:$0xff]
      %v32 = vld [vmem:[%s0 + $0x8] sm:$0xff]
      %vm33 = vcmask 261120
      %v34 = vsel %vm33, %v31, 0.0
      %35 = vadd.xlane.f32.xlu0 %v34
      %v36 = vpop.xlane.xlu0 %35
      %v37 = vsel %vm33, %v32, 0.0
      %38 = vadd.xlane.f32.xlu0 %v37
      %v39 = vpop.xlane.xlu0 %38
      %v40 = vrcp.pop 32.0
      %v41 = vmul.f32 %v36, %v40
      %v42 = vmul.f32 %v39, %v40
      %v43 = vsub.f32 %v31, %v41
      %v44 = vsub.f32 %v32, %v42
      %v45 = vmul.f32 %v43, %v43
      %v46 = vmul.f32 %v44, %v44
      %v47 = vsel %vm33, %v45, 0.0
      %48 = vadd.xlane.f32.xlu0 %v47
      %v49 = vpop.xlane.xlu0 %48
      %v50 = vsel %vm33, %v46, 0.0
      %51 = vadd.xlane.f32.xlu0 %v50
      %v52 = vpop.xlane.xlu0 %51
      %v53 = vmul.f32 %v49, %v40
      %v54 = vmul.f32 %v52, %v40
      %v55 = vadd.f32 %v53, 1e-05
      %v56 = vadd.f32 %v54, 1e-05
      %v57 = vrsqrt.pop %v55
      %v58 = vrsqrt.pop %v56
      %v59 = vmul.f32 %v43, %v57
      %v60 = vmul.f32 %v44, %v58
      %v61 = vld [vmem:[%s1] sm:$0x1]
      %v63 = vlaneseq
      %v64 = vshrl.u32 %v63, 7
      %v65 = vsub.s32 0, %v64
      %v66 = vrot.slane %v61, %v65
      %v68 = vmul.f32 %v59, %v66
      %v69 = vmul.f32 %v60, %v66
      %v70 = vld [vmem:[%s2] sm:$0x1]
      %v72 = vlaneseq
      %v73 = vshrl.u32 %v72, 7
      %v74 = vsub.s32 0, %v73
      %v75 = vrot.slane %v70, %v74
      %v77 = vadd.f32 %v68, %v75
      %v78 = vadd.f32 %v69, %v75
      %79 = vst.msk [vmem:[#allocation2] sm:$0xff] %vm33, %v77
      %80 = vst.msk [vmem:[#allocation2 + $0x8] sm:$0xff] %vm33, %v78
      %81 = vst.msk [vmem:[#allocation3] sm:$0xff] %vm33, 0.0
      %82 = vst.msk [vmem:[#allocation3 + $0x8] sm:$0xff] %vm33, 0.0
    $region33: #{residual_attention_block.15} parent=1 // pred_fallthru
      _
    %v83 = vld [vmem:[#allocation2] sm:$0xff]
    %v84 = vld [vmem:[#allocation2 + $0x8] sm:$0xff]
    %v85 = vld [vmem:[%s3] sm:$0xff]
    %v86 = vld [vmem:[%s3 + $0x8] sm:$0xff]
    %v87 = vld [vmem:[%s3 + $0x10] sm:$0xff]
    %v88 = vld [vmem:[%s3 + $0x18] sm:$0xff]
    %v89 = vld [vmem:[%s4] sm:$0x1]
    %v91 = vlaneseq
    %v92 = vshrl.u32 %v91, 7
    %v93 = vsub.s32 0, %v92
    %v94 = vrot.slane %v89, %v93
    %vm96 = vcmask 261120
    %v98 = vsel %vm96, %v83, 0
    %v101 = vsel %vm96, %v84, 0
    %103 = vmatprep.subr.mxu0 0.0
    %104 = vmatpush1.msra.mxu0 %v85
    %105 = vmatprep.subr.mxu0 0.0
    %106 = vmatpush1.msra.mxu0 %v86
    %107 = vmatprep.subr.mxu0 0.0
    %108 = vmatpush1.msra.mxu0 %v87
    %109 = vmatprep.subr.mxu0 0.0
    %110 = vmatpush1.msra.mxu0 %v88
    %111 = vmatprep.subr.mxu0 0.0
    %112 = vmatpush1.msra.mxu0 0.0
    %113 = vmatprep.subr.mxu0 0.0
    %114 = vmatpush1.msra.mxu0 0.0
    %115 = vmatprep.subr.mxu0 0.0
    %116 = vmatpush1.msra.mxu0 0.0
    %117 = vmatprep.subr.mxu0 0.0
    %118 = vmatpush1.msra.mxu0 0.0
    %119 = vmatprep.subr.mxu0 0.0
    %120 = vmatpush1.msra.mxu0 0.0
    %121 = vmatprep.subr.mxu0 0.0
    %122 = vmatpush1.msra.mxu0 0.0
    %123 = vmatprep.subr.mxu0 0.0
    %124 = vmatpush1.msra.mxu0 0.0
    %125 = vmatprep.subr.mxu0 0.0
    %126 = vmatpush1.msra.mxu0 0.0
    %127 = vmatprep.subr.mxu0 0.0
    %128 = vmatpush1.msra.mxu0 0.0
    %129 = vmatprep.subr.mxu0 0.0
    %130 = vmatpush1.msra.mxu0 0.0
    %131 = vmatprep.subr.mxu0 0.0
    %132 = vmatpush1.msra.mxu0 0.0
    %133 = vmatprep.subr.mxu0 0.0
    %134 = vmatpush1.msra.mxu0 0.0
    %135 = vmatprep.subr.mxu0 0.0
    %136 = vmatpush1.msra.mxu0 0.0
    %137 = vmatprep.subr.mxu0 0.0
    %138 = vmatpush1.msra.mxu0 0.0
    %139 = vmatprep.subr.mxu0 0.0
    %140 = vmatpush1.msra.mxu0 0.0
    %141 = vmatprep.subr.mxu0 0.0
    %142 = vmatpush1.msra.mxu0 0.0
    %143 = vmatprep.subr.mxu0 0.0
    %144 = vmatpush1.msra.mxu0 0.0
    %145 = vmatprep.subr.mxu0 0.0
    %146 = vmatpush1.msra.mxu0 0.0
    %147 = vmatprep.subr.mxu0 0.0
    %148 = vmatpush1.msra.mxu0 0.0
    %149 = vmatprep.subr.mxu0 0.0
    %150 = vmatpush1.msra.mxu0 0.0
    %151 = vmatprep.subr.mxu0 0.0
    %152 = vmatpush1.msra.mxu0 0.0
    %153 = vmatprep.subr.mxu0 0.0
    %154 = vmatpush1.msra.mxu0 0.0
    %155 = vmatprep.subr.mxu0 0.0
    %156 = vmatpush1.msra.mxu0 0.0
    %157 = vmatprep.subr.mxu0 0.0
    %158 = vmatpush1.msra.mxu0 0.0
    %159 = vmatprep.subr.mxu0 0.0
    %160 = vmatpush1.msra.mxu0 0.0
    %161 = vmatprep.subr.mxu0 0.0
    %162 = vmatpush1.msra.mxu0 0.0
    %163 = vmatprep.subr.mxu0 0.0
    %164 = vmatpush1.msra.mxu0 0.0
    %165 = vmatprep.subr.mxu0 0.0
    %166 = vmatpush1.msra.mxu0 0.0
    %167 = vmatprep.mubr.f32.mxu0 0.0
    %168 = vmatmul.mubr.f32.gmra.mrb[0].mxu0 %v98
    %v169 = vpop.f32.mrb[0].mxu0
    %v170 = vadd.f32 %v94, %v169
    %v171 = vpop.f32.mrb[0].mxu0
    %172 = vmatprep.mubr.f32.mxu0 0.0
    %173 = vmatmul.mubr.f32.gmra.mrb[0].mxu0 %v101
    %v174 = vpop.f32.mrb[0].mxu0
    %v175 = vadd.f32 %v94, %v174
    %v176 = vpop.f32.mrb[0].mxu0
    %177 = vdwg.mxu0
    %v178 = vmul.f32 %v170, 0.5
    %v179 = vmul.f32 %v175, 0.5
    %v180 = vmul.f32 %v170, 0.70710677
    %v181 = vmul.f32 %v175, 0.70710677
    %vm182 = vcmp.lt.f32.partialorder %v180, 0.0
    %vm183 = vcmp.lt.f32.partialorder %v181, 0.0
    %v184 = vsel %vm182, -1.0, 1.0
    %v185 = vsel %vm183, -1.0, 1.0
    %v186 = vand.u32 2147483647, %v180
    %v187 = vand.u32 2147483647, %v181
    %v188 = vmul.f32 %v186, 0.3275911
    %v189 = vmul.f32 %v187, 0.3275911
    %v190 = vadd.f32 %v188, 1.0
    %v191 = vadd.f32 %v189, 1.0
    %v192 = vrcp.pop %v190
    %v193 = vmul.f32 1.0, %v192
    %v194 = vrcp.pop %v191
    %v195 = vmul.f32 1.0, %v194
    %v196 = vmul.f32 %v193, 1.0614054
    %v197 = vmul.f32 %v195, 1.0614054
    %v198 = vadd.f32 %v196, -1.4531521
    %v199 = vadd.f32 %v197, -1.4531521
    %v200 = vmul.f32 %v198, %v193
    %v201 = vmul.f32 %v199, %v195
    %v202 = vadd.f32 %v200, 1.4214138
    %v203 = vadd.f32 %v201, 1.4214138
    %v204 = vmul.f32 %v202, %v193
    %v205 = vmul.f32 %v203, %v195
    %v206 = vadd.f32 %v204, -0.28449672
    %v207 = vadd.f32 %v205, -0.28449672
    %v208 = vmul.f32 %v206, %v193
    %v209 = vmul.f32 %v207, %v195
    %v210 = vadd.f32 %v208, 0.2548296
    %v211 = vadd.f32 %v209, 0.2548296
    %v212 = vmul.f32 %v210, %v193
    %v213 = vmul.f32 %v211, %v195
    %v214 = vsub.f32 0.0, %v186
    %v215 = vsub.f32 0.0, %v187
    %v216 = vmul.f32 %v214, %v186
    %v217 = vmul.f32 %v215, %v187
    %v218 = vmul.f32 %v216, 1.442695
    %v219 = vpow.pop %v218
    %v220 = vmul.f32 %v217, 1.442695
    %v221 = vpow.pop %v220
    %v222 = vmul.f32 %v212, %v219
    %v223 = vmul.f32 %v213, %v221
    %v224 = vsub.f32 1.0, %v222
    %v225 = vsub.f32 1.0, %v223
    %v226 = vmul.f32 %v184, %v224
    %v227 = vmul.f32 %v185, %v225
    %v228 = vadd.f32 %v226, 1.0
    %v229 = vadd.f32 %v227, 1.0
    %v230 = vmul.f32 %v178, %v228
    %v231 = vmul.f32 %v179, %v229
    %v232 = vld [vmem:[#allocation3] sm:$0xff]
    %v233 = vld [vmem:[#allocation3 + $0x8] sm:$0xff]
    %v234 = vld [vmem:[%s5] sm:$0xff]
    %v235 = vld [vmem:[%s5 + $0x8] sm:$0xff]
    %v236 = vld [vmem:[%s5 + $0x10] sm:$0xff]
    %v237 = vld [vmem:[%s5 + $0x18] sm:$0xff]
    %v238 = vld [vmem:[%s5 + $0x20] sm:$0xff]
    %v239 = vld [vmem:[%s5 + $0x28] sm:$0xff]
    %v240 = vld [vmem:[%s5 + $0x30] sm:$0xff]
    %v241 = vld [vmem:[%s5 + $0x38] sm:$0xff]
    %v242 = vld [vmem:[%s5 + $0x40] sm:$0xff]
    %v243 = vld [vmem:[%s5 + $0x48] sm:$0xff]
    %v244 = vld [vmem:[%s5 + $0x50] sm:$0xff]
    %v245 = vld [vmem:[%s5 + $0x58] sm:$0xff]
    %v246 = vld [vmem:[%s5 + $0x60] sm:$0xff]
    %v247 = vld [vmem:[%s5 + $0x68] sm:$0xff]
    %v248 = vld [vmem:[%s5 + $0x70] sm:$0xff]
    %v249 = vld [vmem:[%s5 + $0x78] sm:$0xff]
    %250 = vmatprep.subr.mxu0 0.0
    %251 = vmatpush1.msra.mxu0 %v234
    %252 = vmatprep.subr.mxu0 0.0
    %253 = vmatpush1.msra.mxu0 %v235
    %254 = vmatprep.subr.mxu0 0.0
    %255 = vmatpush1.msra.mxu0 %v236
    %256 = vmatprep.subr.mxu0 0.0
    %257 = vmatpush1.msra.mxu0 %v237
    %258 = vmatprep.subr.mxu0 0.0
    %259 = vmatpush1.msra.mxu0 %v238
    %260 = vmatprep.subr.mxu0 0.0
    %261 = vmatpush1.msra.mxu0 %v239
    %262 = vmatprep.subr.mxu0 0.0
    %263 = vmatpush1.msra.mxu0 %v240
    %264 = vmatprep.subr.mxu0 0.0
    %265 = vmatpush1.msra.mxu0 %v241
    %266 = vmatprep.subr.mxu0 0.0
    %267 = vmatpush1.msra.mxu0 %v242
    %268 = vmatprep.subr.mxu0 0.0
    %269 = vmatpush1.msra.mxu0 %v243
    %270 = vmatprep.subr.mxu0 0.0
    %271 = vmatpush1.msra.mxu0 %v244
    %272 = vmatprep.subr.mxu0 0.0
    %273 = vmatpush1.msra.mxu0 %v245
    %274 = vmatprep.subr.mxu0 0.0
    %275 = vmatpush1.msra.mxu0 %v246
    %276 = vmatprep.subr.mxu0 0.0
    %277 = vmatpush1.msra.mxu0 %v247
    %278 = vmatprep.subr.mxu0 0.0
    %279 = vmatpush1.msra.mxu0 %v248
    %280 = vmatprep.subr.mxu0 0.0
    %281 = vmatpush1.msra.mxu0 %v249
    %282 = vmatprep.subr.mxu0 0.0
    %283 = vmatpush1.msra.mxu0 0.0
    %284 = vmatprep.subr.mxu0 0.0
    %285 = vmatpush1.msra.mxu0 0.0
    %286 = vmatprep.subr.mxu0 0.0
    %287 = vmatpush1.msra.mxu0 0.0
    %288 = vmatprep.subr.mxu0 0.0
    %289 = vmatpush1.msra.mxu0 0.0
    %290 = vmatprep.subr.mxu0 0.0
    %291 = vmatpush1.msra.mxu0 0.0
    %292 = vmatprep.subr.mxu0 0.0
    %293 = vmatpush1.msra.mxu0 0.0
    %294 = vmatprep.subr.mxu0 0.0
    %295 = vmatpush1.msra.mxu0 0.0
    %296 = vmatprep.subr.mxu0 0.0
    %297 = vmatpush1.msra.mxu0 0.0
    %298 = vmatprep.subr.mxu0 0.0
    %299 = vmatpush1.msra.mxu0 0.0
    %300 = vmatprep.subr.mxu0 0.0
    %301 = vmatpush1.msra.mxu0 0.0
    %302 = vmatprep.subr.mxu0 0.0
    %303 = vmatpush1.msra.mxu0 0.0
    %304 = vmatprep.subr.mxu0 0.0
    %305 = vmatpush1.msra.mxu0 0.0
    %306 = vmatprep.subr.mxu0 0.0
    %307 = vmatpush1.msra.mxu0 0.0
    %308 = vmatprep.subr.mxu0 0.0
    %309 = vmatpush1.msra.mxu0 0.0
    %310 = vmatprep.subr.mxu0 0.0
    %311 = vmatpush1.msra.mxu0 0.0
    %312 = vmatprep.subr.mxu0 0.0
    %313 = vmatpush1.msra.mxu0 0.0
    %314 = vmatprep.mubr.f32.mxu0 0.0
    %315 = vmatmul.mubr.f32.gmra.mrb[0].mxu0 %v230
    %v316 = vpop.f32.mrb[0].mxu0
    %v317 = vadd.f32 0.0, %v316
    %v318 = vpop.f32.mrb[0].mxu0
    %319 = vmatprep.mubr.f32.mxu0 0.0
    %320 = vmatmul.mubr.f32.gmra.mrb[0].mxu0 %v231
    %v321 = vpop.f32.mrb[0].mxu0
    %v322 = vadd.f32 0.0, %v321
    %v323 = vpop.f32.mrb[0].mxu0
    %324 = vdwg.mxu0
    %v325 = vadd.f32 %v232, %v317
    %v326 = vadd.f32 %v233, %v322
    %327 = vst.msk [vmem:[#allocation3] sm:$0xff] %vm96, %v325
    %328 = vst.msk [vmem:[#allocation3 + $0x8] sm:$0xff] %vm96, %v326
    // Predicated region
    $region34: #{residual_attention_block.15} parent=1 // pred_check
      %p329 = pneg %p27
    $region35: #{residual_attention_block.15} parent=1 // pred_check_branch
      %331 = sbr.rel (%p329) target = $region37
    $region36: #{residual_attention_block.15} parent=1 // pred_region
      %v332 = vld [vmem:[#allocation3] sm:$0xff]
      %v333 = vld [vmem:[#allocation3 + $0x8] sm:$0xff]
      %v334 = vld [vmem:[%s6] sm:$0x1]
      %v336 = vlaneseq
      %v337 = vshrl.u32 %v336, 7
      %v338 = vsub.s32 0, %v337
      %v339 = vrot.slane %v334, %v338
      %v341 = vadd.f32 %v332, %v339
      %v342 = vadd.f32 %v333, %v339
      %v343 = vld [vmem:[%s0] sm:$0xff]
      %v344 = vld [vmem:[%s0 + $0x8] sm:$0xff]
      %v345 = vadd.f32 %v341, %v343
      %v346 = vadd.f32 %v342, %v344
      %347 = vst.msk [vmem:[#allocation4] sm:$0xff] %vm96, %v345
      %348 = vst.msk [vmem:[#allocation4 + $0x8] sm:$0xff] %vm96, %v346
    $region37: #{residual_attention_block.15} parent=1 // pred_fallthru
      _
    // Predicated region
    $region38: #{residual_attention_block.15} parent=1 // pred_check
      _
    $region39: #{residual_attention_block.15} parent=1 // pred_check_branch
      %350 = sbr.rel (0) target = $region41
    $region40: #{residual_attention_block.15} parent=1 // pred_region
      %s352 = ssub.s32 256, 256
      %353 = vsyncadd [#allocation5], %s352
      %s354 = sshll.u32 [#allocation4], 4
      %s355 = int_to_ptr.vmem [resolvable:$true] %s354
      %360 = dma.vmem_to_hbm [thread:$0]  %s355, 256, %s7, [#allocation5], 128, 128, 8
    $region41: #{residual_attention_block.15} parent=1 // pred_fallthru
      _
    // Predicated region
    $region42: #{residual_attention_block.15} parent=1 // pred_check
      _
    $region43: #{residual_attention_block.15} parent=1 // pred_check_branch
      %362 = sbr.rel (0) target = $region45
    $region44: #{residual_attention_block.15} parent=1 // pred_region
      %363 = dma.done [#allocation5], 256
    $region45: #{residual_attention_block.15} parent=1 // pred_fallthru
      _
    %364 = vsyncpa [#allocation5], 1

// kernel: residual_attention_block.13
$region0: #{residual_attention_block.13}
  #allocation0 [shape = 'u32[]', space=smem, size = 0x4, offset = 0x4, fixed_abs, tag = 'smem constant byte address 0x4 - core index']
  #allocation1 [shape = 'u32[144,128]{1,0:T(1,128)}', space=vmem, size = 0x12000, scoped, tag = 'internal scratch']
  #allocation2 [shape = 'f32[8,4]{1,0:T(8,128)}', space=vmem, size = 0x1000, scoped, tag = 'scratch operand']
  #allocation3 [shape = 'f32[8,4]{1,0:T(8,128)}', space=vmem, size = 0x1000, scoped, tag = 'scratch operand']
  #allocation4 [shape = 'f32[8,32]{1,0:T(8,128)}', space=vmem, size = 0x1000, scoped, tag = 'scratch operand']
  %s0 = inlined_call_operand.vmem [shape: f32[2,8,32], index: 0, kind: input, shape index: {}]
  %s1 = inlined_call_operand.vmem [shape: f32[2,16,32], index: 1, kind: input, shape index: {}]
  %s2 = inlined_call_operand.vmem [shape: f32[2,16,32], index: 2, kind: input, shape index: {}]
  %s3 = inlined_call_operand.vmem [shape: f32[2,8,32], index: 3, kind: output, shape index: {}]
  %s4 = sld [smem:[#allocation0]]
  $region53: #{residual_attention_block.13} parent=0
    _
  %s6 = ssub.s32 1, %s4
  %s7 = scalar_select 0, %s6, %s4
  loop: start=0, step=1, limit=4
  $region2: #{residual_attention_block.13} parent=0 // loop_pre_header
    _
  $region3: #{residual_attention_block.13} parent=0 // loop_header
    %s9 = sphi 0, %s13
    %p10 = scmp.ge.s32.totalorder %s9, 4
    %s16 = sphi 0, %s42
    %s17 = sphi 0, %s38
    %s18 = sphi 0, %s34
    %s19 = sphi 0, %s30
    %s20 = sphi 0, %s16
    %s21 = sphi 0, %s17
    %s22 = sphi 0, %s18
    %s23 = sphi 0, %s19
    %s24 = sphi 0, %s20
    %s25 = sphi 0, %s21
    %s26 = sphi 0, %s22
    %s27 = sphi 0, %s23
    %s49 = sphi 0, %s51
    %s52 = sphi 0, %s49
    %s53 = sphi 0, %s52
    %s69 = sphi 0, %s53
    %s79 = sphi 0, %s81
    %s82 = sphi 0, %s79
    %s83 = sphi 0, %s82
    %s99 = sphi 0, %s83
    %s109 = sphi 0, %s111
    %s112 = sphi 0, %s109
    %s113 = sphi 0, %s112
    %s129 = sphi 0, %s113
    %s139 = sphi 0, %s141
    %s142 = sphi 0, %s139
    %s143 = sphi 0, %s142
    %s159 = sphi 0, %s143
  $region4: #{residual_attention_block.13} parent=0 // loop_header_branch
    %12 = sbr.rel (%p10) target = $region8
  $region5: #{residual_attention_block.13} parent=0 // loop_body
    %s14 = ssub.s32 %s9, 1
    %s15 = ssub.s32 %s9, 2
    %s28 = sadd.s32 1, %s19
    %p29 = scmp.ge.s32.totalorder %s28, 1
    %s30 = scalar_select %p29, 0, %s28
    %s31 = sadd.s32 1, %s18
    %s32 = scalar_select %p29, %s31, %s18
    %p33 = scmp.ge.s32.totalorder %s32, 1
    %s34 = scalar_select %p33, 0, %s32
    %s35 = sadd.s32 1, %s17
    %s36 = scalar_select %p33, %s35, %s17
    %p37 = scmp.ge.s32.totalorder %s36, 1
    %s38 = scalar_select %p37, 0, %s36
    %s39 = sadd.s32 1, %s16
    %s40 = scalar_select %p37, %s39, %s16
    %p41 = scmp.ge.s32.totalorder %s40, 2
    %s42 = scalar_select %p41, 0, %s40
    %s43 = ssub.s32 %s16, %s42
    %s44 = ssub.s32 %s18, %s34
    %s45 = sor.u32 %s43, %s44
    %s46 = ssub.s32 %s17, %s38
    %s47 = sor.u32 %s45, %s46
    %p48 = scmp.eq.s32.totalorder %s47, 0
    %s50 = sadd.s32 %s49, 1
    %s51 = scalar_select %p48, %s49, %s50
    %p54 = pneg %p48
    %p55 = scmp.eq.s32.totalorder %s9, 1
    %p56 = por %p54, %p55
    %p57 = scmp.ne.s32.totalorder %s49, %s52
    %p58 = scmp.eq.s32.totalorder %s9, 0
    %p59 = por %p57, %p58
    %p60 = scmp.ne.s32.totalorder %s49, %s52
    %p61 = scmp.eq.s32.totalorder %s14, 1
    %p62 = por %p60, %p61
    %p63 = scmp.ne.s32.totalorder %s52, %s53
    %p64 = scmp.eq.s32.totalorder %s14, 0
    %p65 = por %p63, %p64
    %p66 = scmp.ne.s32.totalorder %s52, %s53
    %p67 = scmp.eq.s32.totalorder %s15, 1
    %p68 = por %p66, %p67
    %p70 = scmp.ne.s32.totalorder %s53, %s69
    %p71 = scmp.eq.s32.totalorder %s15, 0
    %p72 = por %p70, %p71
    %s73 = ssub.s32 %s16, %s42
    %s74 = ssub.s32 %s19, %s30
    %s75 = sor.u32 %s73, %s74
    %s76 = ssub.s32 %s17, %s38
    %s77 = sor.u32 %s75, %s76
    %p78 = scmp.eq.s32.totalorder %s77, 0
    %s80 = sadd.s32 %s79, 1
    %s81 = scalar_select %p78, %s79, %s80
    %p84 = pneg %p78
    %p85 = scmp.eq.s32.totalorder %s9, 1
    %p86 = por %p84, %p85
    %p87 = scmp.ne.s32.totalorder %s79, %s82
    %p88 = scmp.eq.s32.totalorder %s9, 0
    %p89 = por %p87, %p88
    %p90 = scmp.ne.s32.totalorder %s79, %s82
    %p91 = scmp.eq.s32.totalorder %s14, 1
    %p92 = por %p90, %p91
    %p93 = scmp.ne.s32.totalorder %s82, %s83
    %p94 = scmp.eq.s32.totalorder %s14, 0
    %p95 = por %p93, %p94
    %p96 = scmp.ne.s32.totalorder %s82, %s83
    %p97 = scmp.eq.s32.totalorder %s15, 1
    %p98 = por %p96, %p97
    %p100 = scmp.ne.s32.totalorder %s83, %s99
    %p101 = scmp.eq.s32.totalorder %s15, 0
    %p102 = por %p100, %p101
    %s103 = ssub.s32 %s16, %s42
    %s104 = ssub.s32 %s19, %s30
    %s105 = sor.u32 %s103, %s104
    %s106 = ssub.s32 %s17, %s38
    %s107 = sor.u32 %s105, %s106
    %p108 = scmp.eq.s32.totalorder %s107, 0
    %s110 = sadd.s32 %s109, 1
    %s111 = scalar_select %p108, %s109, %s110
    %p114 = pneg %p108
    %p115 = scmp.eq.s32.totalorder %s9, 1
    %p116 = por %p114, %p115
    %p117 = scmp.ne.s32.totalorder %s109, %s112
    %p118 = scmp.eq.s32.totalorder %s9, 0
    %p119 = por %p117, %p118
    %p120 = scmp.ne.s32.totalorder %s109, %s112
    %p121 = scmp.eq.s32.totalorder %s14, 1
    %p122 = por %p120, %p121
    %p123 = scmp.ne.s32.totalorder %s112, %s113
    %p124 = scmp.eq.s32.totalorder %s14, 0
    %p125 = por %p123, %p124
    %p126 = scmp.ne.s32.totalorder %s112, %s113
    %p127 = scmp.eq.s32.totalorder %s15, 1
    %p128 = por %p126, %p127
    %p130 = scmp.ne.s32.totalorder %s113, %s129
    %p131 = scmp.eq.s32.totalorder %s15, 0
    %p132 = por %p130, %p131
    %s133 = ssub.s32 %s16, %s42
    %s134 = ssub.s32 %s18, %s34
    %s135 = sor.u32 %s133, %s134
    %s136 = ssub.s32 %s17, %s38
    %s137 = sor.u32 %s135, %s136
    %p138 = scmp.eq.s32.totalorder %s137, 0
    %s140 = sadd.s32 %s139, 1
    %s141 = scalar_select %p138, %s139, %s140
    %p144 = pneg %p138
    %p145 = scmp.eq.s32.totalorder %s9, 1
    %p146 = por %p144, %p145
    %p147 = scmp.ne.s32.totalorder %s139, %s142
    %p148 = scmp.eq.s32.totalorder %s9, 0
    %p149 = por %p147, %p148
    %p150 = scmp.ne.s32.totalorder %s139, %s142
    %p151 = scmp.eq.s32.totalorder %s14, 1
    %p152 = por %p150, %p151
    %p153 = scmp.ne.s32.totalorder %s142, %s143
    %p154 = scmp.eq.s32.totalorder %s14, 0
    %p155 = por %p153, %p154
    %p156 = scmp.ne.s32.totalorder %s142, %s143
    %p157 = scmp.eq.s32.totalorder %s15, 1
    %p158 = por %p156, %p157
    %p160 = scmp.ne.s32.totalorder %s143, %s159
    %p161 = scmp.eq.s32.totalorder %s15, 0
    %p162 = por %p160, %p161
    %p163 = scmp.le.s32.totalorder 1, %s9
    %p164 = scmp.lt.s32.totalorder %s9, 3
    %p165 = pnand %p163, %p164
    %p166 = pneg %p165
    // Predicated region
    $region9: #{residual_attention_block.13} parent=5 // pred_check
      _
    $region10: #{residual_attention_block.13} parent=5 // pred_check_branch
      %168 = sbr.rel (%p165) target = $region12
    $region11: #{residual_attention_block.13} parent=5 // pred_region
      %s169 = ssub.s32 %s9, 1
    $region12: #{residual_attention_block.13} parent=5 // pred_fallthru
      _
    %p170 = scmp.lt.s32.totalorder %s9, 2
    // Predicated region
    $region13: #{residual_attention_block.13} parent=5 // pred_check
      %p171 = pneg %p170
    $region14: #{residual_attention_block.13} parent=5 // pred_check_branch
      %173 = sbr.rel (%p171) target = $region16
    $region15: #{residual_attention_block.13} parent=5 // pred_region
      // Predicated region
      $region17: #{residual_attention_block.13} parent=15 // pred_check
        %p174 = pneg %p59
      $region18: #{residual_attention_block.13} parent=15 // pred_check_branch
        %176 = sbr.rel (%p174) target = $region20
      $region19: #{residual_attention_block.13} parent=15 // pred_region
        %p177 = scmp.lt.s32.totalorder %s16, 1
        %s178 = scalar_select %p177, %s16, 1
        %p179 = scmp.lt.s32.totalorder %s18, 0
        %s180 = scalar_select %p179, %s18, 0
        %p181 = scmp.lt.s32.totalorder %s17, 0
        %s182 = scalar_select %p181, %s17, 0
        %s183 = sadd.s32 %s182, %s180
        %s184 = sadd.s32 %s183, %s178
        %s185 = smul.addr %s184, 8
        %s186 = scalar_lea.vmem %s0, %s185
      $region20: #{residual_attention_block.13} parent=15 // pred_fallthru
        _
      // Predicated region
      $region21: #{residual_attention_block.13} parent=15 // pred_check
        %p187 = pneg %p89
      $region22: #{residual_attention_block.13} parent=15 // pred_check_branch
        %189 = sbr.rel (%p187) target = $region24
      $region23: #{residual_attention_block.13} parent=15 // pred_region
        %s190 = smul.u32 2, %s19
        %p191 = scmp.lt.s32.totalorder %s16, 1
        %s192 = scalar_select %p191, %s16, 1
        %p193 = scmp.lt.s32.totalorder %s190, 1
        %s194 = scalar_select %p193, %s190, 1
        %p195 = scmp.lt.s32.totalorder %s17, 0
        %s196 = scalar_select %p195, %s17, 0
        %s197 = sadd.s32 %s196, %s194
        %s198 = smul.addr %s192, 2
        %s199 = sadd.s32 %s197, %s198
        %s200 = smul.addr %s199, 8
        %s201 = scalar_lea.vmem %s1, %s200
        %s202 = smul.u32 2, %s19
      $region24: #{residual_attention_block.13} parent=15 // pred_fallthru
        _
      // Predicated region
      $region25: #{residual_attention_block.13} parent=15 // pred_check
        %p203 = pneg %p119
      $region26: #{residual_attention_block.13} parent=15 // pred_check_branch
        %205 = sbr.rel (%p203) target = $region28
      $region27: #{residual_attention_block.13} parent=15 // pred_region
        %s206 = smul.u32 2, %s19
        %p207 = scmp.lt.s32.totalorder %s16, 1
        %s208 = scalar_select %p207, %s16, 1
        %p209 = scmp.lt.s32.totalorder %s206, 1
        %s210 = scalar_select %p209, %s206, 1
        %p211 = scmp.lt.s32.totalorder %s17, 0
        %s212 = scalar_select %p211, %s17, 0
        %s213 = sadd.s32 %s212, %s210
        %s214 = smul.addr %s208, 2
        %s215 = sadd.s32 %s213, %s214
        %s216 = smul.addr %s215, 8
        %s217 = scalar_lea.vmem %s2, %s216
        %s218 = smul.u32 2, %s19
      $region28: #{residual_attention_block.13} parent=15 // pred_fallthru
        _
    $region16: #{residual_attention_block.13} parent=5 // pred_fallthru
      _
    %p219 = scmp.le.s32.totalorder 1, %s9
    %p220 = scmp.lt.s32.totalorder %s9, 3
    %p221 = pnand %p219, %p220
    %p222 = pneg %p221
    // Predicated region
    $region29: #{residual_attention_block.13} parent=5 // pred_check
      _
    $region30: #{residual_attention_block.13} parent=5 // pred_check_branch
      %224 = sbr.rel (%p221) target = $region32
    $region31: #{residual_attention_block.13} parent=5 // pred_region
      %s225 = ssub.s32 %s9, 1
      %p226 = scmp.lt.s32.totalorder %s20, 1
      %s227 = scalar_select %p226, %s20, 1
      %p228 = scmp.lt.s32.totalorder %s22, 0
      %s229 = scalar_select %p228, %s22, 0
      %p230 = scmp.lt.s32.totalorder %s21, 0
      %s231 = scalar_select %p230, %s21, 0
      %s232 = sadd.s32 %s231, %s229
      %s233 = sadd.s32 %s232, %s227
      %s234 = smul.addr %s233, 8
      %s235 = scalar_lea.vmem %s0, %s234
      %p236 = pneg %p65
      %p237 = pneg %p62
      %s238 = smul.u32 2, %s23
      %p239 = scmp.lt.s32.totalorder %s20, 1
      %s240 = scalar_select %p239, %s20, 1
      %p241 = scmp.lt.s32.totalorder %s238, 1
      %s242 = scalar_select %p241, %s238, 1
      %p243 = scmp.lt.s32.totalorder %s21, 0
      %s244 = scalar_select %p243, %s21, 0
      %s245 = sadd.s32 %s244, %s242
      %s246 = smul.addr %s240, 2
      %s247 = sadd.s32 %s245, %s246
      %s248 = smul.addr %s247, 8
      %s249 = scalar_lea.vmem %s1, %s248
      %p250 = pneg %p95
      %p251 = pneg %p92
      %s252 = smul.u32 2, %s23
      %p253 = scmp.lt.s32.totalorder %s20, 1
      %s254 = scalar_select %p253, %s20, 1
      %p255 = scmp.lt.s32.totalorder %s252, 1
      %s256 = scalar_select %p255, %s252, 1
      %p257 = scmp.lt.s32.totalorder %s21, 0
      %s258 = scalar_select %p257, %s21, 0
      %s259 = sadd.s32 %s258, %s256
      %s260 = smul.addr %s254, 2
      %s261 = sadd.s32 %s259, %s260
      %s262 = smul.addr %s261, 8
      %s263 = scalar_lea.vmem %s2, %s262
      %p264 = pneg %p125
      %p265 = pneg %p122
      %p266 = pneg %p155
      %p267 = pneg %p152
      %p268 = scmp.lt.s32.totalorder %s20, 1
      %s269 = scalar_select %p268, %s20, 1
      %p270 = scmp.lt.s32.totalorder %s22, 0
      %s271 = scalar_select %p270, %s22, 0
      %p272 = scmp.lt.s32.totalorder %s21, 0
      %s273 = scalar_select %p272, %s21, 0
      %s274 = sadd.s32 %s273, %s271
      %s275 = sadd.s32 %s274, %s269
      %s276 = smul.addr %s275, 8
      %s277 = scalar_lea.vmem %s3, %s276
      %p278 = scmp.lt.s32.totalorder %s20, 1
      %s279 = scalar_select %p278, %s20, 1
      %p280 = scmp.lt.s32.totalorder %s22, 0
      %s281 = scalar_select %p280, %s22, 0
      %p282 = scmp.lt.s32.totalorder %s21, 0
      %s283 = scalar_select %p282, %s21, 0
      %s284 = sadd.s32 %s283, %s281
      %s285 = sadd.s32 %s284, %s279
      %s286 = smul.addr %s285, 8
      %s287 = scalar_lea.vmem %s0, %s286
      %s288 = smul.u32 2, %s23
      %p289 = scmp.lt.s32.totalorder %s20, 1
      %s290 = scalar_select %p289, %s20, 1
      %p291 = scmp.lt.s32.totalorder %s288, 1
      %s292 = scalar_select %p291, %s288, 1
      %p293 = scmp.lt.s32.totalorder %s21, 0
      %s294 = scalar_select %p293, %s21, 0
      %s295 = sadd.s32 %s294, %s292
      %s296 = smul.addr %s290, 2
      %s297 = sadd.s32 %s295, %s296
      %s298 = smul.addr %s297, 8
      %s299 = scalar_lea.vmem %s1, %s298
      %s300 = smul.u32 2, %s23
      %s301 = smul.u32 2, %s23
      %p302 = scmp.lt.s32.totalorder %s20, 1
      %s303 = scalar_select %p302, %s20, 1
      %p304 = scmp.lt.s32.totalorder %s301, 1
      %s305 = scalar_select %p304, %s301, 1
      %p306 = scmp.lt.s32.totalorder %s21, 0
      %s307 = scalar_select %p306, %s21, 0
      %s308 = sadd.s32 %s307, %s305
      %s309 = smul.addr %s303, 2
      %s310 = sadd.s32 %s308, %s309
      %s311 = smul.addr %s310, 8
      %s312 = scalar_lea.vmem %s2, %s311
      %s313 = smul.u32 2, %s23
      %p314 = scmp.lt.s32.totalorder %s20, 1
      %s315 = scalar_select %p314, %s20, 1
      %p316 = scmp.lt.s32.totalorder %s22, 0
      %s317 = scalar_select %p316, %s22, 0
      %p318 = scmp.lt.s32.totalorder %s21, 0
      %s319 = scalar_select %p318, %s21, 0
      %s320 = sadd.s32 %s319, %s317
      %s321 = sadd.s32 %s320, %s315
      %s322 = smul.addr %s321, 8
      %s323 = scalar_lea.vmem %s3, %s322
      %p324 = scmp.eq.s32.totalorder %s23, 0
      // Predicated region
      $region33: #{residual_attention_block.13} parent=31 // pred_check
        %p325 = pneg %p324
      $region34: #{residual_attention_block.13} parent=31 // pred_check_branch
        %327 = sbr.rel (%p325) target = $region36
      $region35: #{residual_attention_block.13} parent=31 // pred_region
        %vm328 = vcmask 31744
        %329 = vst.msk [vmem:[#allocation2] sm:$0xff] %vm328, -1e+30
        %330 = vst.msk [vmem:[#allocation3] sm:$0xff] %vm328, 0.0
        %vm331 = vcmask 261120
        %332 = vst.msk [vmem:[#allocation4] sm:$0xff] %vm331, 0.0
      $region36: #{residual_attention_block.13} parent=31 // pred_fallthru
        _
      %v333 = vld [vmem:[%s287] sm:$0xff]
      %v334 = vld [vmem:[%s299] sm:$0xff]
      %v335 = vld [vmem:[%s299 + $0x8] sm:$0xff]
      %v336 = vld [vmem:[%s312] sm:$0xff]
      %v337 = vld [vmem:[%s312 + $0x8] sm:$0xff]
      %s338 = smul.u32 %s23, 16
      %v339 = vlaneseq
      %v340 = vand.u32 %v339, 127
      %v341 = vstv %s338
      %v342 = vadd.s32 %v341, %v340
      %vm343 = vcmp.ge.s32.totalorder %v342, 16
      %v344 = vmul.f32 %v333, 0.35355338
      %vm345 = vcmask 64512
      %v347 = vsel %vm345, %v344, 0
      %v350 = vsel %vm345, %v334, 0
      %v353 = vsel %vm345, %v335, 0
      %355 = vmatprep.subr.mxu0 0.0
      %356 = vmatpush1.xpose.msra.mxu0 %v350
      %357 = vmatprep.subr.mxu0 0.0
      %358 = vmatpush1.xpose.msra.mxu0 %v353
      %359 = vmatprep.subr.mxu0 0.0
      %360 = vmatpush1.xpose.msra.mxu0 0.0
      %361 = vmatprep.subr.mxu0 0.0
      %362 = vmatpush1.xpose.msra.mxu0 0.0
      %363 = vmatprep.subr.mxu0 0.0
      %364 = vmatpush1.xpose.msra.mxu0 0.0
      %365 = vmatprep.subr.mxu0 0.0
      %366 = vmatpush1.xpose.msra.mxu0 0.0
      %367 = vmatprep.subr.mxu0 0.0
      %368 = vmatpush1.xpose.msra.mxu0 0.0
      %369 = vmatprep.subr.mxu0 0.0
      %370 = vmatpush1.xpose.msra.mxu0 0.0
      %371 = vmatprep.subr.mxu0 0.0
      %372 = vmatpush1.xpose.msra.mxu0 0.0
      %373 = vmatprep.subr.mxu0 0.0
      %374 = vmatpush1.xpose.msra.mxu0 0.0
      %375 = vmatprep.subr.mxu0 0.0
      %376 = vmatpush1.xpose.msra.mxu0 0.0
      %377 = vmatprep.subr.mxu0 0.0
      %378 = vmatpush1.xpose.msra.mxu0 0.0
      %379 = vmatprep.subr.mxu0 0.0
      %380 = vmatpush1.xpose.msra.mxu0 0.0
      %381 = vmatprep.subr.mxu0 0.0
      %382 = vmatpush1.xpose.msra.mxu0 0.0
      %383 = vmatprep.subr.mxu0 0.0
      %384 = vmatpush1.xpose.msra.mxu0 0.0
      %385 = vmatprep.subr.mxu0 0.0
      %386 = vmatpush1.xpose.msra.mxu0 0.0
      %387 = vmatprep.subr.mxu0 0.0
      %388 = vmatpush1.xpose.msra.mxu0 0.0
      %389 = vmatprep.subr.mxu0 0.0
      %390 = vmatpush1.xpose.msra.mxu0 0.0
      %391 = vmatprep.subr.mxu0 0.0
      %392 = vmatpush1.xpose.msra.mxu0 0.0
      %393 = vmatprep.subr.mxu0 0.0
      %394 = vmatpush1.xpose.msra.mxu0 0.0
      %395 = vmatprep.subr.mxu0 0.0
      %396 = vmatpush1.xpose.msra.mxu0 0.0
      %397 = vmatprep.subr.mxu0 0.0
      %398 = vmatpush1.xpose.msra.mxu0 0.0
      %399 = vmatprep.subr.mxu0 0.0
      %400 = vmatpush1.xpose.msra.mxu0 0.0
      %401 = vmatprep.subr.mxu0 0.0
      %402 = vmatpush1.xpose.msra.mxu0 0.0
      %403 = vmatprep.subr.mxu0 0.0
      %404 = vmatpush1.xpose.msra.mxu0 0.0
      %405 = vmatprep.subr.mxu0 0.0
      %406 = vmatpush1.xpose.msra.mxu0 0.0
      %407 = vmatprep.subr.mxu0 0.0
      %408 = vmatpush1.xpose.msra.mxu0 0.0
      %409 = vmatprep.subr.mxu0 0.0
      %410 = vmatpush1.xpose.msra.mxu0 0.0
      %411 = vmatprep.subr.mxu0 0.0
      %412 = vmatpush1.xpose.msra.mxu0 0.0
      %413 = vmatprep.subr.mxu0 0.0
      %414 = vmatpush1.xpose.msra.mxu0 0.0
      %415 = vmatprep.subr.mxu0 0.0
      %416 = vmatpush1.xpose.msra.mxu0 0.0
      %417 = vmatprep.subr.mxu0 0.0
      %418 = vmatpush1.xpose.msra.mxu0 0.0
      %419 = vmatprep.mubr.f32.mxu0 0.0
      %420 = vmatmul.mubr.f32.gmra.mrb[0].mxu0 %v347
      %v421 = vpop.f32.mrb[0].mxu0
      %v422 = vadd.f32 0.0, %v421
      %v423 = vpop.f32.mrb[0].mxu0
      %424 = vdwg.mxu0
      %v425 = vsel %vm343, -1e+30, %v422
      %v426 = vld [vmem:[#allocation2] sm:$0xff]
      %vm427 = vcmask 130048
      %v428 = vsel %vm427, %v425, -inf
      %429 = vmax.xlane.f32.xlu0 %v428
      %v430 = vpop.xlane.xlu0 %429
      %v431 = vmax.f32 %v426, %v430
      %v432 = vsub.f32 %v426, %v431
      %v433 = vmul.f32 %v432, 1.442695
      %v434 = vpow.pop %v433
      %436 = vset.pattern.permute.xlu0 0
      %437 = vperm.xlu0 %436, %v431
      %v438 = vpop.permute.xlu0 %437
      %v440 = vsub.f32 %v425, %v438
      %v441 = vmul.f32 %v440, 1.442695
      %v442 = vpow.pop %v441
      %v443 = vld [vmem:[#allocation3] sm:$0xff]
      %v444 = vmul.f32 %v434, %v443
      %v445 = vsel %vm427, %v442, 0.0
      %446 = vadd.xlane.f32.xlu0 %v445
      %v447 = vpop.xlane.xlu0 %446
      %v448 = vadd.f32 %v444, %v447
      %vm449 = vcmask 7168
      %450 = vst.msk [vmem:[#allocation3] sm:$0xff] %vm449, %v448
      %v452 = vsel %vm427, %v442, 0
      %454 = vmatprep.subr.mxu0 0.0
      %455 = vmatpush1.msra.mxu0 %v336
      %456 = vmatprep.subr.mxu0 0.0
      %457 = vmatpush1.msra.mxu0 %v337
      %458 = vmatprep.subr.mxu0 0.0
      %459 = vmatpush1.msra.mxu0 0.0
      %460 = vmatprep.subr.mxu0 0.0
      %461 = vmatpush1.msra.mxu0 0.0
      %462 = vmatprep.subr.mxu0 0.0
      %463 = vmatpush1.msra.mxu0 0.0
      %464 = vmatprep.subr.mxu0 0.0
      %465 = vmatpush1.msra.mxu0 0.0
      %466 = vmatprep.subr.mxu0 0.0
      %467 = vmatpush1.msra.mxu0 0.0
      %468 = vmatprep.subr.mxu0 0.0
      %469 = vmatpush1.msra.mxu0 0.0
      %470 = vmatprep.subr.mxu0 0.0
      %471 = vmatpush1.msra.mxu0 0.0
      %472 = vmatprep.subr.mxu0 0.0
      %473 = vmatpush1.msra.mxu0 0.0
      %474 = vmatprep.subr.mxu0 0.0
      %475 = vmatpush1.msra.mxu0 0.0
      %476 = vmatprep.subr.mxu0 0.0
      %477 = vmatpush1.msra.mxu0 0.0
      %478 = vmatprep.subr.mxu0 0.0
      %479 = vmatpush1.msra.mxu0 0.0
      %480 = vmatprep.subr.mxu0 0.0
      %481 = vmatpush1.msra.mxu0 0.0
      %482 = vmatprep.subr.mxu0 0.0
      %483 = vmatpush1.msra.mxu0 0.0
      %484 = vmatprep.subr.mxu0 0.0
      %485 = vmatpush1.msra.mxu0 0.0
      %486 = vmatprep.subr.mxu0 0.0
      %487 = vmatpush1.msra.mxu0 0.0
      %488 = vmatprep.subr.mxu0 0.0
      %489 = vmatpush1.msra.mxu0 0.0
      %490 = vmatprep.subr.mxu0 0.0
      %491 = vmatpush1.msra.mxu0 0.0
      %492 = vmatprep.subr.mxu0 0.0
      %493 = vmatpush1.msra.mxu0 0.0
      %494 = vmatprep.subr.mxu0 0.0
      %495 = vmatpush1.msra.mxu0 0.0
      %496 = vmatprep.subr.mxu0 0.0
      %497 = vmatpush1.msra.mxu0 0.0
      %498 = vmatprep.subr.mxu0 0.0
      %499 = vmatpush1.msra.mxu0 0.0
      %500 = vmatprep.subr.mxu0 0.0
      %501 = vmatpush1.msra.mxu0 0.0
      %502 = vmatprep.subr.mxu0 0.0
      %503 = vmatpush1.msra.mxu0 0.0
      %504 = vmatprep.subr.mxu0 0.0
      %505 = vmatpush1.msra.mxu0 0.0
      %506 = vmatprep.subr.mxu0 0.0
      %507 = vmatpush1.msra.mxu0 0.0
      %508 = vmatprep.subr.mxu0 0.0
      %509 = vmatpush1.msra.mxu0 0.0
      %510 = vmatprep.subr.mxu0 0.0
      %511 = vmatpush1.msra.mxu0 0.0
      %512 = vmatprep.subr.mxu0 0.0
      %513 = vmatpush1.msra.mxu0 0.0
      %514 = vmatprep.subr.mxu0 0.0
      %515 = vmatpush1.msra.mxu0 0.0
      %516 = vmatprep.subr.mxu0 0.0
      %517 = vmatpush1.msra.mxu0 0.0
      %518 = vmatprep.mubr.f32.mxu0 0.0
      %519 = vmatmul.mubr.f32.gmra.mrb[0].mxu0 %v452
      %v520 = vpop.f32.mrb[0].mxu0
      %v521 = vadd.f32 0.0, %v520
      %v522 = vpop.f32.mrb[0].mxu0
      %523 = vdwg.mxu0
      %v524 = vld [vmem:[#allocation4] sm:$0xff]
      %526 = vset.pattern.permute.xlu0 0
      %527 = vperm.xlu0 %526, %v434
      %v528 = vpop.permute.xlu0 %527
      %v530 = vmul.f32 %v528, %v524
      %v531 = vadd.f32 %v530, %v521
      %532 = vst.msk [vmem:[#allocation4] sm:$0xff] %vm345, %v531
      %533 = vst.msk [vmem:[#allocation2] sm:$0xff] %vm449, %v431
      %534 = vrot.lane.b32.xlu0 %v344, 120
      %v535 = vpop.permute.xlu0 %534
      %536 = vrot.lane.b32.xlu0 %v334, 120
      %v537 = vpop.permute.xlu0 %536
      %538 = vrot.lane.b32.xlu0 %v335, 120
      %v539 = vpop.permute.xlu0 %538
      %v540 = vsel %vm345, %v535, 0
      %v542 = vsel %vm345, %v537, 0
      %v544 = vsel %vm345, %v539, 0
      %546 = vmatprep.subr.mxu0 0.0
      %547 = vmatpush1.xpose.msra.mxu0 %v542
      %548 = vmatprep.subr.mxu0 0.0
      %549 = vmatpush1.xpose.msra.mxu0 %v544
      %550 = vmatprep.subr.mxu0 0.0
      %551 = vmatpush1.xpose.msra.mxu0 0.0
      %552 = vmatprep.subr.mxu0 0.0
      %553 = vmatpush1.xpose.msra.mxu0 0.0
      %554 = vmatprep.subr.mxu0 0.0
      %555 = vmatpush1.xpose.msra.mxu0 0.0
      %556 = vmatprep.subr.mxu0 0.0
      %557 = vmatpush1.xpose.msra.mxu0 0.0
      %558 = vmatprep.subr.mxu0 0.0
      %559 = vmatpush1.xpose.msra.mxu0 0.0
      %560 = vmatprep.subr.mxu0 0.0
      %561 = vmatpush1.xpose.msra.mxu0 0.0
      %562 = vmatprep.subr.mxu0 0.0
      %563 = vmatpush1.xpose.msra.mxu0 0.0
      %564 = vmatprep.subr.mxu0 0.0
      %565 = vmatpush1.xpose.msra.mxu0 0.0
      %566 = vmatprep.subr.mxu0 0.0
      %567 = vmatpush1.xpose.msra.mxu0 0.0
      %568 = vmatprep.subr.mxu0 0.0
      %569 = vmatpush1.xpose.msra.mxu0 0.0
      %570 = vmatprep.subr.mxu0 0.0
      %571 = vmatpush1.xpose.msra.mxu0 0.0
      %572 = vmatprep.subr.mxu0 0.0
      %573 = vmatpush1.xpose.msra.mxu0 0.0
      %574 = vmatprep.subr.mxu0 0.0
      %575 = vmatpush1.xpose.msra.mxu0 0.0
      %576 = vmatprep.subr.mxu0 0.0
      %577 = vmatpush1.xpose.msra.mxu0 0.0
      %578 = vmatprep.subr.mxu0 0.0
      %579 = vmatpush1.xpose.msra.mxu0 0.0
      %580 = vmatprep.subr.mxu0 0.0
      %581 = vmatpush1.xpose.msra.mxu0 0.0
      %582 = vmatprep.subr.mxu0 0.0
      %583 = vmatpush1.xpose.msra.mxu0 0.0
      %584 = vmatprep.subr.mxu0 0.0
      %585 = vmatpush1.xpose.msra.mxu0 0.0
      %586 = vmatprep.subr.mxu0 0.0
      %587 = vmatpush1.xpose.msra.mxu0 0.0
      %588 = vmatprep.subr.mxu0 0.0
      %589 = vmatpush1.xpose.msra.mxu0 0.0
      %590 = vmatprep.subr.mxu0 0.0
      %591 = vmatpush1.xpose.msra.mxu0 0.0
      %592 = vmatprep.subr.mxu0 0.0
      %593 = vmatpush1.xpose.msra.mxu0 0.0
      %594 = vmatprep.subr.mxu0 0.0
      %595 = vmatpush1.xpose.msra.mxu0 0.0
      %596 = vmatprep.subr.mxu0 0.0
      %597 = vmatpush1.xpose.msra.mxu0 0.0
      %598 = vmatprep.subr.mxu0 0.0
      %599 = vmatpush1.xpose.msra.mxu0 0.0
      %600 = vmatprep.subr.mxu0 0.0
      %601 = vmatpush1.xpose.msra.mxu0 0.0
      %602 = vmatprep.subr.mxu0 0.0
      %603 = vmatpush1.xpose.msra.mxu0 0.0
      %604 = vmatprep.subr.mxu0 0.0
      %605 = vmatpush1.xpose.msra.mxu0 0.0
      %606 = vmatprep.subr.mxu0 0.0
      %607 = vmatpush1.xpose.msra.mxu0 0.0
      %608 = vmatprep.subr.mxu0 0.0
      %609 = vmatpush1.xpose.msra.mxu0 0.0
      %610 = vmatprep.mubr.f32.mxu0 0.0
      %611 = vmatmul.mubr.f32.gmra.mrb[0].mxu0 %v540
      %v612 = vpop.f32.mrb[0].mxu0
      %v613 = vadd.f32 0.0, %v612
      %v614 = vpop.f32.mrb[0].mxu0
      %615 = vdwg.mxu0
      %v616 = vsel %vm343, -1e+30, %v613
      %v617 = vld [vmem:[#allocation2] sm:$0xff]
      %v618 = vsel %vm427, %v616, -inf
      %619 = vmax.xlane.f32.xlu0 %v618
      %v620 = vpop.xlane.xlu0 %619
      %v621 = vmax.f32 %v617, %v620
      %v622 = vsub.f32 %v617, %v621
      %v623 = vmul.f32 %v622, 1.442695
      %v624 = vpow.pop %v623
      %626 = vset.pattern.permute.xlu0 1
      %627 = vperm.xlu0 %626, %v621
      %v628 = vpop.permute.xlu0 %627
      %v630 = vsub.f32 %v616, %v628
      %v631 = vmul.f32 %v630, 1.442695
      %v632 = vpow.pop %v631
      %v633 = vld [vmem:[#allocation3] sm:$0xff]
      %v634 = vmul.f32 %v624, %v633
      %v635 = vsel %vm427, %v632, 0.0
      %636 = vadd.xlane.f32.xlu0 %v635
      %v637 = vpop.xlane.xlu0 %636
      %v638 = vadd.f32 %v634, %v637
      %vm639 = vcmask 15368
      %640 = vst.msk [vmem:[#allocation3] sm:$0xff] %vm639, %v638
      %643 = vrot.lane.b32.xlu0 %v336, 120
      %v644 = vpop.permute.xlu0 %643
      %645 = vrot.lane.b32.xlu0 %v337, 120
      %v646 = vpop.permute.xlu0 %645
      %v650 = vsel %vm427, %v632, 0
      %652 = vmatprep.subr.mxu0 0.0
      %653 = vmatpush1.msra.mxu0 %v644
      %654 = vmatprep.subr.mxu0 0.0
      %655 = vmatpush1.msra.mxu0 %v646
      %656 = vmatprep.subr.mxu0 0.0
      %657 = vmatpush1.msra.mxu0 0.0
      %658 = vmatprep.subr.mxu0 0.0
      %659 = vmatpush1.msra.mxu0 0.0
      %660 = vmatprep.subr.mxu0 0.0
      %661 = vmatpush1.msra.mxu0 0.0
      %662 = vmatprep.subr.mxu0 0.0
      %663 = vmatpush1.msra.mxu0 0.0
      %664 = vmatprep.subr.mxu0 0.0
      %665 = vmatpush1.msra.mxu0 0.0
      %666 = vmatprep.subr.mxu0 0.0
      %667 = vmatpush1.msra.mxu0 0.0
      %668 = vmatprep.subr.mxu0 0.0
      %669 = vmatpush1.msra.mxu0 0.0
      %670 = vmatprep.subr.mxu0 0.0
      %671 = vmatpush1.msra.mxu0 0.0
      %672 = vmatprep.subr.mxu0 0.0
      %673 = vmatpush1.msra.mxu0 0.0
      %674 = vmatprep.subr.mxu0 0.0
      %675 = vmatpush1.msra.mxu0 0.0
      %676 = vmatprep.subr.mxu0 0.0
      %677 = vmatpush1.msra.mxu0 0.0
      %678 = vmatprep.subr.mxu0 0.0
      %679 = vmatpush1.msra.mxu0 0.0
      %680 = vmatprep.subr.mxu0 0.0
      %681 = vmatpush1.msra.mxu0 0.0
      %682 = vmatprep.subr.mxu0 0.0
      %683 = vmatpush1.msra.mxu0 0.0
      %684 = vmatprep.subr.mxu0 0.0
      %685 = vmatpush1.msra.mxu0 0.0
      %686 = vmatprep.subr.mxu0 0.0
      %687 = vmatpush1.msra.mxu0 0.0
      %688 = vmatprep.subr.mxu0 0.0
      %689 = vmatpush1.msra.mxu0 0.0
      %690 = vmatprep.subr.mxu0 0.0
      %691 = vmatpush1.msra.mxu0 0.0
      %692 = vmatprep.subr.mxu0 0.0
      %693 = vmatpush1.msra.mxu0 0.0
      %694 = vmatprep.subr.mxu0 0.0
      %695 = vmatpush1.msra.mxu0 0.0
      %696 = vmatprep.subr.mxu0 0.0
      %697 = vmatpush1.msra.mxu0 0.0
      %698 = vmatprep.subr.mxu0 0.0
      %699 = vmatpush1.msra.mxu0 0.0
      %700 = vmatprep.subr.mxu0 0.0
      %701 = vmatpush1.msra.mxu0 0.0
      %702 = vmatprep.subr.mxu0 0.0
      %703 = vmatpush1.msra.mxu0 0.0
      %704 = vmatprep.subr.mxu0 0.0
      %705 = vmatpush1.msra.mxu0 0.0
      %706 = vmatprep.subr.mxu0 0.0
      %707 = vmatpush1.msra.mxu0 0.0
      %708 = vmatprep.subr.mxu0 0.0
      %709 = vmatpush1.msra.mxu0 0.0
      %710 = vmatprep.subr.mxu0 0.0
      %711 = vmatpush1.msra.mxu0 0.0
      %712 = vmatprep.subr.mxu0 0.0
      %713 = vmatpush1.msra.mxu0 0.0
      %714 = vmatprep.subr.mxu0 0.0
      %715 = vmatpush1.msra.mxu0 0.0
      %716 = vmatprep.mubr.f32.mxu0 0.0
      %717 = vmatmul.mubr.f32.gmra.mrb[0].mxu0 %v650
      %v718 = vpop.f32.mrb[0].mxu0
      %v719 = vadd.f32 0.0, %v718
      %v720 = vpop.f32.mrb[0].mxu0
      %721 = vdwg.mxu0
      %v722 = vld [vmem:[#allocation4] sm:$0xff]
      %724 = vset.pattern.permute.xlu0 1
      %725 = vperm.xlu0 %724, %v624
      %v726 = vpop.permute.xlu0 %725
      %v728 = vmul.f32 %v726, %v722
      %730 = vrot.lane.b32.xlu0 %v719, 8
      %v731 = vpop.permute.xlu0 %730
      %v733 = vadd.f32 %v728, %v731
      %vm734 = vcmask 130112
      %735 = vst.msk [vmem:[#allocation4] sm:$0xff] %vm734, %v733
      %736 = vst.msk [vmem:[#allocation2] sm:$0xff] %vm639, %v621
      %737 = vrot.lane.b32.xlu0 %v344, 112
      %v738 = vpop.permute.xlu0 %737
      %739 = vrot.lane.b32.xlu0 %v334, 112
      %v740 = vpop.permute.xlu0 %739
      %741 = vrot.lane.b32.xlu0 %v335, 112
      %v742 = vpop.permute.xlu0 %741
      %v743 = vsel %vm345, %v738, 0
      %v745 = vsel %vm345, %v740, 0
      %v747 = vsel %vm345, %v742, 0
      %749 = vmatprep.subr.mxu0 0.0
      %750 = vmatpush1.xpose.msra.mxu0 %v745
      %751 = vmatprep.subr.mxu0 0.0
      %752 = vmatpush1.xpose.msra.mxu0 %v747
      %753 = vmatprep.subr.mxu0 0.0
      %754 = vmatpush1.xpose.msra.mxu0 0.0
      %755 = vmatprep.subr.mxu0 0.0
      %756 = vmatpush1.xpose.msra.mxu0 0.0
      %757 = vmatprep.subr.mxu0 0.0
      %758 = vmatpush1.xpose.msra.mxu0 0.0
      %759 = vmatprep.subr.mxu0 0.0
      %760 = vmatpush1.xpose.msra.mxu0 0.0
      %761 = vmatprep.subr.mxu0 0.0
      %762 = vmatpush1.xpose.msra.mxu0 0.0
      %763 = vmatprep.subr.mxu0 0.0
      %764 = vmatpush1.xpose.msra.mxu0 0.0
      %765 = vmatprep.subr.mxu0 0.0
      %766 = vmatpush1.xpose.msra.mxu0 0.0
      %767 = vmatprep.subr.mxu0 0.0
      %768 = vmatpush1.xpose.msra.mxu0 0.0
      %769 = vmatprep.subr.mxu0 0.0
      %770 = vmatpush1.xpose.msra.mxu0 0.0
      %771 = vmatprep.subr.mxu0 0.0
      %772 = vmatpush1.xpose.msra.mxu0 0.0
      %773 = vmatprep.subr.mxu0 0.0
      %774 = vmatpush1.xpose.msra.mxu0 0.0
      %775 = vmatprep.subr.mxu0 0.0
      %776 = vmatpush1.xpose.msra.mxu0 0.0
      %777 = vmatprep.subr.mxu0 0.0
      %778 = vmatpush1.xpose.msra.mxu0 0.0
      %779 = vmatprep.subr.mxu0 0.0
      %780 = vmatpush1.xpose.msra.mxu0 0.0
      %781 = vmatprep.subr.mxu0 0.0
      %782 = vmatpush1.xpose.msra.mxu0 0.0
      %783 = vmatprep.subr.mxu0 0.0
      %784 = vmatpush1.xpose.msra.mxu0 0.0
      %785 = vmatprep.subr.mxu0 0.0
      %786 = vmatpush1.xpose.msra.mxu0 0.0
      %787 = vmatprep.subr.mxu0 0.0
      %788 = vmatpush1.xpose.msra.mxu0 0.0
      %789 = vmatprep.subr.mxu0 0.0
      %790 = vmatpush1.xpose.msra.mxu0 0.0
      %791 = vmatprep.subr.mxu0 0.0
      %792 = vmatpush1.xpose.msra.mxu0 0.0
      %793 = vmatprep.subr.mxu0 0.0
      %794 = vmatpush1.xpose.msra.mxu0 0.0
      %795 = vmatprep.subr.mxu0 0.0
      %796 = vmatpush1.xpose.msra.mxu0 0.0
      %797 = vmatprep.subr.mxu0 0.0
      %798 = vmatpush1.xpose.msra.mxu0 0.0
      %799 = vmatprep.subr.mxu0 0.0
      %800 = vmatpush1.xpose.msra.mxu0 0.0
      %801 = vmatprep.subr.mxu0 0.0
      %802 = vmatpush1.xpose.msra.mxu0 0.0
      %803 = vmatprep.subr.mxu0 0.0
      %804 = vmatpush1.xpose.msra.mxu0 0.0
      %805 = vmatprep.subr.mxu0 0.0
      %806 = vmatpush1.xpose.msra.mxu0 0.0
      %807 = vmatprep.subr.mxu0 0.0
      %808 = vmatpush1.xpose.msra.mxu0 0.0
      %809 = vmatprep.subr.mxu0 0.0
      %810 = vmatpush1.xpose.msra.mxu0 0.0
      %811 = vmatprep.subr.mxu0 0.0
      %812 = vmatpush1.xpose.msra.mxu0 0.0
      %813 = vmatprep.mubr.f32.mxu0 0.0
      %814 = vmatmul.mubr.f32.gmra.mrb[0].mxu0 %v743
      %v815 = vpop.f32.mrb[0].mxu0
      %v816 = vadd.f32 0.0, %v815
      %v817 = vpop.f32.mrb[0].mxu0
      %818 = vdwg.mxu0
      %v819 = vsel %vm343, -1e+30, %v816
      %v820 = vld [vmem:[#allocation2] sm:$0xff]
      %v821 = vsel %vm427, %v819, -inf
      %822 = vmax.xlane.f32.xlu0 %v821
      %v823 = vpop.xlane.xlu0 %822
      %v824 = vmax.f32 %v820, %v823
      %v825 = vsub.f32 %v820, %v824
      %v826 = vmul.f32 %v825, 1.442695
      %v827 = vpow.pop %v826
      %829 = vset.pattern.permute.xlu0 2
      %830 = vperm.xlu0 %829, %v824
      %v831 = vpop.permute.xlu0 %830
      %v833 = vsub.f32 %v819, %v831
      %v834 = vmul.f32 %v833, 1.442695
      %v835 = vpow.pop %v834
      %v836 = vld [vmem:[#allocation3] sm:$0xff]
      %v837 = vmul.f32 %v827, %v836
      %v838 = vsel %vm427, %v835, 0.0
      %839 = vadd.xlane.f32.xlu0 %v838
      %v840 = vpop.xlane.xlu0 %839
      %v841 = vadd.f32 %v837, %v840
      %vm842 = vcmask 23568
      %843 = vst.msk [vmem:[#allocation3] sm:$0xff] %vm842, %v841
      %844 = vrot.lane.b32.xlu0 %v336, 112
      %v845 = vpop.permute.xlu0 %844
      %846 = vrot.lane.b32.xlu0 %v337, 112
      %v847 = vpop.permute.xlu0 %846
      %v851 = vsel %vm427, %v835, 0
      %853 = vmatprep.subr.mxu0 0.0
      %854 = vmatpush1.msra.mxu0 %v845
      %855 = vmatprep.subr.mxu0 0.0
      %856 = vmatpush1.msra.mxu0 %v847
      %857 = vmatprep.subr.mxu0 0.0
      %858 = vmatpush1.msra.mxu0 0.0
      %859 = vmatprep.subr.mxu0 0.0
      %860 = vmatpush1.msra.mxu0 0.0
      %861 = vmatprep.subr.mxu0 0.0
      %862 = vmatpush1.msra.mxu0 0.0
      %863 = vmatprep.subr.mxu0 0.0
      %864 = vmatpush1.msra.mxu0 0.0
      %865 = vmatprep.subr.mxu0 0.0
      %866 = vmatpush1.msra.mxu0 0.0
      %867 = vmatprep.subr.mxu0 0.0
      %868 = vmatpush1.msra.mxu0 0.0
      %869 = vmatprep.subr.mxu0 0.0
      %870 = vmatpush1.msra.mxu0 0.0
      %871 = vmatprep.subr.mxu0 0.0
      %872 = vmatpush1.msra.mxu0 0.0
      %873 = vmatprep.subr.mxu0 0.0
      %874 = vmatpush1.msra.mxu0 0.0
      %875 = vmatprep.subr.mxu0 0.0
      %876 = vmatpush1.msra.mxu0 0.0
      %877 = vmatprep.subr.mxu0 0.0
      %878 = vmatpush1.msra.mxu0 0.0
      %879 = vmatprep.subr.mxu0 0.0
      %880 = vmatpush1.msra.mxu0 0.0
      %881 = vmatprep.subr.mxu0 0.0
      %882 = vmatpush1.msra.mxu0 0.0
      %883 = vmatprep.subr.mxu0 0.0
      %884 = vmatpush1.msra.mxu0 0.0
      %885 = vmatprep.subr.mxu0 0.0
      %886 = vmatpush1.msra.mxu0 0.0
      %887 = vmatprep.subr.mxu0 0.0
      %888 = vmatpush1.msra.mxu0 0.0
      %889 = vmatprep.subr.mxu0 0.0
      %890 = vmatpush1.msra.mxu0 0.0
      %891 = vmatprep.subr.mxu0 0.0
      %892 = vmatpush1.msra.mxu0 0.0
      %893 = vmatprep.subr.mxu0 0.0
      %894 = vmatpush1.msra.mxu0 0.0
      %895 = vmatprep.subr.mxu0 0.0
      %896 = vmatpush1.msra.mxu0 0.0
      %897 = vmatprep.subr.mxu0 0.0
      %898 = vmatpush1.msra.mxu0 0.0
      %899 = vmatprep.subr.mxu0 0.0
      %900 = vmatpush1.msra.mxu0 0.0
      %901 = vmatprep.subr.mxu0 0.0
      %902 = vmatpush1.msra.mxu0 0.0
      %903 = vmatprep.subr.mxu0 0.0
      %904 = vmatpush1.msra.mxu0 0.0
      %905 = vmatprep.subr.mxu0 0.0
      %906 = vmatpush1.msra.mxu0 0.0
      %907 = vmatprep.subr.mxu0 0.0
      %908 = vmatpush1.msra.mxu0 0.0
      %909 = vmatprep.subr.mxu0 0.0
      %910 = vmatpush1.msra.mxu0 0.0
      %911 = vmatprep.subr.mxu0 0.0
      %912 = vmatpush1.msra.mxu0 0.0
      %913 = vmatprep.subr.mxu0 0.0
      %914 = vmatpush1.msra.mxu0 0.0
      %915 = vmatprep.subr.mxu0 0.0
      %916 = vmatpush1.msra.mxu0 0.0
      %917 = vmatprep.mubr.f32.mxu0 0.0
      %918 = vmatmul.mubr.f32.gmra.mrb[0].mxu0 %v851
      %v919 = vpop.f32.mrb[0].mxu0
      %v920 = vadd.f32 0.0, %v919
      %v921 = vpop.f32.mrb[0].mxu0
      %922 = vdwg.mxu0
      %v923 = vld [vmem:[#allocation4] sm:$0xff]
      %925 = vset.pattern.permute.xlu0 2
      %926 = vperm.xlu0 %925, %v827
      %v927 = vpop.permute.xlu0 %926
      %v929 = vmul.f32 %v927, %v923
      %931 = vrot.lane.b32.xlu0 %v920, 16
      %v932 = vpop.permute.xlu0 %931
      %v934 = vadd.f32 %v929, %v932
      %vm935 = vcmask 195712
      %936 = vst.msk [vmem:[#allocation4] sm:$0xff] %vm935, %v934
      %937 = vst.msk [vmem:[#allocation2] sm:$0xff] %vm842, %v824
      %938 = vrot.lane.b32.xlu0 %v344, 104
      %v939 = vpop.permute.xlu0 %938
      %940 = vrot.lane.b32.xlu0 %v334, 104
      %v941 = vpop.permute.xlu0 %940
      %942 = vrot.lane.b32.xlu0 %v335, 104
      %v943 = vpop.permute.xlu0 %942
      %v944 = vsel %vm345, %v939, 0
      %v946 = vsel %vm345, %v941, 0
      %v948 = vsel %vm345, %v943, 0
      %950 = vmatprep.subr.mxu0 0.0
      %951 = vmatpush1.xpose.msra.mxu0 %v946
      %952 = vmatprep.subr.mxu0 0.0
      %953 = vmatpush1.xpose.msra.mxu0 %v948
      %954 = vmatprep.subr.mxu0 0.0
      %955 = vmatpush1.xpose.msra.mxu0 0.0
      %956 = vmatprep.subr.mxu0 0.0
      %957 = vmatpush1.xpose.msra.mxu0 0.0
      %958 = vmatprep.subr.mxu0 0.0
      %959 = vmatpush1.xpose.msra.mxu0 0.0
      %960 = vmatprep.subr.mxu0 0.0
      %961 = vmatpush1.xpose.msra.mxu0 0.0
      %962 = vmatprep.subr.mxu0 0.0
      %963 = vmatpush1.xpose.msra.mxu0 0.0
      %964 = vmatprep.subr.mxu0 0.0
      %965 = vmatpush1.xpose.msra.mxu0 0.0
      %966 = vmatprep.subr.mxu0 0.0
      %967 = vmatpush1.xpose.msra.mxu0 0.0
      %968 = vmatprep.subr.mxu0 0.0
      %969 = vmatpush1.xpose.msra.mxu0 0.0
      %970 = vmatprep.subr.mxu0 0.0
      %971 = vmatpush1.xpose.msra.mxu0 0.0
      %972 = vmatprep.subr.mxu0 0.0
      %973 = vmatpush1.xpose.msra.mxu0 0.0
      %974 = vmatprep.subr.mxu0 0.0
      %975 = vmatpush1.xpose.msra.mxu0 0.0
      %976 = vmatprep.subr.mxu0 0.0
      %977 = vmatpush1.xpose.msra.mxu0 0.0
      %978 = vmatprep.subr.mxu0 0.0
      %979 = vmatpush1.xpose.msra.mxu0 0.0
      %980 = vmatprep.subr.mxu0 0.0
      %981 = vmatpush1.xpose.msra.mxu0 0.0
      %982 = vmatprep.subr.mxu0 0.0
      %983 = vmatpush1.xpose.msra.mxu0 0.0
      %984 = vmatprep.subr.mxu0 0.0
      %985 = vmatpush1.xpose.msra.mxu0 0.0
      %986 = vmatprep.subr.mxu0 0.0
      %987 = vmatpush1.xpose.msra.mxu0 0.0
      %988 = vmatprep.subr.mxu0 0.0
      %989 = vmatpush1.xpose.msra.mxu0 0.0
      %990 = vmatprep.subr.mxu0 0.0
      %991 = vmatpush1.xpose.msra.mxu0 0.0
      %992 = vmatprep.subr.mxu0 0.0
      %993 = vmatpush1.xpose.msra.mxu0 0.0
      %994 = vmatprep.subr.mxu0 0.0
      %995 = vmatpush1.xpose.msra.mxu0 0.0
      %996 = vmatprep.subr.mxu0 0.0
      %997 = vmatpush1.xpose.msra.mxu0 0.0
      %998 = vmatprep.subr.mxu0 0.0
      %999 = vmatpush1.xpose.msra.mxu0 0.0
      %1000 = vmatprep.subr.mxu0 0.0
      %1001 = vmatpush1.xpose.msra.mxu0 0.0
      %1002 = vmatprep.subr.mxu0 0.0
      %1003 = vmatpush1.xpose.msra.mxu0 0.0
      %1004 = vmatprep.subr.mxu0 0.0
      %1005 = vmatpush1.xpose.msra.mxu0 0.0
      %1006 = vmatprep.subr.mxu0 0.0
      %1007 = vmatpush1.xpose.msra.mxu0 0.0
      %1008 = vmatprep.subr.mxu0 0.0
      %1009 = vmatpush1.xpose.msra.mxu0 0.0
      %1010 = vmatprep.subr.mxu0 0.0
      %1011 = vmatpush1.xpose.msra.mxu0 0.0
      %1012 = vmatprep.subr.mxu0 0.0
      %1013 = vmatpush1.xpose.msra.mxu0 0.0
      %1014 = vmatprep.mubr.f32.mxu0 0.0
      %1015 = vmatmul.mubr.f32.gmra.mrb[0].mxu0 %v944
      %v1016 = vpop.f32.mrb[0].mxu0
      %v1017 = vadd.f32 0.0, %v1016
      %v1018 = vpop.f32.mrb[0].mxu0
      %1019 = vdwg.mxu0
      %v1020 = vsel %vm343, -1e+30, %v1017
      %v1021 = vld [vmem:[#allocation2] sm:$0xff]
      %v1022 = vsel %vm427, %v1020, -inf
      %1023 = vmax.xlane.f32.xlu0 %v1022
      %v1024 = vpop.xlane.xlu0 %1023
      %v1025 = vmax.f32 %v1021, %v1024
      %v1026 = vsub.f32 %v1021, %v1025
      %v1027 = vmul.f32 %v1026, 1.442695
      %v1028 = vpow.pop %v1027
      %1030 = vset.pattern.permute.xlu0 3
      %1031 = vperm.xlu0 %1030, %v1025
      %v1032 = vpop.permute.xlu0 %1031
      %v1034 = vsub.f32 %v1020, %v1032
      %v1035 = vmul.f32 %v1034, 1.442695
      %v1036 = vpow.pop %v1035
      %v1037 = vld [vmem:[#allocation3] sm:$0xff]
      %v1038 = vmul.f32 %v1028, %v1037
      %v1039 = vsel %vm427, %v1036, 0.0
      %1040 = vadd.xlane.f32.xlu0 %v1039
      %v1041 = vpop.xlane.xlu0 %1040
      %v1042 = vadd.f32 %v1038, %v1041
      %vm1043 = vcmask 31768
      %1044 = vst.msk [vmem:[#allocation3] sm:$0xff] %vm1043, %v1042
      %1045 = vrot.lane.b32.xlu0 %v336, 104
      %v1046 = vpop.permute.xlu0 %1045
      %1047 = vrot.lane.b32.xlu0 %v337, 104
      %v1048 = vpop.permute.xlu0 %1047
      %v1052 = vsel %vm427, %v1036, 0
      %1054 = vmatprep.subr.mxu0 0.0
      %1055 = vmatpush1.msra.mxu0 %v1046
      %1056 = vmatprep.subr.mxu0 0.0
      %1057 = vmatpush1.msra.mxu0 %v1048
      %1058 = vmatprep.subr.mxu0 0.0
      %1059 = vmatpush1.msra.mxu0 0.0
      %1060 = vmatprep.subr.mxu0 0.0
      %1061 = vmatpush1.msra.mxu0 0.0
      %1062 = vmatprep.subr.mxu0 0.0
      %1063 = vmatpush1.msra.mxu0 0.0
      %1064 = vmatprep.subr.mxu0 0.0
      %1065 = vmatpush1.msra.mxu0 0.0
      %1066 = vmatprep.subr.mxu0 0.0
      %1067 = vmatpush1.msra.mxu0 0.0
      %1068 = vmatprep.subr.mxu0 0.0
      %1069 = vmatpush1.msra.mxu0 0.0
      %1070 = vmatprep.subr.mxu0 0.0
      %1071 = vmatpush1.msra.mxu0 0.0
      %1072 = vmatprep.subr.mxu0 0.0
      %1073 = vmatpush1.msra.mxu0 0.0
      %1074 = vmatprep.subr.mxu0 0.0
      %1075 = vmatpush1.msra.mxu0 0.0
      %1076 = vmatprep.subr.mxu0 0.0
      %1077 = vmatpush1.msra.mxu0 0.0
      %1078 = vmatprep.subr.mxu0 0.0
      %1079 = vmatpush1.msra.mxu0 0.0
      %1080 = vmatprep.subr.mxu0 0.0
      %1081 = vmatpush1.msra.mxu0 0.0
      %1082 = vmatprep.subr.mxu0 0.0
      %1083 = vmatpush1.msra.mxu0 0.0
      %1084 = vmatprep.subr.mxu0 0.0
      %1085 = vmatpush1.msra.mxu0 0.0
      %1086 = vmatprep.subr.mxu0 0.0
      %1087 = vmatpush1.msra.mxu0 0.0
      %1088 = vmatprep.subr.mxu0 0.0
      %1089 = vmatpush1.msra.mxu0 0.0
      %1090 = vmatprep.subr.mxu0 0.0
      %1091 = vmatpush1.msra.mxu0 0.0
      %1092 = vmatprep.subr.mxu0 0.0
      %1093 = vmatpush1.msra.mxu0 0.0
      %1094 = vmatprep.subr.mxu0 0.0
      %1095 = vmatpush1.msra.mxu0 0.0
      %1096 = vmatprep.subr.mxu0 0.0
      %1097 = vmatpush1.msra.mxu0 0.0
      %1098 = vmatprep.subr.mxu0 0.0
      %1099 = vmatpush1.msra.mxu0 0.0
      %1100 = vmatprep.subr.mxu0 0.0
      %1101 = vmatpush1.msra.mxu0 0.0
      %1102 = vmatprep.subr.mxu0 0.0
      %1103 = vmatpush1.msra.mxu0 0.0
      %1104 = vmatprep.subr.mxu0 0.0
      %1105 = vmatpush1.msra.mxu0 0.0
      %1106 = vmatprep.subr.mxu0 0.0
      %1107 = vmatpush1.msra.mxu0 0.0
      %1108 = vmatprep.subr.mxu0 0.0
      %1109 = vmatpush1.msra.mxu0 0.0
      %1110 = vmatprep.subr.mxu0 0.0
      %1111 = vmatpush1.msra.mxu0 0.0
      %1112 = vmatprep.subr.mxu0 0.0
      %1113 = vmatpush1.msra.mxu0 0.0
      %1114 = vmatprep.subr.mxu0 0.0
      %1115 = vmatpush1.msra.mxu0 0.0
      %1116 = vmatprep.subr.mxu0 0.0
      %1117 = vmatpush1.msra.mxu0 0.0
      %1118 = vmatprep.mubr.f32.mxu0 0.0
      %1119 = vmatmul.mubr.f32.gmra.mrb[0].mxu0 %v1052
      %v1120 = vpop.f32.mrb[0].mxu0
      %v1121 = vadd.f32 0.0, %v1120
      %v1122 = vpop.f32.mrb[0].mxu0
      %1123 = vdwg.mxu0
      %v1124 = vld [vmem:[#allocation4] sm:$0xff]
      %1126 = vset.pattern.permute.xlu0 3
      %1127 = vperm.xlu0 %1126, %v1028
      %v1128 = vpop.permute.xlu0 %1127
      %v1130 = vmul.f32 %v1128, %v1124
      %1132 = vrot.lane.b32.xlu0 %v1121, 24
      %v1133 = vpop.permute.xlu0 %1132
      %v1135 = vadd.f32 %v1130, %v1133
      %vm1136 = vcmask 261312
      %1137 = vst.msk [vmem:[#allocation4] sm:$0xff] %vm1136, %v1135
      %1138 = vst.msk [vmem:[#allocation2] sm:$0xff] %vm1043, %v1025
      // Predicated region
      $region37: #{residual_attention_block.13} parent=31 // pred_check
        %p1139 = pneg %p324
      $region38: #{residual_attention_block.13} parent=31 // pred_check_branch
        %1141 = sbr.rel (%p1139) target = $region40
      $region39: #{residual_attention_block.13} parent=31 // pred_region
        %v1142 = vld [vmem:[#allocation3] sm:$0xff]
        %v1143 = vrcp.pop %v1142
        %v1144 = vld [vmem:[#allocation4] sm:$0xff]
        %1146 = vset.pattern.permute.xlu0 0
        %1147 = vperm.xlu0 %1146, %v1143
        %v1148 = vpop.permute.xlu0 %1147
        %v1150 = vmul.f32 %v1144, %v1148
        %1151 = vst.msk [vmem:[#allocation4] sm:$0xff] %vm345, %v1150
        %v1152 = vld [vmem:[#allocation4] sm:$0xff]
        %1153 = vset.pattern.permute.xlu0 1
        %1154 = vperm.xlu0 %1153, %v1143
        %v1155 = vpop.permute.xlu0 %1154
        %v1157 = vmul.f32 %v1152, %v1155
        %1158 = vst.msk [vmem:[#allocation4] sm:$0xff] %vm734, %v1157
        %v1159 = vld [vmem:[#allocation4] sm:$0xff]
        %1160 = vset.pattern.permute.xlu0 2
        %1161 = vperm.xlu0 %1160, %v1143
        %v1162 = vpop.permute.xlu0 %1161
        %v1164 = vmul.f32 %v1159, %v1162
        %1165 = vst.msk [vmem:[#allocation4] sm:$0xff] %vm935, %v1164
        %v1166 = vld [vmem:[#allocation4] sm:$0xff]
        %1167 = vset.pattern.permute.xlu0 3
        %1168 = vperm.xlu0 %1167, %v1143
        %v1169 = vpop.permute.xlu0 %1168
        %v1171 = vmul.f32 %v1166, %v1169
        %1172 = vst.msk [vmem:[#allocation4] sm:$0xff] %vm1136, %v1171
        %v1173 = vld [vmem:[#allocation4] sm:$0xff]
        %vm1174 = vcmask 261120
        %1175 = vst.msk [vmem:[%s323] sm:$0xff] %vm1174, %v1173
      $region40: #{residual_attention_block.13} parent=31 // pred_fallthru
        _
      %p1176 = scmp.lt.s32.totalorder %s20, 1
      %s1177 = scalar_select %p1176, %s20, 1
      %p1178 = scmp.lt.s32.totalorder %s22, 0
      %s1179 = scalar_select %p1178, %s22, 0
      %p1180 = scmp.lt.s32.totalorder %s21, 0
      %s1181 = scalar_select %p1180, %s21, 0
      %s1182 = sadd.s32 %s1181, %s1179
      %s1183 = sadd.s32 %s1182, %s1177
      %s1184 = smul.addr %s1183, 8
      %s1185 = scalar_lea.vmem %s3, %s1184
      // Predicated region
      $region41: #{residual_attention_block.13} parent=31 // pred_check
        %p1186 = pneg %p152
      $region42: #{residual_attention_block.13} parent=31 // pred_check_branch
        %1188 = sbr.rel (%p1186) target = $region44
      $region43: #{residual_attention_block.13} parent=31 // pred_region
        _
      $region44: #{residual_attention_block.13} parent=31 // pred_fallthru
        _
    $region32: #{residual_attention_block.13} parent=5 // pred_fallthru
      _
    %p1189 = scmp.le.s32.totalorder 2, %s9
    // Predicated region
    $region45: #{residual_attention_block.13} parent=5 // pred_check
      %p1190 = pneg %p1189
    $region46: #{residual_attention_block.13} parent=5 // pred_check_branch
      %1192 = sbr.rel (%p1190) target = $region48
    $region47: #{residual_attention_block.13} parent=5 // pred_region
      %s1193 = ssub.s32 %s9, 2
      // Predicated region
      $region49: #{residual_attention_block.13} parent=47 // pred_check
        %p1194 = pneg %p158
      $region50: #{residual_attention_block.13} parent=47 // pred_check_branch
        %1196 = sbr.rel (%p1194) target = $region52
      $region51: #{residual_attention_block.13} parent=47 // pred_region
        %p1197 = scmp.lt.s32.totalorder %s24, 1
        %s1198 = scalar_select %p1197, %s24, 1
        %p1199 = scmp.lt.s32.totalorder %s26, 0
        %s1200 = scalar_select %p1199, %s26, 0
        %p1201 = scmp.lt.s32.totalorder %s25, 0
        %s1202 = scalar_select %p1201, %s25, 0
        %s1203 = sadd.s32 %s1202, %s1200
        %s1204 = sadd.s32 %s1203, %s1198
        %s1205 = smul.addr %s1204, 8
        %s1206 = scalar_lea.vmem %s3, %s1205
      $region52: #{residual_attention_block.13} parent=47 // pred_fallthru
        _
    $region48: #{residual_attention_block.13} parent=5 // pred_fallthru
      _
  $region6: #{residual_attention_block.13} parent=0 // loop_footer
    %s13 = sadd.s32 1, %s9
  $region7: #{residual_attention_block.13} parent=0 // loop_footer_branch
    %8 = sbr.rel target = $region3
  $region8: #{residual_attention_block.13} parent=0 // loop_exit
    _

</llo_original>
